<compile_context>
chip_gen: v6e
topology: v6e:2x2x1
jax: 0.10.0
libtpu: 0.0.40
codegen_flags: <defaults>
</compile_context>

<pallas_src>
import jax
import jax.numpy as jnp
from jax.experimental import pallas as pl
from jax.experimental.pallas import tpu as pltpu

EPS = 1e-5
_VMEM_LIMIT = 64 * 1024 * 1024


def _cparams(*sem):
    return pltpu.CompilerParams(dimension_semantics=sem,
                                vmem_limit_bytes=_VMEM_LIMIT)


# ---------------------------------------------------------------------------
# Kernel 1: 2x2 / stride-2 max pool.
# The input is pre-reshaped (free, contiguous) to (B, Hc, 2, Wc, 2*C) so the
# pool reduces over a leading dim and over the two halves of the lane dim --
# no strided or masked accesses. Output is bf16 (it only feeds the MXU).
# ---------------------------------------------------------------------------
def _maxpool_kernel(x_ref, o_ref):
    c = o_ref.shape[-1]
    v = x_ref[0]                                    # (th, 2, Wc, 2C) f32
    a = jnp.maximum(v[:, 0], v[:, 1])               # reduce H pairs
    o_ref[0] = jnp.maximum(a[..., :c], a[..., c:]).astype(o_ref.dtype)  # W pairs


def _maxpool(x_nhwc, tile_h):
    B, H, W, C = x_nhwc.shape
    Hc, Wc = H // 2, W // 2
    x6 = x_nhwc.reshape(B, Hc, 2, Wc, 2 * C)        # contiguous reshape (free)
    th = tile_h if (tile_h and Hc % tile_h == 0) else Hc
    return pl.pallas_call(
        _maxpool_kernel,
        out_shape=jax.ShapeDtypeStruct((B, Hc, Wc, C), jnp.bfloat16),
        grid=(B, Hc // th),
        in_specs=[pl.BlockSpec((1, th, 2, Wc, 2 * C),
                               lambda b, i: (b, i, 0, 0, 0))],
        out_specs=pl.BlockSpec((1, th, Wc, C), lambda b, i: (b, i, 0, 0)),
        compiler_params=_cparams("parallel", "parallel"),
    )(x6)


# ---------------------------------------------------------------------------
# Kernel 2: 3x3 conv (pad=1) + bias = pass A of the split BatchNorm.
#   - activation arrives spatially pre-padded: (B, Hc+2, Wc+2, Cin) bf16
#   - per grid step (b, i) the kernel sees a th-row main tile plus two 1-row
#     halo refs of the same padded array (concatenated in VMEM)
#   - 9 shifted-window bf16 matmuls accumulate into f32 (no HBM im2col)
#   - outputs: pre-BN activation tile (f32) and a per-batch [sum; sumsq]
#     accumulator revisited across the row-tile ("arbitrary") axis
# ---------------------------------------------------------------------------
def _conv3x3_passA_kernel(xm_ref, h0_ref, h1_ref, w_ref, b_ref, y_ref, st_ref):
    th = xm_ref.shape[1]
    wc = y_ref.shape[2]
    cout = y_ref.shape[3]

    # (th+2, Wc+2, Cin) halo tile, resident in VMEM
    x = jnp.concatenate([xm_ref[0], h0_ref[0], h1_ref[0]], axis=0)

    acc = jnp.zeros((th * wc, cout), jnp.float32)
    for dy in range(3):                              # unrolled 9-tap gather
        for dx in range(3):
            patch = x[dy:dy + th, dx:dx + wc, :].reshape(th * wc, -1)
            acc = acc + jnp.dot(patch, w_ref[dy, dx],
                                preferred_element_type=jnp.float32)
    acc = acc + b_ref[...]                           # bias, f32

    y_ref[...] = acc.reshape(1, th, wc, cout)

    # single pass over acc for both reductions (sum & sum-of-squares)
    s = jnp.sum(acc, axis=0, keepdims=True)
    ss = jnp.sum(acc * acc, axis=0, keepdims=True)
    upd = jnp.concatenate([s, ss], axis=0).reshape(1, 2, cout)

    @pl.when(pl.program_id(1) == 0)
    def _():
        st_ref[...] = jnp.zeros_like(st_ref)

    st_ref[...] += upd


def _conv3x3_passA(xpad_bf16, w_oihw, bias, tile_h):
    """xpad_bf16: (B, Hc+2, Wc+2, Cin) bf16 spatially zero-padded activation."""
    B, Hp, Wp, Cin = xpad_bf16.shape
    Hc, Wc = Hp - 2, Wp - 2
    Cout = w_oihw.shape[0]
    th = tile_h if (tile_h and Hc % tile_h == 0) else Hc
    nH = Hc // th

    wt = jnp.transpose(w_oihw, (2, 3, 1, 0)).astype(jnp.bfloat16)  # (3,3,Cin,Cout)
    brow = bias.reshape(1, Cout).astype(jnp.float32)

    return pl.pallas_call(
        _conv3x3_passA_kernel,
        out_shape=(jax.ShapeDtypeStruct((B, Hc, Wc, Cout), jnp.float32),
                   jax.ShapeDtypeStruct((B, 2, Cout), jnp.float32)),
        grid=(B, nH),
        in_specs=[
            # main th-row window of the padded activation
            pl.BlockSpec((1, th, Wp, Cin), lambda b, i: (b, i, 0, 0)),
            # two 1-row bottom halo windows of the same array
            pl.BlockSpec((1, 1, Wp, Cin), lambda b, i: (b, i * th + th, 0, 0)),
            pl.BlockSpec((1, 1, Wp, Cin), lambda b, i: (b, i * th + th + 1, 0, 0)),
            pl.BlockSpec((3, 3, Cin, Cout), lambda b, i: (0, 0, 0, 0)),
            pl.BlockSpec((1, Cout), lambda b, i: (0, 0)),
        ],
        out_specs=(
            pl.BlockSpec((1, th, Wc, Cout), lambda b, i: (b, i, 0, 0)),
            # revisited across the row-tile axis -> per-batch stats accumulator
            pl.BlockSpec((1, 2, Cout), lambda b, i: (b, 0, 0)),
        ),
        compiler_params=_cparams("parallel", "arbitrary"),
    )(xpad_bf16, xpad_bf16, xpad_bf16, wt, brow)


def _bn_affine(stats, gamma, beta, n):
    """Fold batch statistics into per-channel scale/shift (tiny XLA glue)."""
    s = jnp.sum(stats, axis=0)                       # (2, Cout)
    mean = s[0] / n
    var = s[1] / n - mean * mean                     # biased variance
    scale = gamma * jax.lax.rsqrt(var + EPS)
    shift = beta - mean * scale
    return scale, shift


# ---------------------------------------------------------------------------
# Kernel 3: pass B of the split BatchNorm: y*scale + shift, ReLU.
# Runs on a lane-dense (B*Hc, Wc*Cout) view so loads/stores use wide lanes
# instead of Cout-wide masked stores.
# ---------------------------------------------------------------------------
def _bn_relu_kernel(y_ref, s_ref, t_ref, o_ref):
    o_ref[...] = jnp.maximum(y_ref[...] * s_ref[...] + t_ref[...],
                             0.0).astype(o_ref.dtype)


def _bn_relu_passB(y, scale, shift, out_dtype, tile_rows):
    B, Hc, Wc, Cout = y.shape
    R, L = B * Hc, Wc * Cout
    y2 = y.reshape(R, L)                             # contiguous (free)
    srow = jnp.tile(scale, Wc).reshape(1, L)
    trow = jnp.tile(shift, Wc).reshape(1, L)
    tr = tile_rows if (tile_rows and R % tile_rows == 0
                       and (tile_rows % 8 == 0 or tile_rows == R)) else R
    out = pl.pallas_call(
        _bn_relu_kernel,
        out_shape=jax.ShapeDtypeStruct((R, L), out_dtype),
        grid=(R // tr,),
        in_specs=[pl.BlockSpec((tr, L), lambda i: (i, 0)),
                  pl.BlockSpec((1, L), lambda i: (0, 0)),
                  pl.BlockSpec((1, L), lambda i: (0, 0))],
        out_specs=pl.BlockSpec((tr, L), lambda i: (i, 0)),
        compiler_params=_cparams("parallel"),
    )(y2, srow, trow)
    return out.reshape(B, Hc, Wc, Cout)


# ---------------------------------------------------------------------------
# down_layer forward
# ---------------------------------------------------------------------------
def down_layer_forward(params, x_nchw, *, tile_h=None, tile_rows=None):
    """MaxPool2d(2,2) -> [Conv3x3(p=1)+BN(train)+ReLU] x 2. NCHW in / NCHW out."""
    x = jnp.transpose(x_nchw, (0, 2, 3, 1)).astype(jnp.float32)    # NHWC
    B, H, W, Cin = x.shape
    Hc, Wc = H // 2, W // 2
    n = B * Hc * Wc

    pooled = _maxpool(x, tile_h)                                   # (B,Hc,Wc,Cin) bf16

    def conv_bn_relu(act_bf16, w, b, g, be, out_dtype):
        xp = jnp.pad(act_bf16, ((0, 0), (1, 1), (1, 1), (0, 0)))   # spatial zero-pad
        y, stats = _conv3x3_passA(xp, w, b, tile_h)
        scale, shift = _bn_affine(stats, g, be, n)
        return _bn_relu_passB(y, scale, shift, out_dtype, tile_rows)

    a1 = conv_bn_relu(pooled, params["c1_w"], params["c1_b"],
                      params["bn1_g"], params["bn1_b"], jnp.bfloat16)
    out = conv_bn_relu(a1, params["c2_w"], params["c2_b"],
                       params["bn2_g"], params["bn2_b"], jnp.float32)
    return jnp.transpose(out, (0, 3, 1, 2))                        # back to NCHW


# ---------------------------------------------------------------------------
# Independent pure-JAX (XLA conv) reference.
# cast_bf16=True mirrors the kernel's bf16 MXU operands (tight check);
# cast_bf16=False is the pure-f32 module semantics (looser sanity check).
# ---------------------------------------------------------------------------
def _reference(params, x_nchw, cast_bf16):
    x = x_nchw.astype(jnp.float32)
    B, C, H, W = x.shape
    p = x.reshape(B, C, H // 2, 2, W // 2, 2).max(axis=(3, 5))     # MaxPool2d(2,2)

    def conv_bn_relu(inp, w, b, g, be):
        lhs, rhs = inp, w
        if cast_bf16:
            lhs = lhs.astype(jnp.bfloat16)
            rhs = rhs.astype(jnp.bfloat16)
        y = jax.lax.conv_general_dilated(
            lhs, rhs, (1, 1), ((1, 1), (1, 1)),
            dimension_numbers=("NCHW", "OIHW", "NCHW"),
            preferred_element_type=jnp.float32) + b.reshape(1, -1, 1, 1)
        mean = jnp.mean(y, axis=(0, 2, 3), keepdims=True)
        var = jnp.mean((y - mean) ** 2, axis=(0, 2, 3), keepdims=True)
        y = (y - mean) * jax.lax.rsqrt(var + EPS) * g.reshape(1, -1, 1, 1) \
            + be.reshape(1, -1, 1, 1)
        return jnp.maximum(y, 0.0)

    h = conv_bn_relu(p, params["c1_w"], params["c1_b"],
                     params["bn1_g"], params["bn1_b"])
    h = conv_bn_relu(h, params["c2_w"], params["c2_b"],
                     params["bn2_g"], params["bn2_b"])
    return h


# ---------------------------------------------------------------------------
if __name__ == "__main__":
    key = jax.random.PRNGKey(0)
    in_ch, out_ch = 4, 8           # down_layer(in_ch=4, out_ch=8)
    B, H, W = 2, 16, 16
    ks = jax.random.split(key, 9)

    params = {
        "c1_w": 0.1 * jax.random.normal(ks[0], (out_ch, in_ch, 3, 3), jnp.float32),
        "c1_b": 0.1 * jax.random.normal(ks[1], (out_ch,), jnp.float32),
        "bn1_g": 1.0 + 0.1 * jax.random.normal(ks[2], (out_ch,), jnp.float32),
        "bn1_b": 0.1 * jax.random.normal(ks[3], (out_ch,), jnp.float32),
        "c2_w": 0.1 * jax.random.normal(ks[4], (out_ch, out_ch, 3, 3), jnp.float32),
        "c2_b": 0.1 * jax.random.normal(ks[5], (out_ch,), jnp.float32),
        "bn2_g": 1.0 + 0.1 * jax.random.normal(ks[6], (out_ch,), jnp.float32),
        "bn2_b": 0.1 * jax.random.normal(ks[7], (out_ch,), jnp.float32),
    }
    x = jax.random.normal(ks[8], (B, in_ch, H, W), jnp.float32)

    fwd = jax.jit(lambda p, xx: down_layer_forward(p, xx, tile_h=4, tile_rows=8))
    out = jax.block_until_ready(fwd(params, x))
    assert out.shape == (B, out_ch, H // 2, W // 2), out.shape

    # Tight check vs a reference that also feeds the MXU bf16 operands
    # (isolates kernel logic); looser sanity check vs the pure-f32 reference
    # (bounds the intentional bf16-operand rounding noise).
    ref_bf16 = jax.block_until_ready(_reference(params, x, cast_bf16=True))
    ref_f32 = jax.block_until_ready(_reference(params, x, cast_bf16=False))
    err_bf16 = float(jnp.max(jnp.abs(out - ref_bf16)))
    err_f32_max = float(jnp.max(jnp.abs(out - ref_f32)))
    err_f32_mean = float(jnp.mean(jnp.abs(out - ref_f32)))
    assert err_bf16 < 1e-2, f"mismatch vs bf16-matched reference: {err_bf16}"
    assert err_f32_max < 5e-2 and err_f32_mean < 8e-3, \
        f"mismatch vs f32 reference: max={err_f32_max} mean={err_f32_mean}"
    print("KERNEL_OK")
</pallas_src>

<mosaic_0001>
module attributes {stable_mosaic.version = 11 : i64} {
  func.func @_maxpool_kernel(%arg0: i32, %arg1: i32, %arg2: memref<1x4x2x8x8xf32, #tpu.memory_space<vmem>>, %arg3: memref<1x4x8x4xbf16, #tpu.memory_space<vmem>>) attributes {dimension_semantics = [#tpu.dimension_semantics<parallel>, #tpu.dimension_semantics<parallel>], iteration_bounds = array<i64: 2, 2>, scalar_prefetch = 0 : i64, scratch_operands = 0 : i64, tpu.core_type = #tpu.core_type<tc>, window_params = [{transform_indices = @transform_0, window_bounds = array<i64: 1, 4, 2, 8, 8>}, {transform_indices = @transform_1, window_bounds = array<i64: 1, 4, 8, 4>}]} {
    %c0 = arith.constant 0 : index
    %c0_0 = arith.constant 0 : index
    %c0_1 = arith.constant 0 : index
    %c0_2 = arith.constant 0 : index
    %c0_3 = arith.constant 0 : index
    %0 = vector.load %arg2[%c0, %c0_0, %c0_1, %c0_2, %c0_3] : memref<1x4x2x8x8xf32, #tpu.memory_space<vmem>>, vector<1x4x2x8x8xf32>
    %1 = vector.shape_cast %0 : vector<1x4x2x8x8xf32> to vector<4x2x8x8xf32>
    %2 = vector.extract_strided_slice %1 {offsets = [0, 0, 0, 0], sizes = [4, 1, 8, 8], strides = [1, 1, 1, 1]} : vector<4x2x8x8xf32> to vector<4x1x8x8xf32>
    %3 = vector.shape_cast %2 : vector<4x1x8x8xf32> to vector<4x8x8xf32>
    %4 = vector.extract_strided_slice %1 {offsets = [0, 1, 0, 0], sizes = [4, 1, 8, 8], strides = [1, 1, 1, 1]} : vector<4x2x8x8xf32> to vector<4x1x8x8xf32>
    %5 = vector.shape_cast %4 : vector<4x1x8x8xf32> to vector<4x8x8xf32>
    %6 = arith.maximumf %3, %5 : vector<4x8x8xf32>
    %7 = vector.extract_strided_slice %6 {offsets = [0, 0, 0], sizes = [4, 8, 4], strides = [1, 1, 1]} : vector<4x8x8xf32> to vector<4x8x4xf32>
    %8 = vector.extract_strided_slice %6 {offsets = [0, 0, 4], sizes = [4, 8, 4], strides = [1, 1, 1]} : vector<4x8x8xf32> to vector<4x8x4xf32>
    %9 = arith.maximumf %7, %8 : vector<4x8x4xf32>
    %10 = arith.truncf %9 : vector<4x8x4xf32> to vector<4x8x4xbf16>
    %c0_4 = arith.constant 0 : index
    %c0_5 = arith.constant 0 : index
    %c0_6 = arith.constant 0 : index
    %c0_7 = arith.constant 0 : index
    %11 = vector.load %arg3[%c0_4, %c0_5, %c0_6, %c0_7] : memref<1x4x8x4xbf16, #tpu.memory_space<vmem>>, vector<1x4x8x4xbf16>
    %12 = vector.shape_cast %11 : vector<1x4x8x4xbf16> to vector<4x8x4xbf16>
    %13 = vector.shape_cast %10 : vector<4x8x4xbf16> to vector<1x4x8x4xbf16>
    tpu.vector_store %arg3[%c0_4, %c0_5, %c0_6, %c0_7], %13 {strides = array<i32>} : memref<1x4x8x4xbf16, #tpu.memory_space<vmem>>, vector<1x4x8x4xbf16>,
    return
  }
  func.func @transform_0(%arg0: i32, %arg1: i32) -> (i32, i32, i32, i32, i32) {
    %c0_i32 = arith.constant 0 : i32
    %c0_i32_0 = arith.constant 0 : i32
    %c0_i32_1 = arith.constant 0 : i32
    %c0_i32_2 = arith.constant 0 : i32
    return %arg0, %arg1, %c0_i32, %c0_i32_0, %c0_i32_1 : i32, i32, i32, i32, i32
  }
  func.func @transform_1(%arg0: i32, %arg1: i32) -> (i32, i32, i32, i32) {
    %c0_i32 = arith.constant 0 : i32
    %c0_i32_0 = arith.constant 0 : i32
    %c0_i32_1 = arith.constant 0 : i32
    return %arg0, %arg1, %c0_i32, %c0_i32_0 : i32, i32, i32, i32
  }
}

module attributes {stable_mosaic.version = 11 : i64} {
  func.func @_conv3x3_passA_kernel(%arg0: i32, %arg1: i32, %arg2: memref<1x4x10x4xbf16, #tpu.memory_space<vmem>>, %arg3: memref<1x1x10x4xbf16, #tpu.memory_space<vmem>>, %arg4: memref<1x1x10x4xbf16, #tpu.memory_space<vmem>>, %arg5: memref<3x3x4x8xbf16, #tpu.memory_space<vmem>>, %arg6: memref<1x8xf32, #tpu.memory_space<vmem>>, %arg7: memref<1x4x8x8xf32, #tpu.memory_space<vmem>>, %arg8: memref<1x2x8xf32, #tpu.memory_space<vmem>>) attributes {dimension_semantics = [#tpu.dimension_semantics<parallel>, #tpu.dimension_semantics<arbitrary>], iteration_bounds = array<i64: 2, 2>, scalar_prefetch = 0 : i64, scratch_operands = 0 : i64, tpu.core_type = #tpu.core_type<tc>, window_params = [{transform_indices = @transform_0, window_bounds = array<i64: 1, 4, 10, 4>}, {transform_indices = @transform_1, window_bounds = array<i64: 1, 1, 10, 4>}, {transform_indices = @transform_2, window_bounds = array<i64: 1, 1, 10, 4>}, {pipeline_mode = #tpu.pipeline_mode<synchronous>, transform_indices = @transform_3, window_bounds = array<i64: 3, 3, 4, 8>}, {pipeline_mode = #tpu.pipeline_mode<synchronous>, transform_indices = @transform_4, window_bounds = array<i64: 1, 8>}, {transform_indices = @transform_5, window_bounds = array<i64: 1, 4, 8, 8>}, {transform_indices = @transform_6, window_bounds = array<i64: 1, 2, 8>}]} {
    %c0 = arith.constant 0 : index
    %c0_0 = arith.constant 0 : index
    %c0_1 = arith.constant 0 : index
    %c0_2 = arith.constant 0 : index
    %0 = vector.load %arg2[%c0, %c0_0, %c0_1, %c0_2] : memref<1x4x10x4xbf16, #tpu.memory_space<vmem>>, vector<1x4x10x4xbf16>
    %1 = vector.shape_cast %0 : vector<1x4x10x4xbf16> to vector<4x10x4xbf16>
    %c0_3 = arith.constant 0 : index
    %c0_4 = arith.constant 0 : index
    %c0_5 = arith.constant 0 : index
    %c0_6 = arith.constant 0 : index
    %2 = vector.load %arg3[%c0_3, %c0_4, %c0_5, %c0_6] : memref<1x1x10x4xbf16, #tpu.memory_space<vmem>>, vector<1x1x10x4xbf16>
    %3 = vector.shape_cast %2 : vector<1x1x10x4xbf16> to vector<1x10x4xbf16>
    %c0_7 = arith.constant 0 : index
    %c0_8 = arith.constant 0 : index
    %c0_9 = arith.constant 0 : index
    %c0_10 = arith.constant 0 : index
    %4 = vector.load %arg4[%c0_7, %c0_8, %c0_9, %c0_10] : memref<1x1x10x4xbf16, #tpu.memory_space<vmem>>, vector<1x1x10x4xbf16>
    %5 = vector.shape_cast %4 : vector<1x1x10x4xbf16> to vector<1x10x4xbf16>
    %6 = tpu.concatenate %1, %3, %5 in 0 : vector<4x10x4xbf16>, vector<1x10x4xbf16>, vector<1x10x4xbf16> -> vector<6x10x4xbf16>
    %cst = arith.constant 0.000000e+00 : f32
    %7 = vector.broadcast %cst : f32 to vector<32x8xf32>
    %8 = vector.extract_strided_slice %6 {offsets = [0, 0, 0], sizes = [4, 8, 4], strides = [1, 1, 1]} : vector<6x10x4xbf16> to vector<4x8x4xbf16>
    %9 = vector.shape_cast %8 : vector<4x8x4xbf16> to vector<32x4xbf16>
    %c0_11 = arith.constant 0 : index
    %c0_12 = arith.constant 0 : index
    %c0_13 = arith.constant 0 : index
    %c0_14 = arith.constant 0 : index
    %10 = vector.load %arg5[%c0_11, %c0_12, %c0_13, %c0_14] : memref<3x3x4x8xbf16, #tpu.memory_space<vmem>>, vector<1x1x4x8xbf16>
    %11 = vector.shape_cast %10 : vector<1x1x4x8xbf16> to vector<4x8xbf16>
    %cst_15 = arith.constant dense<0.000000e+00> : vector<32x8xf32>
    %12 = tpu.matmul %9, %11, %cst_15 {dimension_numbers = #tpu.dot_dimension_numbers<[1], [0], [0], [1], [0, 0, 1, 1], [], []>} : vector<32x4xbf16>, vector<4x8xbf16>, vector<32x8xf32> -> vector<32x8xf32>
    %13 = arith.addf %7, %12 : vector<32x8xf32>
    %14 = vector.extract_strided_slice %6 {offsets = [0, 1, 0], sizes = [4, 8, 4], strides = [1, 1, 1]} : vector<6x10x4xbf16> to vector<4x8x4xbf16>
    %15 = vector.shape_cast %14 : vector<4x8x4xbf16> to vector<32x4xbf16>
    %c0_16 = arith.constant 0 : index
    %c1 = arith.constant 1 : index
    %c0_17 = arith.constant 0 : index
    %c0_18 = arith.constant 0 : index
    %16 = vector.load %arg5[%c0_16, %c1, %c0_17, %c0_18] : memref<3x3x4x8xbf16, #tpu.memory_space<vmem>>, vector<1x1x4x8xbf16>
    %17 = vector.shape_cast %16 : vector<1x1x4x8xbf16> to vector<4x8xbf16>
    %cst_19 = arith.constant dense<0.000000e+00> : vector<32x8xf32>
    %18 = tpu.matmul %15, %17, %cst_19 {dimension_numbers = #tpu.dot_dimension_numbers<[1], [0], [0], [1], [0, 0, 1, 1], [], []>} : vector<32x4xbf16>, vector<4x8xbf16>, vector<32x8xf32> -> vector<32x8xf32>
    %19 = arith.addf %13, %18 : vector<32x8xf32>
    %20 = vector.extract_strided_slice %6 {offsets = [0, 2, 0], sizes = [4, 8, 4], strides = [1, 1, 1]} : vector<6x10x4xbf16> to vector<4x8x4xbf16>
    %21 = vector.shape_cast %20 : vector<4x8x4xbf16> to vector<32x4xbf16>
    %c0_20 = arith.constant 0 : index
    %c2 = arith.constant 2 : index
    %c0_21 = arith.constant 0 : index
    %c0_22 = arith.constant 0 : index
    %22 = vector.load %arg5[%c0_20, %c2, %c0_21, %c0_22] : memref<3x3x4x8xbf16, #tpu.memory_space<vmem>>, vector<1x1x4x8xbf16>
    %23 = vector.shape_cast %22 : vector<1x1x4x8xbf16> to vector<4x8xbf16>
    %cst_23 = arith.constant dense<0.000000e+00> : vector<32x8xf32>
    %24 = tpu.matmul %21, %23, %cst_23 {dimension_numbers = #tpu.dot_dimension_numbers<[1], [0], [0], [1], [0, 0, 1, 1], [], []>} : vector<32x4xbf16>, vector<4x8xbf16>, vector<32x8xf32> -> vector<32x8xf32>
    %25 = arith.addf %19, %24 : vector<32x8xf32>
    %26 = vector.extract_strided_slice %6 {offsets = [1, 0, 0], sizes = [4, 8, 4], strides = [1, 1, 1]} : vector<6x10x4xbf16> to vector<4x8x4xbf16>
    %27 = vector.shape_cast %26 : vector<4x8x4xbf16> to vector<32x4xbf16>
    %c1_24 = arith.constant 1 : index
    %c0_25 = arith.constant 0 : index
    %c0_26 = arith.constant 0 : index
    %c0_27 = arith.constant 0 : index
    %28 = vector.load %arg5[%c1_24, %c0_25, %c0_26, %c0_27] : memref<3x3x4x8xbf16, #tpu.memory_space<vmem>>, vector<1x1x4x8xbf16>
    %29 = vector.shape_cast %28 : vector<1x1x4x8xbf16> to vector<4x8xbf16>
    %cst_28 = arith.constant dense<0.000000e+00> : vector<32x8xf32>
    %30 = tpu.matmul %27, %29, %cst_28 {dimension_numbers = #tpu.dot_dimension_numbers<[1], [0], [0], [1], [0, 0, 1, 1], [], []>} : vector<32x4xbf16>, vector<4x8xbf16>, vector<32x8xf32> -> vector<32x8xf32>
    %31 = arith.addf %25, %30 : vector<32x8xf32>
    %32 = vector.extract_strided_slice %6 {offsets = [1, 1, 0], sizes = [4, 8, 4], strides = [1, 1, 1]} : vector<6x10x4xbf16> to vector<4x8x4xbf16>
    %33 = vector.shape_cast %32 : vector<4x8x4xbf16> to vector<32x4xbf16>
    %c1_29 = arith.constant 1 : index
    %c1_30 = arith.constant 1 : index
    %c0_31 = arith.constant 0 : index
    %c0_32 = arith.constant 0 : index
    %34 = vector.load %arg5[%c1_29, %c1_30, %c0_31, %c0_32] : memref<3x3x4x8xbf16, #tpu.memory_space<vmem>>, vector<1x1x4x8xbf16>
    %35 = vector.shape_cast %34 : vector<1x1x4x8xbf16> to vector<4x8xbf16>
    %cst_33 = arith.constant dense<0.000000e+00> : vector<32x8xf32>
    %36 = tpu.matmul %33, %35, %cst_33 {dimension_numbers = #tpu.dot_dimension_numbers<[1], [0], [0], [1], [0, 0, 1, 1], [], []>} : vector<32x4xbf16>, vector<4x8xbf16>, vector<32x8xf32> -> vector<32x8xf32>
    %37 = arith.addf %31, %36 : vector<32x8xf32>
    %38 = vector.extract_strided_slice %6 {offsets = [1, 2, 0], sizes = [4, 8, 4], strides = [1, 1, 1]} : vector<6x10x4xbf16> to vector<4x8x4xbf16>
    %39 = vector.shape_cast %38 : vector<4x8x4xbf16> to vector<32x4xbf16>
    %c1_34 = arith.constant 1 : index
    %c2_35 = arith.constant 2 : index
    %c0_36 = arith.constant 0 : index
    %c0_37 = arith.constant 0 : index
    %40 = vector.load %arg5[%c1_34, %c2_35, %c0_36, %c0_37] : memref<3x3x4x8xbf16, #tpu.memory_space<vmem>>, vector<1x1x4x8xbf16>
    %41 = vector.shape_cast %40 : vector<1x1x4x8xbf16> to vector<4x8xbf16>
    %cst_38 = arith.constant dense<0.000000e+00> : vector<32x8xf32>
    %42 = tpu.matmul %39, %41, %cst_38 {dimension_numbers = #tpu.dot_dimension_numbers<[1], [0], [0], [1], [0, 0, 1, 1], [], []>} : vector<32x4xbf16>, vector<4x8xbf16>, vector<32x8xf32> -> vector<32x8xf32>
    %43 = arith.addf %37, %42 : vector<32x8xf32>
    %44 = vector.extract_strided_slice %6 {offsets = [2, 0, 0], sizes = [4, 8, 4], strides = [1, 1, 1]} : vector<6x10x4xbf16> to vector<4x8x4xbf16>
    %45 = vector.shape_cast %44 : vector<4x8x4xbf16> to vector<32x4xbf16>
    %c2_39 = arith.constant 2 : index
    %c0_40 = arith.constant 0 : index
    %c0_41 = arith.constant 0 : index
    %c0_42 = arith.constant 0 : index
    %46 = vector.load %arg5[%c2_39, %c0_40, %c0_41, %c0_42] : memref<3x3x4x8xbf16, #tpu.memory_space<vmem>>, vector<1x1x4x8xbf16>
    %47 = vector.shape_cast %46 : vector<1x1x4x8xbf16> to vector<4x8xbf16>
    %cst_43 = arith.constant dense<0.000000e+00> : vector<32x8xf32>
    %48 = tpu.matmul %45, %47, %cst_43 {dimension_numbers = #tpu.dot_dimension_numbers<[1], [0], [0], [1], [0, 0, 1, 1], [], []>} : vector<32x4xbf16>, vector<4x8xbf16>, vector<32x8xf32> -> vector<32x8xf32>
    %49 = arith.addf %43, %48 : vector<32x8xf32>
    %50 = vector.extract_strided_slice %6 {offsets = [2, 1, 0], sizes = [4, 8, 4], strides = [1, 1, 1]} : vector<6x10x4xbf16> to vector<4x8x4xbf16>
    %51 = vector.shape_cast %50 : vector<4x8x4xbf16> to vector<32x4xbf16>
    %c2_44 = arith.constant 2 : index
    %c1_45 = arith.constant 1 : index
    %c0_46 = arith.constant 0 : index
    %c0_47 = arith.constant 0 : index
    %52 = vector.load %arg5[%c2_44, %c1_45, %c0_46, %c0_47] : memref<3x3x4x8xbf16, #tpu.memory_space<vmem>>, vector<1x1x4x8xbf16>
    %53 = vector.shape_cast %52 : vector<1x1x4x8xbf16> to vector<4x8xbf16>
    %cst_48 = arith.constant dense<0.000000e+00> : vector<32x8xf32>
    %54 = tpu.matmul %51, %53, %cst_48 {dimension_numbers = #tpu.dot_dimension_numbers<[1], [0], [0], [1], [0, 0, 1, 1], [], []>} : vector<32x4xbf16>, vector<4x8xbf16>, vector<32x8xf32> -> vector<32x8xf32>
    %55 = arith.addf %49, %54 : vector<32x8xf32>
    %56 = vector.extract_strided_slice %6 {offsets = [2, 2, 0], sizes = [4, 8, 4], strides = [1, 1, 1]} : vector<6x10x4xbf16> to vector<4x8x4xbf16>
    %57 = vector.shape_cast %56 : vector<4x8x4xbf16> to vector<32x4xbf16>
    %c2_49 = arith.constant 2 : index
    %c2_50 = arith.constant 2 : index
    %c0_51 = arith.constant 0 : index
    %c0_52 = arith.constant 0 : index
    %58 = vector.load %arg5[%c2_49, %c2_50, %c0_51, %c0_52] : memref<3x3x4x8xbf16, #tpu.memory_space<vmem>>, vector<1x1x4x8xbf16>
    %59 = vector.shape_cast %58 : vector<1x1x4x8xbf16> to vector<4x8xbf16>
    %cst_53 = arith.constant dense<0.000000e+00> : vector<32x8xf32>
    %60 = tpu.matmul %57, %59, %cst_53 {dimension_numbers = #tpu.dot_dimension_numbers<[1], [0], [0], [1], [0, 0, 1, 1], [], []>} : vector<32x4xbf16>, vector<4x8xbf16>, vector<32x8xf32> -> vector<32x8xf32>
    %61 = arith.addf %55, %60 : vector<32x8xf32>
    %c0_54 = arith.constant 0 : index
    %c0_55 = arith.constant 0 : index
    %62 = vector.load %arg6[%c0_54, %c0_55] : memref<1x8xf32, #tpu.memory_space<vmem>>, vector<1x8xf32>
    %63 = vector.broadcast %62 : vector<1x8xf32> to vector<32x8xf32>
    %64 = arith.addf %61, %63 : vector<32x8xf32>
    %65 = vector.shape_cast %64 : vector<32x8xf32> to vector<1x4x8x8xf32>
    %c0_56 = arith.constant 0 : index
    %c0_57 = arith.constant 0 : index
    %c0_58 = arith.constant 0 : index
    %c0_59 = arith.constant 0 : index
    %66 = vector.load %arg7[%c0_56, %c0_57, %c0_58, %c0_59] : memref<1x4x8x8xf32, #tpu.memory_space<vmem>>, vector<1x4x8x8xf32>
    tpu.vector_store %arg7[%c0_56, %c0_57, %c0_58, %c0_59], %65 {strides = array<i32>} : memref<1x4x8x8xf32, #tpu.memory_space<vmem>>, vector<1x4x8x8xf32>,
    %cst_60 = arith.constant dense<0.000000e+00> : vector<8xf32>
    %67 = vector.multi_reduction <add>, %64, %cst_60 [0] : vector<32x8xf32> to vector<8xf32>
    %68 = vector.shape_cast %67 : vector<8xf32> to vector<1x8xf32>
    %69 = arith.mulf %64, %64 : vector<32x8xf32>
    %cst_61 = arith.constant dense<0.000000e+00> : vector<8xf32>
    %70 = vector.multi_reduction <add>, %69, %cst_61 [0] : vector<32x8xf32> to vector<8xf32>
    %71 = vector.shape_cast %70 : vector<8xf32> to vector<1x8xf32>
    %72 = tpu.concatenate %68, %71 in 0 : vector<1x8xf32>, vector<1x8xf32> -> vector<2x8xf32>
    %73 = vector.shape_cast %72 : vector<2x8xf32> to vector<1x2x8xf32>
    %c0_i32 = arith.constant 0 : i32
    %74 = arith.cmpi eq, %arg1, %c0_i32 : i32
    %75 = arith.extui %74 : i1 to i32
    %c0_i32_62 = arith.constant 0 : i32
    %76 = arith.cmpi ne, %75, %c0_i32_62 : i32
    scf.if %76 {
      %cst_69 = arith.constant 0.000000e+00 : f32
      %80 = vector.broadcast %cst_69 : f32 to vector<1x2x8xf32>
      %c0_70 = arith.constant 0 : index
      %c0_71 = arith.constant 0 : index
      %c0_72 = arith.constant 0 : index
      %81 = vector.load %arg8[%c0_70, %c0_71, %c0_72] : memref<1x2x8xf32, #tpu.memory_space<vmem>>, vector<1x2x8xf32>
      tpu.vector_store %arg8[%c0_70, %c0_71, %c0_72], %80 {strides = array<i32>} : memref<1x2x8xf32, #tpu.memory_space<vmem>>, vector<1x2x8xf32>,
    } else {
    }
    %c0_63 = arith.constant 0 : index
    %c0_64 = arith.constant 0 : index
    %c0_65 = arith.constant 0 : index
    %77 = vector.load %arg8[%c0_63, %c0_64, %c0_65] : memref<1x2x8xf32, #tpu.memory_space<vmem>>, vector<1x2x8xf32>
    %78 = arith.addf %77, %73 : vector<1x2x8xf32>
    %c0_66 = arith.constant 0 : index
    %c0_67 = arith.constant 0 : index
    %c0_68 = arith.constant 0 : index
    %79 = vector.load %arg8[%c0_66, %c0_67, %c0_68] : memref<1x2x8xf32, #tpu.memory_space<vmem>>, vector<1x2x8xf32>
    tpu.vector_store %arg8[%c0_66, %c0_67, %c0_68], %78 {strides = array<i32>} : memref<1x2x8xf32, #tpu.memory_space<vmem>>, vector<1x2x8xf32>,
    return
  }
  func.func @transform_0(%arg0: i32, %arg1: i32) -> (i32, i32, i32, i32) {
    %c0_i32 = arith.constant 0 : i32
    %c0_i32_0 = arith.constant 0 : i32
    %c0_i32_1 = arith.constant 0 : i32
    return %arg0, %arg1, %c0_i32, %c0_i32_0 : i32, i32, i32, i32
  }
  func.func @transform_1(%arg0: i32, %arg1: i32) -> (i32, i32, i32, i32) {
    %c4_i32 = arith.constant 4 : i32
    %0 = arith.muli %arg1, %c4_i32 : i32
    %c4_i32_0 = arith.constant 4 : i32
    %1 = arith.addi %0, %c4_i32_0 : i32
    %c0_i32 = arith.constant 0 : i32
    %c0_i32_1 = arith.constant 0 : i32
    %c0_i32_2 = arith.constant 0 : i32
    return %arg0, %1, %c0_i32, %c0_i32_1 : i32, i32, i32, i32
  }
  func.func @transform_2(%arg0: i32, %arg1: i32) -> (i32, i32, i32, i32) {
    %c4_i32 = arith.constant 4 : i32
    %0 = arith.muli %arg1, %c4_i32 : i32
    %c4_i32_0 = arith.constant 4 : i32
    %1 = arith.addi %0, %c4_i32_0 : i32
    %c1_i32 = arith.constant 1 : i32
    %2 = arith.addi %1, %c1_i32 : i32
    %c0_i32 = arith.constant 0 : i32
    %c0_i32_1 = arith.constant 0 : i32
    %c0_i32_2 = arith.constant 0 : i32
    return %arg0, %2, %c0_i32, %c0_i32_1 : i32, i32, i32, i32
  }
  func.func @transform_3(%arg0: i32, %arg1: i32) -> (i32, i32, i32, i32) {
    %c0_i32 = arith.constant 0 : i32
    %c0_i32_0 = arith.constant 0 : i32
    %c0_i32_1 = arith.constant 0 : i32
    %c0_i32_2 = arith.constant 0 : i32
    %c0_i32_3 = arith.constant 0 : i32
    return %c0_i32, %c0_i32_0, %c0_i32_1, %c0_i32_2 : i32, i32, i32, i32
  }
  func.func @transform_4(%arg0: i32, %arg1: i32) -> (i32, i32) {
    %c0_i32 = arith.constant 0 : i32
    %c0_i32_0 = arith.constant 0 : i32
    %c0_i32_1 = arith.constant 0 : i32
    return %c0_i32, %c0_i32_0 : i32, i32
  }
  func.func @transform_5(%arg0: i32, %arg1: i32) -> (i32, i32, i32, i32) {
    %c0_i32 = arith.constant 0 : i32
    %c0_i32_0 = arith.constant 0 : i32
    %c0_i32_1 = arith.constant 0 : i32
    return %arg0, %arg1, %c0_i32, %c0_i32_0 : i32, i32, i32, i32
  }
  func.func @transform_6(%arg0: i32, %arg1: i32) -> (i32, i32, i32) {
    %c0_i32 = arith.constant 0 : i32
    %c0_i32_0 = arith.constant 0 : i32
    %c0_i32_1 = arith.constant 0 : i32
    return %arg0, %c0_i32, %c0_i32_0 : i32, i32, i32
  }
}

module attributes {stable_mosaic.version = 11 : i64} {
  func.func @_bn_relu_kernel(%arg0: i32, %arg1: memref<8x64xf32, #tpu.memory_space<vmem>>, %arg2: memref<1x64xf32, #tpu.memory_space<vmem>>, %arg3: memref<1x64xf32, #tpu.memory_space<vmem>>, %arg4: memref<8x64xbf16, #tpu.memory_space<vmem>>) attributes {dimension_semantics = [#tpu.dimension_semantics<parallel>], iteration_bounds = array<i64: 2>, scalar_prefetch = 0 : i64, scratch_operands = 0 : i64, tpu.core_type = #tpu.core_type<tc>, window_params = [{transform_indices = @transform_0, window_bounds = array<i64: 8, 64>}, {pipeline_mode = #tpu.pipeline_mode<synchronous>, transform_indices = @transform_1, window_bounds = array<i64: 1, 64>}, {pipeline_mode = #tpu.pipeline_mode<synchronous>, transform_indices = @transform_2, window_bounds = array<i64: 1, 64>}, {transform_indices = @transform_3, window_bounds = array<i64: 8, 64>}]} {
    %c0 = arith.constant 0 : index
    %c0_0 = arith.constant 0 : index
    %0 = vector.load %arg1[%c0, %c0_0] : memref<8x64xf32, #tpu.memory_space<vmem>>, vector<8x64xf32>
    %c0_1 = arith.constant 0 : index
    %c0_2 = arith.constant 0 : index
    %1 = vector.load %arg2[%c0_1, %c0_2] : memref<1x64xf32, #tpu.memory_space<vmem>>, vector<1x64xf32>
    %2 = vector.broadcast %1 : vector<1x64xf32> to vector<8x64xf32>
    %3 = arith.mulf %0, %2 : vector<8x64xf32>
    %c0_3 = arith.constant 0 : index
    %c0_4 = arith.constant 0 : index
    %4 = vector.load %arg3[%c0_3, %c0_4] : memref<1x64xf32, #tpu.memory_space<vmem>>, vector<1x64xf32>
    %5 = vector.broadcast %4 : vector<1x64xf32> to vector<8x64xf32>
    %6 = arith.addf %3, %5 : vector<8x64xf32>
    %cst = arith.constant 0.000000e+00 : f32
    %7 = vector.broadcast %cst : f32 to vector<8x64xf32>
    %8 = arith.maximumf %6, %7 : vector<8x64xf32>
    %9 = arith.truncf %8 : vector<8x64xf32> to vector<8x64xbf16>
    %c0_5 = arith.constant 0 : index
    %c0_6 = arith.constant 0 : index
    %10 = vector.load %arg4[%c0_5, %c0_6] : memref<8x64xbf16, #tpu.memory_space<vmem>>, vector<8x64xbf16>
    tpu.vector_store %arg4[%c0_5, %c0_6], %9 {strides = array<i32>} : memref<8x64xbf16, #tpu.memory_space<vmem>>, vector<8x64xbf16>,
    return
  }
  func.func @transform_0(%arg0: i32) -> (i32, i32) {
    %c0_i32 = arith.constant 0 : i32
    %c0_i32_0 = arith.constant 0 : i32
    return %arg0, %c0_i32 : i32, i32
  }
  func.func @transform_1(%arg0: i32) -> (i32, i32) {
    %c0_i32 = arith.constant 0 : i32
    %c0_i32_0 = arith.constant 0 : i32
    %c0_i32_1 = arith.constant 0 : i32
    return %c0_i32, %c0_i32_0 : i32, i32
  }
  func.func @transform_2(%arg0: i32) -> (i32, i32) {
    %c0_i32 = arith.constant 0 : i32
    %c0_i32_0 = arith.constant 0 : i32
    %c0_i32_1 = arith.constant 0 : i32
    return %c0_i32, %c0_i32_0 : i32, i32
  }
  func.func @transform_3(%arg0: i32) -> (i32, i32) {
    %c0_i32 = arith.constant 0 : i32
    %c0_i32_0 = arith.constant 0 : i32
    return %arg0, %c0_i32 : i32, i32
  }
}

module attributes {stable_mosaic.version = 11 : i64} {
  func.func @_bn_relu_kernel(%arg0: i32, %arg1: memref<8x64xf32, #tpu.memory_space<vmem>>, %arg2: memref<1x64xf32, #tpu.memory_space<vmem>>, %arg3: memref<1x64xf32, #tpu.memory_space<vmem>>, %arg4: memref<8x64xf32, #tpu.memory_space<vmem>>) attributes {dimension_semantics = [#tpu.dimension_semantics<parallel>], iteration_bounds = array<i64: 2>, scalar_prefetch = 0 : i64, scratch_operands = 0 : i64, tpu.core_type = #tpu.core_type<tc>, window_params = [{transform_indices = @transform_0, window_bounds = array<i64: 8, 64>}, {pipeline_mode = #tpu.pipeline_mode<synchronous>, transform_indices = @transform_1, window_bounds = array<i64: 1, 64>}, {pipeline_mode = #tpu.pipeline_mode<synchronous>, transform_indices = @transform_2, window_bounds = array<i64: 1, 64>}, {transform_indices = @transform_3, window_bounds = array<i64: 8, 64>}]} {
    %c0 = arith.constant 0 : index
    %c0_0 = arith.constant 0 : index
    %0 = vector.load %arg1[%c0, %c0_0] : memref<8x64xf32, #tpu.memory_space<vmem>>, vector<8x64xf32>
    %c0_1 = arith.constant 0 : index
    %c0_2 = arith.constant 0 : index
    %1 = vector.load %arg2[%c0_1, %c0_2] : memref<1x64xf32, #tpu.memory_space<vmem>>, vector<1x64xf32>
    %2 = vector.broadcast %1 : vector<1x64xf32> to vector<8x64xf32>
    %3 = arith.mulf %0, %2 : vector<8x64xf32>
    %c0_3 = arith.constant 0 : index
    %c0_4 = arith.constant 0 : index
    %4 = vector.load %arg3[%c0_3, %c0_4] : memref<1x64xf32, #tpu.memory_space<vmem>>, vector<1x64xf32>
    %5 = vector.broadcast %4 : vector<1x64xf32> to vector<8x64xf32>
    %6 = arith.addf %3, %5 : vector<8x64xf32>
    %cst = arith.constant 0.000000e+00 : f32
    %7 = vector.broadcast %cst : f32 to vector<8x64xf32>
    %8 = arith.maximumf %6, %7 : vector<8x64xf32>
    %c0_5 = arith.constant 0 : index
    %c0_6 = arith.constant 0 : index
    %9 = vector.load %arg4[%c0_5, %c0_6] : memref<8x64xf32, #tpu.memory_space<vmem>>, vector<8x64xf32>
    tpu.vector_store %arg4[%c0_5, %c0_6], %8 {strides = array<i32>} : memref<8x64xf32, #tpu.memory_space<vmem>>, vector<8x64xf32>,
    return
  }
  func.func @transform_0(%arg0: i32) -> (i32, i32) {
    %c0_i32 = arith.constant 0 : i32
    %c0_i32_0 = arith.constant 0 : i32
    return %arg0, %c0_i32 : i32, i32
  }
  func.func @transform_1(%arg0: i32) -> (i32, i32) {
    %c0_i32 = arith.constant 0 : i32
    %c0_i32_0 = arith.constant 0 : i32
    %c0_i32_1 = arith.constant 0 : i32
    return %c0_i32, %c0_i32_0 : i32, i32
  }
  func.func @transform_2(%arg0: i32) -> (i32, i32) {
    %c0_i32 = arith.constant 0 : i32
    %c0_i32_0 = arith.constant 0 : i32
    %c0_i32_1 = arith.constant 0 : i32
    return %c0_i32, %c0_i32_0 : i32, i32
  }
  func.func @transform_3(%arg0: i32) -> (i32, i32) {
    %c0_i32 = arith.constant 0 : i32
    %c0_i32_0 = arith.constant 0 : i32
    return %arg0, %c0_i32 : i32, i32
  }
}

module attributes {stable_mosaic.version = 11 : i64} {
  func.func @_conv3x3_passA_kernel(%arg0: i32, %arg1: i32, %arg2: memref<1x4x10x8xbf16, #tpu.memory_space<vmem>>, %arg3: memref<1x1x10x8xbf16, #tpu.memory_space<vmem>>, %arg4: memref<1x1x10x8xbf16, #tpu.memory_space<vmem>>, %arg5: memref<3x3x8x8xbf16, #tpu.memory_space<vmem>>, %arg6: memref<1x8xf32, #tpu.memory_space<vmem>>, %arg7: memref<1x4x8x8xf32, #tpu.memory_space<vmem>>, %arg8: memref<1x2x8xf32, #tpu.memory_space<vmem>>) attributes {dimension_semantics = [#tpu.dimension_semantics<parallel>, #tpu.dimension_semantics<arbitrary>], iteration_bounds = array<i64: 2, 2>, scalar_prefetch = 0 : i64, scratch_operands = 0 : i64, tpu.core_type = #tpu.core_type<tc>, window_params = [{transform_indices = @transform_0, window_bounds = array<i64: 1, 4, 10, 8>}, {transform_indices = @transform_1, window_bounds = array<i64: 1, 1, 10, 8>}, {transform_indices = @transform_2, window_bounds = array<i64: 1, 1, 10, 8>}, {pipeline_mode = #tpu.pipeline_mode<synchronous>, transform_indices = @transform_3, window_bounds = array<i64: 3, 3, 8, 8>}, {pipeline_mode = #tpu.pipeline_mode<synchronous>, transform_indices = @transform_4, window_bounds = array<i64: 1, 8>}, {transform_indices = @transform_5, window_bounds = array<i64: 1, 4, 8, 8>}, {transform_indices = @transform_6, window_bounds = array<i64: 1, 2, 8>}]} {
    %c0 = arith.constant 0 : index
    %c0_0 = arith.constant 0 : index
    %c0_1 = arith.constant 0 : index
    %c0_2 = arith.constant 0 : index
    %0 = vector.load %arg2[%c0, %c0_0, %c0_1, %c0_2] : memref<1x4x10x8xbf16, #tpu.memory_space<vmem>>, vector<1x4x10x8xbf16>
    %1 = vector.shape_cast %0 : vector<1x4x10x8xbf16> to vector<4x10x8xbf16>
    %c0_3 = arith.constant 0 : index
    %c0_4 = arith.constant 0 : index
    %c0_5 = arith.constant 0 : index
    %c0_6 = arith.constant 0 : index
    %2 = vector.load %arg3[%c0_3, %c0_4, %c0_5, %c0_6] : memref<1x1x10x8xbf16, #tpu.memory_space<vmem>>, vector<1x1x10x8xbf16>
    %3 = vector.shape_cast %2 : vector<1x1x10x8xbf16> to vector<1x10x8xbf16>
    %c0_7 = arith.constant 0 : index
    %c0_8 = arith.constant 0 : index
    %c0_9 = arith.constant 0 : index
    %c0_10 = arith.constant 0 : index
    %4 = vector.load %arg4[%c0_7, %c0_8, %c0_9, %c0_10] : memref<1x1x10x8xbf16, #tpu.memory_space<vmem>>, vector<1x1x10x8xbf16>
    %5 = vector.shape_cast %4 : vector<1x1x10x8xbf16> to vector<1x10x8xbf16>
    %6 = tpu.concatenate %1, %3, %5 in 0 : vector<4x10x8xbf16>, vector<1x10x8xbf16>, vector<1x10x8xbf16> -> vector<6x10x8xbf16>
    %cst = arith.constant 0.000000e+00 : f32
    %7 = vector.broadcast %cst : f32 to vector<32x8xf32>
    %8 = vector.extract_strided_slice %6 {offsets = [0, 0, 0], sizes = [4, 8, 8], strides = [1, 1, 1]} : vector<6x10x8xbf16> to vector<4x8x8xbf16>
    %9 = vector.shape_cast %8 : vector<4x8x8xbf16> to vector<32x8xbf16>
    %c0_11 = arith.constant 0 : index
    %c0_12 = arith.constant 0 : index
    %c0_13 = arith.constant 0 : index
    %c0_14 = arith.constant 0 : index
    %10 = vector.load %arg5[%c0_11, %c0_12, %c0_13, %c0_14] : memref<3x3x8x8xbf16, #tpu.memory_space<vmem>>, vector<1x1x8x8xbf16>
    %11 = vector.shape_cast %10 : vector<1x1x8x8xbf16> to vector<8x8xbf16>
    %cst_15 = arith.constant dense<0.000000e+00> : vector<32x8xf32>
    %12 = tpu.matmul %9, %11, %cst_15 {dimension_numbers = #tpu.dot_dimension_numbers<[1], [0], [0], [1], [0, 0, 1, 1], [], []>} : vector<32x8xbf16>, vector<8x8xbf16>, vector<32x8xf32> -> vector<32x8xf32>
    %13 = arith.addf %7, %12 : vector<32x8xf32>
    %14 = vector.extract_strided_slice %6 {offsets = [0, 1, 0], sizes = [4, 8, 8], strides = [1, 1, 1]} : vector<6x10x8xbf16> to vector<4x8x8xbf16>
    %15 = vector.shape_cast %14 : vector<4x8x8xbf16> to vector<32x8xbf16>
    %c0_16 = arith.constant 0 : index
    %c1 = arith.constant 1 : index
    %c0_17 = arith.constant 0 : index
    %c0_18 = arith.constant 0 : index
    %16 = vector.load %arg5[%c0_16, %c1, %c0_17, %c0_18] : memref<3x3x8x8xbf16, #tpu.memory_space<vmem>>, vector<1x1x8x8xbf16>
    %17 = vector.shape_cast %16 : vector<1x1x8x8xbf16> to vector<8x8xbf16>
    %cst_19 = arith.constant dense<0.000000e+00> : vector<32x8xf32>
    %18 = tpu.matmul %15, %17, %cst_19 {dimension_numbers = #tpu.dot_dimension_numbers<[1], [0], [0], [1], [0, 0, 1, 1], [], []>} : vector<32x8xbf16>, vector<8x8xbf16>, vector<32x8xf32> -> vector<32x8xf32>
    %19 = arith.addf %13, %18 : vector<32x8xf32>
    %20 = vector.extract_strided_slice %6 {offsets = [0, 2, 0], sizes = [4, 8, 8], strides = [1, 1, 1]} : vector<6x10x8xbf16> to vector<4x8x8xbf16>
    %21 = vector.shape_cast %20 : vector<4x8x8xbf16> to vector<32x8xbf16>
    %c0_20 = arith.constant 0 : index
    %c2 = arith.constant 2 : index
    %c0_21 = arith.constant 0 : index
    %c0_22 = arith.constant 0 : index
    %22 = vector.load %arg5[%c0_20, %c2, %c0_21, %c0_22] : memref<3x3x8x8xbf16, #tpu.memory_space<vmem>>, vector<1x1x8x8xbf16>
    %23 = vector.shape_cast %22 : vector<1x1x8x8xbf16> to vector<8x8xbf16>
    %cst_23 = arith.constant dense<0.000000e+00> : vector<32x8xf32>
    %24 = tpu.matmul %21, %23, %cst_23 {dimension_numbers = #tpu.dot_dimension_numbers<[1], [0], [0], [1], [0, 0, 1, 1], [], []>} : vector<32x8xbf16>, vector<8x8xbf16>, vector<32x8xf32> -> vector<32x8xf32>
    %25 = arith.addf %19, %24 : vector<32x8xf32>
    %26 = vector.extract_strided_slice %6 {offsets = [1, 0, 0], sizes = [4, 8, 8], strides = [1, 1, 1]} : vector<6x10x8xbf16> to vector<4x8x8xbf16>
    %27 = vector.shape_cast %26 : vector<4x8x8xbf16> to vector<32x8xbf16>
    %c1_24 = arith.constant 1 : index
    %c0_25 = arith.constant 0 : index
    %c0_26 = arith.constant 0 : index
    %c0_27 = arith.constant 0 : index
    %28 = vector.load %arg5[%c1_24, %c0_25, %c0_26, %c0_27] : memref<3x3x8x8xbf16, #tpu.memory_space<vmem>>, vector<1x1x8x8xbf16>
    %29 = vector.shape_cast %28 : vector<1x1x8x8xbf16> to vector<8x8xbf16>
    %cst_28 = arith.constant dense<0.000000e+00> : vector<32x8xf32>
    %30 = tpu.matmul %27, %29, %cst_28 {dimension_numbers = #tpu.dot_dimension_numbers<[1], [0], [0], [1], [0, 0, 1, 1], [], []>} : vector<32x8xbf16>, vector<8x8xbf16>, vector<32x8xf32> -> vector<32x8xf32>
    %31 = arith.addf %25, %30 : vector<32x8xf32>
    %32 = vector.extract_strided_slice %6 {offsets = [1, 1, 0], sizes = [4, 8, 8], strides = [1, 1, 1]} : vector<6x10x8xbf16> to vector<4x8x8xbf16>
    %33 = vector.shape_cast %32 : vector<4x8x8xbf16> to vector<32x8xbf16>
    %c1_29 = arith.constant 1 : index
    %c1_30 = arith.constant 1 : index
    %c0_31 = arith.constant 0 : index
    %c0_32 = arith.constant 0 : index
    %34 = vector.load %arg5[%c1_29, %c1_30, %c0_31, %c0_32] : memref<3x3x8x8xbf16, #tpu.memory_space<vmem>>, vector<1x1x8x8xbf16>
    %35 = vector.shape_cast %34 : vector<1x1x8x8xbf16> to vector<8x8xbf16>
    %cst_33 = arith.constant dense<0.000000e+00> : vector<32x8xf32>
    %36 = tpu.matmul %33, %35, %cst_33 {dimension_numbers = #tpu.dot_dimension_numbers<[1], [0], [0], [1], [0, 0, 1, 1], [], []>} : vector<32x8xbf16>, vector<8x8xbf16>, vector<32x8xf32> -> vector<32x8xf32>
    %37 = arith.addf %31, %36 : vector<32x8xf32>
    %38 = vector.extract_strided_slice %6 {offsets = [1, 2, 0], sizes = [4, 8, 8], strides = [1, 1, 1]} : vector<6x10x8xbf16> to vector<4x8x8xbf16>
    %39 = vector.shape_cast %38 : vector<4x8x8xbf16> to vector<32x8xbf16>
    %c1_34 = arith.constant 1 : index
    %c2_35 = arith.constant 2 : index
    %c0_36 = arith.constant 0 : index
    %c0_37 = arith.constant 0 : index
    %40 = vector.load %arg5[%c1_34, %c2_35, %c0_36, %c0_37] : memref<3x3x8x8xbf16, #tpu.memory_space<vmem>>, vector<1x1x8x8xbf16>
    %41 = vector.shape_cast %40 : vector<1x1x8x8xbf16> to vector<8x8xbf16>
    %cst_38 = arith.constant dense<0.000000e+00> : vector<32x8xf32>
    %42 = tpu.matmul %39, %41, %cst_38 {dimension_numbers = #tpu.dot_dimension_numbers<[1], [0], [0], [1], [0, 0, 1, 1], [], []>} : vector<32x8xbf16>, vector<8x8xbf16>, vector<32x8xf32> -> vector<32x8xf32>
    %43 = arith.addf %37, %42 : vector<32x8xf32>
    %44 = vector.extract_strided_slice %6 {offsets = [2, 0, 0], sizes = [4, 8, 8], strides = [1, 1, 1]} : vector<6x10x8xbf16> to vector<4x8x8xbf16>
    %45 = vector.shape_cast %44 : vector<4x8x8xbf16> to vector<32x8xbf16>
    %c2_39 = arith.constant 2 : index
    %c0_40 = arith.constant 0 : index
    %c0_41 = arith.constant 0 : index
    %c0_42 = arith.constant 0 : index
    %46 = vector.load %arg5[%c2_39, %c0_40, %c0_41, %c0_42] : memref<3x3x8x8xbf16, #tpu.memory_space<vmem>>, vector<1x1x8x8xbf16>
    %47 = vector.shape_cast %46 : vector<1x1x8x8xbf16> to vector<8x8xbf16>
    %cst_43 = arith.constant dense<0.000000e+00> : vector<32x8xf32>
    %48 = tpu.matmul %45, %47, %cst_43 {dimension_numbers = #tpu.dot_dimension_numbers<[1], [0], [0], [1], [0, 0, 1, 1], [], []>} : vector<32x8xbf16>, vector<8x8xbf16>, vector<32x8xf32> -> vector<32x8xf32>
    %49 = arith.addf %43, %48 : vector<32x8xf32>
    %50 = vector.extract_strided_slice %6 {offsets = [2, 1, 0], sizes = [4, 8, 8], strides = [1, 1, 1]} : vector<6x10x8xbf16> to vector<4x8x8xbf16>
    %51 = vector.shape_cast %50 : vector<4x8x8xbf16> to vector<32x8xbf16>
    %c2_44 = arith.constant 2 : index
    %c1_45 = arith.constant 1 : index
    %c0_46 = arith.constant 0 : index
    %c0_47 = arith.constant 0 : index
    %52 = vector.load %arg5[%c2_44, %c1_45, %c0_46, %c0_47] : memref<3x3x8x8xbf16, #tpu.memory_space<vmem>>, vector<1x1x8x8xbf16>
    %53 = vector.shape_cast %52 : vector<1x1x8x8xbf16> to vector<8x8xbf16>
    %cst_48 = arith.constant dense<0.000000e+00> : vector<32x8xf32>
    %54 = tpu.matmul %51, %53, %cst_48 {dimension_numbers = #tpu.dot_dimension_numbers<[1], [0], [0], [1], [0, 0, 1, 1], [], []>} : vector<32x8xbf16>, vector<8x8xbf16>, vector<32x8xf32> -> vector<32x8xf32>
    %55 = arith.addf %49, %54 : vector<32x8xf32>
    %56 = vector.extract_strided_slice %6 {offsets = [2, 2, 0], sizes = [4, 8, 8], strides = [1, 1, 1]} : vector<6x10x8xbf16> to vector<4x8x8xbf16>
    %57 = vector.shape_cast %56 : vector<4x8x8xbf16> to vector<32x8xbf16>
    %c2_49 = arith.constant 2 : index
    %c2_50 = arith.constant 2 : index
    %c0_51 = arith.constant 0 : index
    %c0_52 = arith.constant 0 : index
    %58 = vector.load %arg5[%c2_49, %c2_50, %c0_51, %c0_52] : memref<3x3x8x8xbf16, #tpu.memory_space<vmem>>, vector<1x1x8x8xbf16>
    %59 = vector.shape_cast %58 : vector<1x1x8x8xbf16> to vector<8x8xbf16>
    %cst_53 = arith.constant dense<0.000000e+00> : vector<32x8xf32>
    %60 = tpu.matmul %57, %59, %cst_53 {dimension_numbers = #tpu.dot_dimension_numbers<[1], [0], [0], [1], [0, 0, 1, 1], [], []>} : vector<32x8xbf16>, vector<8x8xbf16>, vector<32x8xf32> -> vector<32x8xf32>
    %61 = arith.addf %55, %60 : vector<32x8xf32>
    %c0_54 = arith.constant 0 : index
    %c0_55 = arith.constant 0 : index
    %62 = vector.load %arg6[%c0_54, %c0_55] : memref<1x8xf32, #tpu.memory_space<vmem>>, vector<1x8xf32>
    %63 = vector.broadcast %62 : vector<1x8xf32> to vector<32x8xf32>
    %64 = arith.addf %61, %63 : vector<32x8xf32>
    %65 = vector.shape_cast %64 : vector<32x8xf32> to vector<1x4x8x8xf32>
    %c0_56 = arith.constant 0 : index
    %c0_57 = arith.constant 0 : index
    %c0_58 = arith.constant 0 : index
    %c0_59 = arith.constant 0 : index
    %66 = vector.load %arg7[%c0_56, %c0_57, %c0_58, %c0_59] : memref<1x4x8x8xf32, #tpu.memory_space<vmem>>, vector<1x4x8x8xf32>
    tpu.vector_store %arg7[%c0_56, %c0_57, %c0_58, %c0_59], %65 {strides = array<i32>} : memref<1x4x8x8xf32, #tpu.memory_space<vmem>>, vector<1x4x8x8xf32>,
    %cst_60 = arith.constant dense<0.000000e+00> : vector<8xf32>
    %67 = vector.multi_reduction <add>, %64, %cst_60 [0] : vector<32x8xf32> to vector<8xf32>
    %68 = vector.shape_cast %67 : vector<8xf32> to vector<1x8xf32>
    %69 = arith.mulf %64, %64 : vector<32x8xf32>
    %cst_61 = arith.constant dense<0.000000e+00> : vector<8xf32>
    %70 = vector.multi_reduction <add>, %69, %cst_61 [0] : vector<32x8xf32> to vector<8xf32>
    %71 = vector.shape_cast %70 : vector<8xf32> to vector<1x8xf32>
    %72 = tpu.concatenate %68, %71 in 0 : vector<1x8xf32>, vector<1x8xf32> -> vector<2x8xf32>
    %73 = vector.shape_cast %72 : vector<2x8xf32> to vector<1x2x8xf32>
    %c0_i32 = arith.constant 0 : i32
    %74 = arith.cmpi eq, %arg1, %c0_i32 : i32
    %75 = arith.extui %74 : i1 to i32
    %c0_i32_62 = arith.constant 0 : i32
    %76 = arith.cmpi ne, %75, %c0_i32_62 : i32
    scf.if %76 {
      %cst_69 = arith.constant 0.000000e+00 : f32
      %80 = vector.broadcast %cst_69 : f32 to vector<1x2x8xf32>
      %c0_70 = arith.constant 0 : index
      %c0_71 = arith.constant 0 : index
      %c0_72 = arith.constant 0 : index
      %81 = vector.load %arg8[%c0_70, %c0_71, %c0_72] : memref<1x2x8xf32, #tpu.memory_space<vmem>>, vector<1x2x8xf32>
      tpu.vector_store %arg8[%c0_70, %c0_71, %c0_72], %80 {strides = array<i32>} : memref<1x2x8xf32, #tpu.memory_space<vmem>>, vector<1x2x8xf32>,
    } else {
    }
    %c0_63 = arith.constant 0 : index
    %c0_64 = arith.constant 0 : index
    %c0_65 = arith.constant 0 : index
    %77 = vector.load %arg8[%c0_63, %c0_64, %c0_65] : memref<1x2x8xf32, #tpu.memory_space<vmem>>, vector<1x2x8xf32>
    %78 = arith.addf %77, %73 : vector<1x2x8xf32>
    %c0_66 = arith.constant 0 : index
    %c0_67 = arith.constant 0 : index
    %c0_68 = arith.constant 0 : index
    %79 = vector.load %arg8[%c0_66, %c0_67, %c0_68] : memref<1x2x8xf32, #tpu.memory_space<vmem>>, vector<1x2x8xf32>
    tpu.vector_store %arg8[%c0_66, %c0_67, %c0_68], %78 {strides = array<i32>} : memref<1x2x8xf32, #tpu.memory_space<vmem>>, vector<1x2x8xf32>,
    return
  }
  func.func @transform_0(%arg0: i32, %arg1: i32) -> (i32, i32, i32, i32) {
    %c0_i32 = arith.constant 0 : i32
    %c0_i32_0 = arith.constant 0 : i32
    %c0_i32_1 = arith.constant 0 : i32
    return %arg0, %arg1, %c0_i32, %c0_i32_0 : i32, i32, i32, i32
  }
  func.func @transform_1(%arg0: i32, %arg1: i32) -> (i32, i32, i32, i32) {
    %c4_i32 = arith.constant 4 : i32
    %0 = arith.muli %arg1, %c4_i32 : i32
    %c4_i32_0 = arith.constant 4 : i32
    %1 = arith.addi %0, %c4_i32_0 : i32
    %c0_i32 = arith.constant 0 : i32
    %c0_i32_1 = arith.constant 0 : i32
    %c0_i32_2 = arith.constant 0 : i32
    return %arg0, %1, %c0_i32, %c0_i32_1 : i32, i32, i32, i32
  }
  func.func @transform_2(%arg0: i32, %arg1: i32) -> (i32, i32, i32, i32) {
    %c4_i32 = arith.constant 4 : i32
    %0 = arith.muli %arg1, %c4_i32 : i32
    %c4_i32_0 = arith.constant 4 : i32
    %1 = arith.addi %0, %c4_i32_0 : i32
    %c1_i32 = arith.constant 1 : i32
    %2 = arith.addi %1, %c1_i32 : i32
    %c0_i32 = arith.constant 0 : i32
    %c0_i32_1 = arith.constant 0 : i32
    %c0_i32_2 = arith.constant 0 : i32
    return %arg0, %2, %c0_i32, %c0_i32_1 : i32, i32, i32, i32
  }
  func.func @transform_3(%arg0: i32, %arg1: i32) -> (i32, i32, i32, i32) {
    %c0_i32 = arith.constant 0 : i32
    %c0_i32_0 = arith.constant 0 : i32
    %c0_i32_1 = arith.constant 0 : i32
    %c0_i32_2 = arith.constant 0 : i32
    %c0_i32_3 = arith.constant 0 : i32
    return %c0_i32, %c0_i32_0, %c0_i32_1, %c0_i32_2 : i32, i32, i32, i32
  }
  func.func @transform_4(%arg0: i32, %arg1: i32) -> (i32, i32) {
    %c0_i32 = arith.constant 0 : i32
    %c0_i32_0 = arith.constant 0 : i32
    %c0_i32_1 = arith.constant 0 : i32
    return %c0_i32, %c0_i32_0 : i32, i32
  }
  func.func @transform_5(%arg0: i32, %arg1: i32) -> (i32, i32, i32, i32) {
    %c0_i32 = arith.constant 0 : i32
    %c0_i32_0 = arith.constant 0 : i32
    %c0_i32_1 = arith.constant 0 : i32
    return %arg0, %arg1, %c0_i32, %c0_i32_0 : i32, i32, i32, i32
  }
  func.func @transform_6(%arg0: i32, %arg1: i32) -> (i32, i32, i32) {
    %c0_i32 = arith.constant 0 : i32
    %c0_i32_0 = arith.constant 0 : i32
    %c0_i32_1 = arith.constant 0 : i32
    return %arg0, %c0_i32, %c0_i32_0 : i32, i32, i32
  }
}

</mosaic_0001>

<llo_original>
// kernel: tile.23
$region0: #{tile.23}
  #allocation0 [shape = 's32[1]{0}', space=sflag, size = 0x4, scoped, tag = 'scoped memory for tile.23']
  %s0 = inlined_call_operand.vmem [shape: f32[8], index: 0, kind: input, shape index: {}]
  %s1 = inlined_call_operand.vmem [shape: f32[8,8], index: 1, kind: output, shape index: {}]
  // Predicated region
  $region2: #{tile.23} parent=0 // pred_check
    _
  $region3: #{tile.23} parent=0 // pred_check_branch
    %3 = sbr.rel (0) target = $region5
  $region4: #{tile.23} parent=0 // pred_region
    _
  $region5: #{tile.23} parent=0 // pred_fallthru
    _
  %v4 = vld [vmem:[%s0] ss:$0 sm:$0xff]
  %5 = vst [vmem:[%s1] sm:$0xff] %v4

// kernel: tile.24
$region0: #{tile.24}
  %s0 = inlined_call_operand.vmem [shape: f32[8,8], index: 0, kind: input, shape index: {}]
  %s1 = inlined_call_operand.vmem [shape: f32[1,64], index: 1, kind: output, shape index: {}]
  $region1: #{tile.24} parent=0
    #allocation0 [shape = 'u8[4096]{0}', space=vmem, size = 0x1000, scoped, tag = 'scoped mem for output reshape']
    %v2 = vld [vmem:[%s0] sm:$0x1]
    %vm3 = vcmask 64512
    %4 = vst.msk [vmem:[#allocation0] sm:$0x1] %vm3, %v2
    %s5 = scalar_lea.vmem %s0, 7
    %v6 = vld [vmem:[%s5] sm:$0x1]
    %7 = vrot.lane.b32.xlu0 %v6, 56
    %v8 = vpop.permute.xlu0 %7
    %vm9 = vcmask 523712
    %10 = vst.msk [vmem:[#allocation0] sm:$0x1] %vm9, %v8
    %s11 = scalar_lea.vmem %s0, 6
    %v12 = vld [vmem:[%s11] sm:$0x1]
    %13 = vrot.lane.b32.xlu0 %v12, 48
    %v14 = vpop.permute.xlu0 %13
    %vm15 = vcmask 458112
    %16 = vst.msk [vmem:[#allocation0] sm:$0x1] %vm15, %v14
    %s17 = scalar_lea.vmem %s0, 5
    %v18 = vld [vmem:[%s17] sm:$0x1]
    %19 = vrot.lane.b32.xlu0 %v18, 40
    %v20 = vpop.permute.xlu0 %19
    %vm21 = vcmask 392512
    %22 = vst.msk [vmem:[#allocation0] sm:$0x1] %vm21, %v20
    %s23 = scalar_lea.vmem %s0, 4
    %v24 = vld [vmem:[%s23] sm:$0x1]
    %25 = vrot.lane.b32.xlu0 %v24, 32
    %v26 = vpop.permute.xlu0 %25
    %vm27 = vcmask 326912
    %28 = vst.msk [vmem:[#allocation0] sm:$0x1] %vm27, %v26
    %s29 = scalar_lea.vmem %s0, 3
    %v30 = vld [vmem:[%s29] sm:$0x1]
    %31 = vrot.lane.b32.xlu0 %v30, 24
    %v32 = vpop.permute.xlu0 %31
    %vm33 = vcmask 261312
    %34 = vst.msk [vmem:[#allocation0] sm:$0x1] %vm33, %v32
    %s35 = scalar_lea.vmem %s0, 2
    %v36 = vld [vmem:[%s35] sm:$0x1]
    %37 = vrot.lane.b32.xlu0 %v36, 16
    %v38 = vpop.permute.xlu0 %37
    %vm39 = vcmask 195712
    %40 = vst.msk [vmem:[#allocation0] sm:$0x1] %vm39, %v38
    %s41 = scalar_lea.vmem %s0, 1
    %v42 = vld [vmem:[%s41] sm:$0x1]
    %43 = vrot.lane.b32.xlu0 %v42, 8
    %v44 = vpop.permute.xlu0 %43
    %vm45 = vcmask 130112
    %46 = vst.msk [vmem:[#allocation0] sm:$0x1] %vm45, %v44
    %s48 = sshll.u32 1, 1
    %s49 = ssub.s32 %s48, 1
    %v51 = vld [vmem:[#allocation0] sm:%s49]
    %s52 = sshll.u32 1, 1
    %s53 = ssub.s32 %s52, 1
    %54 = vst [vmem:[%s1] sm:%s53] %v51

// kernel: _lambda_.5
$region0: #{_lambda_.5}
  #allocation0 [shape = 'u32[]', space=smem, size = 0x4, offset = 0x4, fixed_abs, tag = 'smem constant byte address 0x4 - core index']
  #allocation1 [shape = 'u32[144,128]{1,0:T(1,128)}', space=vmem, size = 0x12000, scoped, tag = 'internal scratch']
  %s0 = inlined_call_operand.vmem [shape: f32[2,8,2,8,8], index: 0, kind: input, shape index: {}]
  %s1 = inlined_call_operand.vmem [shape: bf16[2,8,8,4], index: 1, kind: output, shape index: {}]
  %s2 = sld [smem:[#allocation0]]
  $region37: #{_lambda_.5} parent=0
    _
  %s4 = ssub.s32 1, %s2
  %s5 = scalar_select 0, %s4, %s2
  loop: start=0, step=1, limit=6
  $region2: #{_lambda_.5} parent=0 // loop_pre_header
    _
  $region3: #{_lambda_.5} parent=0 // loop_header
    %s7 = sphi 0, %s11
    %p8 = scmp.ge.s32.totalorder %s7, 6
    %s14 = sphi 0, %s26
    %s15 = sphi 0, %s22
    %s16 = sphi 0, %s14
    %s17 = sphi 0, %s15
    %s18 = sphi 0, %s16
    %s19 = sphi 0, %s17
    %s31 = sphi 0, %s33
    %s34 = sphi 0, %s31
    %s35 = sphi 0, %s34
    %s51 = sphi 0, %s35
    %s59 = sphi 0, %s61
    %s62 = sphi 0, %s59
    %s63 = sphi 0, %s62
    %s79 = sphi 0, %s63
  $region4: #{_lambda_.5} parent=0 // loop_header_branch
    %10 = sbr.rel (%p8) target = $region8
  $region5: #{_lambda_.5} parent=0 // loop_body
    %s12 = ssub.s32 %s7, 1
    %s13 = ssub.s32 %s7, 2
    %s20 = sadd.s32 1, %s15
    %p21 = scmp.ge.s32.totalorder %s20, 2
    %s22 = scalar_select %p21, 0, %s20
    %s23 = sadd.s32 1, %s14
    %s24 = scalar_select %p21, %s23, %s14
    %p25 = scmp.ge.s32.totalorder %s24, 2
    %s26 = scalar_select %p25, 0, %s24
    %s27 = ssub.s32 %s14, %s26
    %s28 = ssub.s32 %s15, %s22
    %s29 = sor.u32 %s27, %s28
    %p30 = scmp.eq.s32.totalorder %s29, 0
    %s32 = sadd.s32 %s31, 1
    %s33 = scalar_select %p30, %s31, %s32
    %p36 = pneg %p30
    %p37 = scmp.eq.s32.totalorder %s7, 3
    %p38 = por %p36, %p37
    %p39 = scmp.ne.s32.totalorder %s31, %s34
    %p40 = scmp.eq.s32.totalorder %s7, 0
    %p41 = por %p39, %p40
    %p42 = scmp.ne.s32.totalorder %s31, %s34
    %p43 = scmp.eq.s32.totalorder %s12, 3
    %p44 = por %p42, %p43
    %p45 = scmp.ne.s32.totalorder %s34, %s35
    %p46 = scmp.eq.s32.totalorder %s12, 0
    %p47 = por %p45, %p46
    %p48 = scmp.ne.s32.totalorder %s34, %s35
    %p49 = scmp.eq.s32.totalorder %s13, 3
    %p50 = por %p48, %p49
    %p52 = scmp.ne.s32.totalorder %s35, %s51
    %p53 = scmp.eq.s32.totalorder %s13, 0
    %p54 = por %p52, %p53
    %s55 = ssub.s32 %s14, %s26
    %s56 = ssub.s32 %s15, %s22
    %s57 = sor.u32 %s55, %s56
    %p58 = scmp.eq.s32.totalorder %s57, 0
    %s60 = sadd.s32 %s59, 1
    %s61 = scalar_select %p58, %s59, %s60
    %p64 = pneg %p58
    %p65 = scmp.eq.s32.totalorder %s7, 3
    %p66 = por %p64, %p65
    %p67 = scmp.ne.s32.totalorder %s59, %s62
    %p68 = scmp.eq.s32.totalorder %s7, 0
    %p69 = por %p67, %p68
    %p70 = scmp.ne.s32.totalorder %s59, %s62
    %p71 = scmp.eq.s32.totalorder %s12, 3
    %p72 = por %p70, %p71
    %p73 = scmp.ne.s32.totalorder %s62, %s63
    %p74 = scmp.eq.s32.totalorder %s12, 0
    %p75 = por %p73, %p74
    %p76 = scmp.ne.s32.totalorder %s62, %s63
    %p77 = scmp.eq.s32.totalorder %s13, 3
    %p78 = por %p76, %p77
    %p80 = scmp.ne.s32.totalorder %s63, %s79
    %p81 = scmp.eq.s32.totalorder %s13, 0
    %p82 = por %p80, %p81
    %p83 = scmp.le.s32.totalorder 1, %s7
    %p84 = scmp.lt.s32.totalorder %s7, 5
    %p85 = pnand %p83, %p84
    %p86 = pneg %p85
    // Predicated region
    $region9: #{_lambda_.5} parent=5 // pred_check
      _
    $region10: #{_lambda_.5} parent=5 // pred_check_branch
      %88 = sbr.rel (%p85) target = $region12
    $region11: #{_lambda_.5} parent=5 // pred_region
      %s89 = ssub.s32 %s7, 1
    $region12: #{_lambda_.5} parent=5 // pred_fallthru
      _
    %p90 = scmp.lt.s32.totalorder %s7, 4
    // Predicated region
    $region13: #{_lambda_.5} parent=5 // pred_check
      %p91 = pneg %p90
    $region14: #{_lambda_.5} parent=5 // pred_check_branch
      %93 = sbr.rel (%p91) target = $region16
    $region15: #{_lambda_.5} parent=5 // pred_region
      // Predicated region
      $region17: #{_lambda_.5} parent=15 // pred_check
        %p94 = pneg %p41
      $region18: #{_lambda_.5} parent=15 // pred_check_branch
        %96 = sbr.rel (%p94) target = $region20
      $region19: #{_lambda_.5} parent=15 // pred_region
        %s97 = smul.u32 4, %s15
        %p98 = scmp.lt.s32.totalorder %s14, 1
        %s99 = scalar_select %p98, %s14, 1
        %p100 = scmp.lt.s32.totalorder %s97, 7
        %s101 = scalar_select %p100, %s97, 7
        %s102 = smul.addr %s101, 2
        %s103 = smul.addr %s99, 16
        %s104 = sadd.s32 %s102, %s103
        %s105 = smul.addr %s104, 8
        %s106 = scalar_lea.vmem %s0, %s105
        %s107 = smul.u32 4, %s15
      $region20: #{_lambda_.5} parent=15 // pred_fallthru
        _
    $region16: #{_lambda_.5} parent=5 // pred_fallthru
      _
    %p108 = scmp.le.s32.totalorder 1, %s7
    %p109 = scmp.lt.s32.totalorder %s7, 5
    %p110 = pnand %p108, %p109
    %p111 = pneg %p110
    // Predicated region
    $region21: #{_lambda_.5} parent=5 // pred_check
      _
    $region22: #{_lambda_.5} parent=5 // pred_check_branch
      %113 = sbr.rel (%p110) target = $region24
    $region23: #{_lambda_.5} parent=5 // pred_region
      %s114 = ssub.s32 %s7, 1
      %s115 = smul.u32 4, %s17
      %p116 = scmp.lt.s32.totalorder %s16, 1
      %s117 = scalar_select %p116, %s16, 1
      %p118 = scmp.lt.s32.totalorder %s115, 7
      %s119 = scalar_select %p118, %s115, 7
      %s120 = smul.addr %s119, 2
      %s121 = smul.addr %s117, 16
      %s122 = sadd.s32 %s120, %s121
      %s123 = smul.addr %s122, 8
      %s124 = scalar_lea.vmem %s0, %s123
      %p125 = pneg %p47
      %p126 = pneg %p44
      %p127 = pneg %p75
      %p128 = pneg %p72
      %s129 = smul.u32 4, %s17
      %p130 = scmp.lt.s32.totalorder %s16, 1
      %s131 = scalar_select %p130, %s16, 1
      %p132 = scmp.lt.s32.totalorder %s129, 7
      %s133 = scalar_select %p132, %s129, 7
      %s134 = smul.addr %s131, 8
      %s135 = sadd.s32 %s133, %s134
      %s136 = smul.addr %s135, 4
      %s137 = scalar_lea.vmem %s1, %s136
      %s138 = smul.u32 4, %s17
      %p139 = scmp.lt.s32.totalorder %s16, 1
      %s140 = scalar_select %p139, %s16, 1
      %p141 = scmp.lt.s32.totalorder %s138, 7
      %s142 = scalar_select %p141, %s138, 7
      %s143 = smul.addr %s142, 2
      %s144 = smul.addr %s140, 16
      %s145 = sadd.s32 %s143, %s144
      %s146 = smul.addr %s145, 8
      %s147 = scalar_lea.vmem %s0, %s146
      %s148 = smul.u32 4, %s17
      %s149 = smul.u32 4, %s17
      %p150 = scmp.lt.s32.totalorder %s16, 1
      %s151 = scalar_select %p150, %s16, 1
      %p152 = scmp.lt.s32.totalorder %s149, 7
      %s153 = scalar_select %p152, %s149, 7
      %s154 = smul.addr %s151, 8
      %s155 = sadd.s32 %s153, %s154
      %s156 = smul.addr %s155, 4
      %s157 = scalar_lea.vmem %s1, %s156
      %s158 = smul.u32 4, %s17
      %v159 = vld [vmem:[%s147] sm:$0xff]
      %v160 = vld [vmem:[%s147 + $0x8] sm:$0xff]
      %v161 = vld [vmem:[%s147 + $0x10] sm:$0xff]
      %v162 = vld [vmem:[%s147 + $0x18] sm:$0xff]
      %v163 = vld [vmem:[%s147 + $0x20] sm:$0xff]
      %v164 = vld [vmem:[%s147 + $0x28] sm:$0xff]
      %v165 = vld [vmem:[%s147 + $0x30] sm:$0xff]
      %v166 = vld [vmem:[%s147 + $0x38] sm:$0xff]
      %v167 = vmax.f32 %v159, %v160
      %v168 = vmax.f32 %v161, %v162
      %v169 = vmax.f32 %v163, %v164
      %v170 = vmax.f32 %v165, %v166
      %175 = vrot.lane.b32.xlu0 %v167, 124
      %v176 = vpop.permute.xlu0 %175
      %177 = vrot.lane.b32.xlu0 %v168, 124
      %v178 = vpop.permute.xlu0 %177
      %179 = vrot.lane.b32.xlu0 %v169, 124
      %v180 = vpop.permute.xlu0 %179
      %181 = vrot.lane.b32.xlu0 %v170, 124
      %v182 = vpop.permute.xlu0 %181
      %v187 = vmax.f32 %v167, %v176
      %v188 = vmax.f32 %v168, %v178
      %v189 = vmax.f32 %v169, %v180
      %v190 = vmax.f32 %v170, %v182
      %v191 = vpack.c.bf16 %v187, %v187
      %v192 = vpack.c.bf16 %v188, %v188
      %v193 = vpack.c.bf16 %v189, %v189
      %v194 = vpack.c.bf16 %v190, %v190
      %vm195 = vcmask 27648
      %196 = vst.msk [vmem:[%s157] sm:$0xf] %vm195, %v191
      %197 = vst.msk [vmem:[%s157 + $0x4] sm:$0xf] %vm195, %v192
      %198 = vst.msk [vmem:[%s157 + $0x8] sm:$0xf] %vm195, %v193
      %199 = vst.msk [vmem:[%s157 + $0xc] sm:$0xf] %vm195, %v194
      %s200 = smul.u32 4, %s17
      %p201 = scmp.lt.s32.totalorder %s16, 1
      %s202 = scalar_select %p201, %s16, 1
      %p203 = scmp.lt.s32.totalorder %s200, 7
      %s204 = scalar_select %p203, %s200, 7
      %s205 = smul.addr %s202, 8
      %s206 = sadd.s32 %s204, %s205
      %s207 = smul.addr %s206, 4
      %s208 = scalar_lea.vmem %s1, %s207
      // Predicated region
      $region25: #{_lambda_.5} parent=23 // pred_check
        %p209 = pneg %p72
      $region26: #{_lambda_.5} parent=23 // pred_check_branch
        %211 = sbr.rel (%p209) target = $region28
      $region27: #{_lambda_.5} parent=23 // pred_region
        %s212 = smul.u32 4, %s17
      $region28: #{_lambda_.5} parent=23 // pred_fallthru
        _
    $region24: #{_lambda_.5} parent=5 // pred_fallthru
      _
    %p213 = scmp.le.s32.totalorder 2, %s7
    // Predicated region
    $region29: #{_lambda_.5} parent=5 // pred_check
      %p214 = pneg %p213
    $region30: #{_lambda_.5} parent=5 // pred_check_branch
      %216 = sbr.rel (%p214) target = $region32
    $region31: #{_lambda_.5} parent=5 // pred_region
      %s217 = ssub.s32 %s7, 2
      // Predicated region
      $region33: #{_lambda_.5} parent=31 // pred_check
        %p218 = pneg %p78
      $region34: #{_lambda_.5} parent=31 // pred_check_branch
        %220 = sbr.rel (%p218) target = $region36
      $region35: #{_lambda_.5} parent=31 // pred_region
        %s221 = smul.u32 4, %s19
        %p222 = scmp.lt.s32.totalorder %s18, 1
        %s223 = scalar_select %p222, %s18, 1
        %p224 = scmp.lt.s32.totalorder %s221, 7
        %s225 = scalar_select %p224, %s221, 7
        %s226 = smul.addr %s223, 8
        %s227 = sadd.s32 %s225, %s226
        %s228 = smul.addr %s227, 4
        %s229 = scalar_lea.vmem %s1, %s228
      $region36: #{_lambda_.5} parent=31 // pred_fallthru
        _
    $region32: #{_lambda_.5} parent=5 // pred_fallthru
      _
  $region6: #{_lambda_.5} parent=0 // loop_footer
    %s11 = sadd.s32 1, %s7
  $region7: #{_lambda_.5} parent=0 // loop_footer_branch
    %6 = sbr.rel target = $region3
  $region8: #{_lambda_.5} parent=0 // loop_exit
    _

// kernel: _lambda_.7
$region0: #{_lambda_.7}
  #allocation0 [shape = 'u32[]', space=smem, size = 0x4, offset = 0x4, fixed_abs, tag = 'smem constant byte address 0x4 - core index']
  #allocation1 [shape = 'u32[144,128]{1,0:T(1,128)}', space=vmem, size = 0x12000, scoped, tag = 'internal scratch']
  %s0 = inlined_call_operand.vmem [shape: f32[16,64], index: 0, kind: input, shape index: {}]
  %s1 = inlined_call_operand.vmem [shape: f32[1,64], index: 1, kind: input, shape index: {}]
  %s2 = inlined_call_operand.vmem [shape: f32[1,64], index: 2, kind: input, shape index: {}]
  %s3 = inlined_call_operand.vmem [shape: bf16[16,64], index: 3, kind: output, shape index: {}]
  %s4 = sld [smem:[#allocation0]]
  $region45: #{_lambda_.7} parent=0
    _
  %s6 = ssub.s32 1, %s4
  %s7 = scalar_select 0, %s6, %s4
  loop: start=0, step=1, limit=4
  $region2: #{_lambda_.7} parent=0 // loop_pre_header
    _
  $region3: #{_lambda_.7} parent=0 // loop_header
    %s9 = sphi 0, %s13
    %p10 = scmp.ge.s32.totalorder %s9, 4
    %s19 = sphi 0, %s21
    %s22 = sphi 0, %s19
    %s23 = sphi 0, %s22
    %s39 = sphi 0, %s23
    %s43 = sphi 0, %s43
    %s45 = sphi 0, %s43
    %s46 = sphi 0, %s45
    %s60 = sphi 0, %s46
    %s64 = sphi 0, %s64
    %s66 = sphi 0, %s64
    %s67 = sphi 0, %s66
    %s81 = sphi 0, %s67
    %s87 = sphi 0, %s89
    %s90 = sphi 0, %s87
    %s91 = sphi 0, %s90
    %s107 = sphi 0, %s91
  $region4: #{_lambda_.7} parent=0 // loop_header_branch
    %12 = sbr.rel (%p10) target = $region8
  $region5: #{_lambda_.7} parent=0 // loop_body
    %s14 = ssub.s32 %s9, 1
    %s15 = ssub.s32 %s9, 2
    %s16 = sadd.s32 %s9, 1
    %s17 = ssub.s32 %s9, %s16
    %p18 = scmp.eq.s32.totalorder %s17, 0
    %s20 = sadd.s32 %s19, 1
    %s21 = scalar_select %p18, %s19, %s20
    %p24 = pneg %p18
    %p25 = scmp.eq.s32.totalorder %s9, 1
    %p26 = por %p24, %p25
    %p27 = scmp.ne.s32.totalorder %s19, %s22
    %p28 = scmp.eq.s32.totalorder %s9, 0
    %p29 = por %p27, %p28
    %p30 = scmp.ne.s32.totalorder %s19, %s22
    %p31 = scmp.eq.s32.totalorder %s14, 1
    %p32 = por %p30, %p31
    %p33 = scmp.ne.s32.totalorder %s22, %s23
    %p34 = scmp.eq.s32.totalorder %s14, 0
    %p35 = por %p33, %p34
    %p36 = scmp.ne.s32.totalorder %s22, %s23
    %p37 = scmp.eq.s32.totalorder %s15, 1
    %p38 = por %p36, %p37
    %p40 = scmp.ne.s32.totalorder %s23, %s39
    %p41 = scmp.eq.s32.totalorder %s15, 0
    %p42 = por %p40, %p41
    %s44 = sadd.s32 %s43, 1
    %p47 = scmp.eq.s32.totalorder %s9, 1
    %p48 = scmp.ne.s32.totalorder %s43, %s45
    %p49 = scmp.eq.s32.totalorder %s9, 0
    %p50 = por %p48, %p49
    %p51 = scmp.ne.s32.totalorder %s43, %s45
    %p52 = scmp.eq.s32.totalorder %s14, 1
    %p53 = por %p51, %p52
    %p54 = scmp.ne.s32.totalorder %s45, %s46
    %p55 = scmp.eq.s32.totalorder %s14, 0
    %p56 = por %p54, %p55
    %p57 = scmp.ne.s32.totalorder %s45, %s46
    %p58 = scmp.eq.s32.totalorder %s15, 1
    %p59 = por %p57, %p58
    %p61 = scmp.ne.s32.totalorder %s46, %s60
    %p62 = scmp.eq.s32.totalorder %s15, 0
    %p63 = por %p61, %p62
    %s65 = sadd.s32 %s64, 1
    %p68 = scmp.eq.s32.totalorder %s9, 1
    %p69 = scmp.ne.s32.totalorder %s64, %s66
    %p70 = scmp.eq.s32.totalorder %s9, 0
    %p71 = por %p69, %p70
    %p72 = scmp.ne.s32.totalorder %s64, %s66
    %p73 = scmp.eq.s32.totalorder %s14, 1
    %p74 = por %p72, %p73
    %p75 = scmp.ne.s32.totalorder %s66, %s67
    %p76 = scmp.eq.s32.totalorder %s14, 0
    %p77 = por %p75, %p76
    %p78 = scmp.ne.s32.totalorder %s66, %s67
    %p79 = scmp.eq.s32.totalorder %s15, 1
    %p80 = por %p78, %p79
    %p82 = scmp.ne.s32.totalorder %s67, %s81
    %p83 = scmp.eq.s32.totalorder %s15, 0
    %p84 = por %p82, %p83
    %s85 = ssub.s32 %s9, %s16
    %p86 = scmp.eq.s32.totalorder %s85, 0
    %s88 = sadd.s32 %s87, 1
    %s89 = scalar_select %p86, %s87, %s88
    %p92 = pneg %p86
    %p93 = scmp.eq.s32.totalorder %s9, 1
    %p94 = por %p92, %p93
    %p95 = scmp.ne.s32.totalorder %s87, %s90
    %p96 = scmp.eq.s32.totalorder %s9, 0
    %p97 = por %p95, %p96
    %p98 = scmp.ne.s32.totalorder %s87, %s90
    %p99 = scmp.eq.s32.totalorder %s14, 1
    %p100 = por %p98, %p99
    %p101 = scmp.ne.s32.totalorder %s90, %s91
    %p102 = scmp.eq.s32.totalorder %s14, 0
    %p103 = por %p101, %p102
    %p104 = scmp.ne.s32.totalorder %s90, %s91
    %p105 = scmp.eq.s32.totalorder %s15, 1
    %p106 = por %p104, %p105
    %p108 = scmp.ne.s32.totalorder %s91, %s107
    %p109 = scmp.eq.s32.totalorder %s15, 0
    %p110 = por %p108, %p109
    %p111 = scmp.le.s32.totalorder 1, %s9
    %p112 = scmp.lt.s32.totalorder %s9, 3
    %p113 = pnand %p111, %p112
    %p114 = pneg %p113
    // Predicated region
    $region9: #{_lambda_.7} parent=5 // pred_check
      _
    $region10: #{_lambda_.7} parent=5 // pred_check_branch
      %116 = sbr.rel (%p113) target = $region12
    $region11: #{_lambda_.7} parent=5 // pred_region
      %s117 = ssub.s32 %s9, 1
      // Predicated region
      $region13: #{_lambda_.7} parent=11 // pred_check
        %p118 = pneg %p56
      $region14: #{_lambda_.7} parent=11 // pred_check_branch
        %120 = sbr.rel (%p118) target = $region16
      $region15: #{_lambda_.7} parent=11 // pred_region
        _
      $region16: #{_lambda_.7} parent=11 // pred_fallthru
        _
      // Predicated region
      $region17: #{_lambda_.7} parent=11 // pred_check
        %p121 = pneg %p77
      $region18: #{_lambda_.7} parent=11 // pred_check_branch
        %123 = sbr.rel (%p121) target = $region20
      $region19: #{_lambda_.7} parent=11 // pred_region
        _
      $region20: #{_lambda_.7} parent=11 // pred_fallthru
        _
    $region12: #{_lambda_.7} parent=5 // pred_fallthru
      _
    %p124 = scmp.lt.s32.totalorder %s9, 2
    // Predicated region
    $region21: #{_lambda_.7} parent=5 // pred_check
      %p125 = pneg %p124
    $region22: #{_lambda_.7} parent=5 // pred_check_branch
      %127 = sbr.rel (%p125) target = $region24
    $region23: #{_lambda_.7} parent=5 // pred_region
      // Predicated region
      $region25: #{_lambda_.7} parent=23 // pred_check
        %p128 = pneg %p29
      $region26: #{_lambda_.7} parent=23 // pred_check_branch
        %130 = sbr.rel (%p128) target = $region28
      $region27: #{_lambda_.7} parent=23 // pred_region
        %p131 = scmp.lt.s32.totalorder %s9, 1
        %s132 = scalar_select %p131, %s9, 1
        %s133 = smul.addr %s132, 8
        %s134 = scalar_lea.vmem %s0, %s133
      $region28: #{_lambda_.7} parent=23 // pred_fallthru
        _
    $region24: #{_lambda_.7} parent=5 // pred_fallthru
      _
    %p135 = scmp.le.s32.totalorder 1, %s9
    %p136 = scmp.lt.s32.totalorder %s9, 3
    %p137 = pnand %p135, %p136
    %p138 = pneg %p137
    // Predicated region
    $region29: #{_lambda_.7} parent=5 // pred_check
      _
    $region30: #{_lambda_.7} parent=5 // pred_check_branch
      %140 = sbr.rel (%p137) target = $region32
    $region31: #{_lambda_.7} parent=5 // pred_region
      %s141 = ssub.s32 %s9, 1
      %p142 = scmp.lt.s32.totalorder %s14, 1
      %s143 = scalar_select %p142, %s14, 1
      %s144 = smul.addr %s143, 8
      %s145 = scalar_lea.vmem %s0, %s144
      %p146 = pneg %p35
      %p147 = pneg %p32
      %p148 = pneg %p56
      %p149 = pneg %p53
      %p150 = pneg %p77
      %p151 = pneg %p74
      %p152 = pneg %p103
      %p153 = pneg %p100
      %p154 = scmp.lt.s32.totalorder %s14, 1
      %s155 = scalar_select %p154, %s14, 1
      %s156 = smul.addr %s155, 4
      %s157 = scalar_lea.vmem %s3, %s156
      %p158 = scmp.lt.s32.totalorder %s14, 1
      %s159 = scalar_select %p158, %s14, 1
      %s160 = smul.addr %s159, 8
      %s161 = scalar_lea.vmem %s0, %s160
      %p162 = scmp.lt.s32.totalorder %s14, 1
      %s163 = scalar_select %p162, %s14, 1
      %s164 = smul.addr %s163, 4
      %s165 = scalar_lea.vmem %s3, %s164
      %v166 = vld [vmem:[%s161] sm:$0xff]
      %v167 = vld [vmem:[%s1] sm:$0x1]
      %v169 = vlaneseq
      %v170 = vshrl.u32 %v169, 7
      %v171 = vsub.s32 0, %v170
      %v172 = vrot.slane %v167, %v171
      %v174 = vmul.f32 %v166, %v172
      %v175 = vld [vmem:[%s2] sm:$0x1]
      %v177 = vlaneseq
      %v178 = vshrl.u32 %v177, 7
      %v179 = vsub.s32 0, %v178
      %v180 = vrot.slane %v175, %v179
      %v182 = vadd.f32 %v174, %v180
      %v183 = vmax.f32 %v182, 0.0
      %v184 = vpack.c.bf16 %v183, %v183
      %vm185 = vcmask 519168
      %186 = vst.msk [vmem:[%s165] sm:$0xf] %vm185, %v184
      %p187 = scmp.lt.s32.totalorder %s14, 1
      %s188 = scalar_select %p187, %s14, 1
      %s189 = smul.addr %s188, 4
      %s190 = scalar_lea.vmem %s3, %s189
      // Predicated region
      $region33: #{_lambda_.7} parent=31 // pred_check
        %p191 = pneg %p100
      $region34: #{_lambda_.7} parent=31 // pred_check_branch
        %193 = sbr.rel (%p191) target = $region36
      $region35: #{_lambda_.7} parent=31 // pred_region
        _
      $region36: #{_lambda_.7} parent=31 // pred_fallthru
        _
    $region32: #{_lambda_.7} parent=5 // pred_fallthru
      _
    %p194 = scmp.le.s32.totalorder 2, %s9
    // Predicated region
    $region37: #{_lambda_.7} parent=5 // pred_check
      %p195 = pneg %p194
    $region38: #{_lambda_.7} parent=5 // pred_check_branch
      %197 = sbr.rel (%p195) target = $region40
    $region39: #{_lambda_.7} parent=5 // pred_region
      %s198 = ssub.s32 %s9, 2
      // Predicated region
      $region41: #{_lambda_.7} parent=39 // pred_check
        %p199 = pneg %p106
      $region42: #{_lambda_.7} parent=39 // pred_check_branch
        %201 = sbr.rel (%p199) target = $region44
      $region43: #{_lambda_.7} parent=39 // pred_region
        %p202 = scmp.lt.s32.totalorder %s15, 1
        %s203 = scalar_select %p202, %s15, 1
        %s204 = smul.addr %s203, 4
        %s205 = scalar_lea.vmem %s3, %s204
      $region44: #{_lambda_.7} parent=39 // pred_fallthru
        _
    $region40: #{_lambda_.7} parent=5 // pred_fallthru
      _
  $region6: #{_lambda_.7} parent=0 // loop_footer
    %s13 = sadd.s32 1, %s9
  $region7: #{_lambda_.7} parent=0 // loop_footer_branch
    %8 = sbr.rel target = $region3
  $region8: #{_lambda_.7} parent=0 // loop_exit
    _

// kernel: _lambda_.9
$region0: #{_lambda_.9}
  #allocation0 [shape = 'u32[]', space=smem, size = 0x4, offset = 0x4, fixed_abs, tag = 'smem constant byte address 0x4 - core index']
  #allocation1 [shape = 'u32[144,128]{1,0:T(1,128)}', space=vmem, size = 0x12000, scoped, tag = 'internal scratch']
  %s0 = inlined_call_operand.vmem [shape: f32[16,64], index: 0, kind: input, shape index: {}]
  %s1 = inlined_call_operand.vmem [shape: f32[1,64], index: 1, kind: input, shape index: {}]
  %s2 = inlined_call_operand.vmem [shape: f32[1,64], index: 2, kind: input, shape index: {}]
  %s3 = inlined_call_operand.vmem [shape: f32[16,64], index: 3, kind: output, shape index: {}]
  %s4 = sld [smem:[#allocation0]]
  $region45: #{_lambda_.9} parent=0
    _
  %s6 = ssub.s32 1, %s4
  %s7 = scalar_select 0, %s6, %s4
  loop: start=0, step=1, limit=4
  $region2: #{_lambda_.9} parent=0 // loop_pre_header
    _
  $region3: #{_lambda_.9} parent=0 // loop_header
    %s9 = sphi 0, %s13
    %p10 = scmp.ge.s32.totalorder %s9, 4
    %s19 = sphi 0, %s21
    %s22 = sphi 0, %s19
    %s23 = sphi 0, %s22
    %s39 = sphi 0, %s23
    %s43 = sphi 0, %s43
    %s45 = sphi 0, %s43
    %s46 = sphi 0, %s45
    %s60 = sphi 0, %s46
    %s64 = sphi 0, %s64
    %s66 = sphi 0, %s64
    %s67 = sphi 0, %s66
    %s81 = sphi 0, %s67
    %s87 = sphi 0, %s89
    %s90 = sphi 0, %s87
    %s91 = sphi 0, %s90
    %s107 = sphi 0, %s91
  $region4: #{_lambda_.9} parent=0 // loop_header_branch
    %12 = sbr.rel (%p10) target = $region8
  $region5: #{_lambda_.9} parent=0 // loop_body
    %s14 = ssub.s32 %s9, 1
    %s15 = ssub.s32 %s9, 2
    %s16 = sadd.s32 %s9, 1
    %s17 = ssub.s32 %s9, %s16
    %p18 = scmp.eq.s32.totalorder %s17, 0
    %s20 = sadd.s32 %s19, 1
    %s21 = scalar_select %p18, %s19, %s20
    %p24 = pneg %p18
    %p25 = scmp.eq.s32.totalorder %s9, 1
    %p26 = por %p24, %p25
    %p27 = scmp.ne.s32.totalorder %s19, %s22
    %p28 = scmp.eq.s32.totalorder %s9, 0
    %p29 = por %p27, %p28
    %p30 = scmp.ne.s32.totalorder %s19, %s22
    %p31 = scmp.eq.s32.totalorder %s14, 1
    %p32 = por %p30, %p31
    %p33 = scmp.ne.s32.totalorder %s22, %s23
    %p34 = scmp.eq.s32.totalorder %s14, 0
    %p35 = por %p33, %p34
    %p36 = scmp.ne.s32.totalorder %s22, %s23
    %p37 = scmp.eq.s32.totalorder %s15, 1
    %p38 = por %p36, %p37
    %p40 = scmp.ne.s32.totalorder %s23, %s39
    %p41 = scmp.eq.s32.totalorder %s15, 0
    %p42 = por %p40, %p41
    %s44 = sadd.s32 %s43, 1
    %p47 = scmp.eq.s32.totalorder %s9, 1
    %p48 = scmp.ne.s32.totalorder %s43, %s45
    %p49 = scmp.eq.s32.totalorder %s9, 0
    %p50 = por %p48, %p49
    %p51 = scmp.ne.s32.totalorder %s43, %s45
    %p52 = scmp.eq.s32.totalorder %s14, 1
    %p53 = por %p51, %p52
    %p54 = scmp.ne.s32.totalorder %s45, %s46
    %p55 = scmp.eq.s32.totalorder %s14, 0
    %p56 = por %p54, %p55
    %p57 = scmp.ne.s32.totalorder %s45, %s46
    %p58 = scmp.eq.s32.totalorder %s15, 1
    %p59 = por %p57, %p58
    %p61 = scmp.ne.s32.totalorder %s46, %s60
    %p62 = scmp.eq.s32.totalorder %s15, 0
    %p63 = por %p61, %p62
    %s65 = sadd.s32 %s64, 1
    %p68 = scmp.eq.s32.totalorder %s9, 1
    %p69 = scmp.ne.s32.totalorder %s64, %s66
    %p70 = scmp.eq.s32.totalorder %s9, 0
    %p71 = por %p69, %p70
    %p72 = scmp.ne.s32.totalorder %s64, %s66
    %p73 = scmp.eq.s32.totalorder %s14, 1
    %p74 = por %p72, %p73
    %p75 = scmp.ne.s32.totalorder %s66, %s67
    %p76 = scmp.eq.s32.totalorder %s14, 0
    %p77 = por %p75, %p76
    %p78 = scmp.ne.s32.totalorder %s66, %s67
    %p79 = scmp.eq.s32.totalorder %s15, 1
    %p80 = por %p78, %p79
    %p82 = scmp.ne.s32.totalorder %s67, %s81
    %p83 = scmp.eq.s32.totalorder %s15, 0
    %p84 = por %p82, %p83
    %s85 = ssub.s32 %s9, %s16
    %p86 = scmp.eq.s32.totalorder %s85, 0
    %s88 = sadd.s32 %s87, 1
    %s89 = scalar_select %p86, %s87, %s88
    %p92 = pneg %p86
    %p93 = scmp.eq.s32.totalorder %s9, 1
    %p94 = por %p92, %p93
    %p95 = scmp.ne.s32.totalorder %s87, %s90
    %p96 = scmp.eq.s32.totalorder %s9, 0
    %p97 = por %p95, %p96
    %p98 = scmp.ne.s32.totalorder %s87, %s90
    %p99 = scmp.eq.s32.totalorder %s14, 1
    %p100 = por %p98, %p99
    %p101 = scmp.ne.s32.totalorder %s90, %s91
    %p102 = scmp.eq.s32.totalorder %s14, 0
    %p103 = por %p101, %p102
    %p104 = scmp.ne.s32.totalorder %s90, %s91
    %p105 = scmp.eq.s32.totalorder %s15, 1
    %p106 = por %p104, %p105
    %p108 = scmp.ne.s32.totalorder %s91, %s107
    %p109 = scmp.eq.s32.totalorder %s15, 0
    %p110 = por %p108, %p109
    %p111 = scmp.le.s32.totalorder 1, %s9
    %p112 = scmp.lt.s32.totalorder %s9, 3
    %p113 = pnand %p111, %p112
    %p114 = pneg %p113
    // Predicated region
    $region9: #{_lambda_.9} parent=5 // pred_check
      _
    $region10: #{_lambda_.9} parent=5 // pred_check_branch
      %116 = sbr.rel (%p113) target = $region12
    $region11: #{_lambda_.9} parent=5 // pred_region
      %s117 = ssub.s32 %s9, 1
      // Predicated region
      $region13: #{_lambda_.9} parent=11 // pred_check
        %p118 = pneg %p56
      $region14: #{_lambda_.9} parent=11 // pred_check_branch
        %120 = sbr.rel (%p118) target = $region16
      $region15: #{_lambda_.9} parent=11 // pred_region
        _
      $region16: #{_lambda_.9} parent=11 // pred_fallthru
        _
      // Predicated region
      $region17: #{_lambda_.9} parent=11 // pred_check
        %p121 = pneg %p77
      $region18: #{_lambda_.9} parent=11 // pred_check_branch
        %123 = sbr.rel (%p121) target = $region20
      $region19: #{_lambda_.9} parent=11 // pred_region
        _
      $region20: #{_lambda_.9} parent=11 // pred_fallthru
        _
    $region12: #{_lambda_.9} parent=5 // pred_fallthru
      _
    %p124 = scmp.lt.s32.totalorder %s9, 2
    // Predicated region
    $region21: #{_lambda_.9} parent=5 // pred_check
      %p125 = pneg %p124
    $region22: #{_lambda_.9} parent=5 // pred_check_branch
      %127 = sbr.rel (%p125) target = $region24
    $region23: #{_lambda_.9} parent=5 // pred_region
      // Predicated region
      $region25: #{_lambda_.9} parent=23 // pred_check
        %p128 = pneg %p29
      $region26: #{_lambda_.9} parent=23 // pred_check_branch
        %130 = sbr.rel (%p128) target = $region28
      $region27: #{_lambda_.9} parent=23 // pred_region
        %p131 = scmp.lt.s32.totalorder %s9, 1
        %s132 = scalar_select %p131, %s9, 1
        %s133 = smul.addr %s132, 8
        %s134 = scalar_lea.vmem %s0, %s133
      $region28: #{_lambda_.9} parent=23 // pred_fallthru
        _
    $region24: #{_lambda_.9} parent=5 // pred_fallthru
      _
    %p135 = scmp.le.s32.totalorder 1, %s9
    %p136 = scmp.lt.s32.totalorder %s9, 3
    %p137 = pnand %p135, %p136
    %p138 = pneg %p137
    // Predicated region
    $region29: #{_lambda_.9} parent=5 // pred_check
      _
    $region30: #{_lambda_.9} parent=5 // pred_check_branch
      %140 = sbr.rel (%p137) target = $region32
    $region31: #{_lambda_.9} parent=5 // pred_region
      %s141 = ssub.s32 %s9, 1
      %p142 = scmp.lt.s32.totalorder %s14, 1
      %s143 = scalar_select %p142, %s14, 1
      %s144 = smul.addr %s143, 8
      %s145 = scalar_lea.vmem %s0, %s144
      %p146 = pneg %p35
      %p147 = pneg %p32
      %p148 = pneg %p56
      %p149 = pneg %p53
      %p150 = pneg %p77
      %p151 = pneg %p74
      %p152 = pneg %p103
      %p153 = pneg %p100
      %p154 = scmp.lt.s32.totalorder %s14, 1
      %s155 = scalar_select %p154, %s14, 1
      %s156 = smul.addr %s155, 8
      %s157 = scalar_lea.vmem %s3, %s156
      %p158 = scmp.lt.s32.totalorder %s14, 1
      %s159 = scalar_select %p158, %s14, 1
      %s160 = smul.addr %s159, 8
      %s161 = scalar_lea.vmem %s0, %s160
      %p162 = scmp.lt.s32.totalorder %s14, 1
      %s163 = scalar_select %p162, %s14, 1
      %s164 = smul.addr %s163, 8
      %s165 = scalar_lea.vmem %s3, %s164
      %v166 = vld [vmem:[%s161] sm:$0xff]
      %v167 = vld [vmem:[%s1] sm:$0x1]
      %v169 = vlaneseq
      %v170 = vshrl.u32 %v169, 7
      %v171 = vsub.s32 0, %v170
      %v172 = vrot.slane %v167, %v171
      %v174 = vmul.f32 %v166, %v172
      %v175 = vld [vmem:[%s2] sm:$0x1]
      %v177 = vlaneseq
      %v178 = vshrl.u32 %v177, 7
      %v179 = vsub.s32 0, %v178
      %v180 = vrot.slane %v175, %v179
      %v182 = vadd.f32 %v174, %v180
      %v183 = vmax.f32 %v182, 0.0
      %vm184 = vcmask 523264
      %185 = vst.msk [vmem:[%s165] sm:$0xff] %vm184, %v183
      %p186 = scmp.lt.s32.totalorder %s14, 1
      %s187 = scalar_select %p186, %s14, 1
      %s188 = smul.addr %s187, 8
      %s189 = scalar_lea.vmem %s3, %s188
      // Predicated region
      $region33: #{_lambda_.9} parent=31 // pred_check
        %p190 = pneg %p100
      $region34: #{_lambda_.9} parent=31 // pred_check_branch
        %192 = sbr.rel (%p190) target = $region36
      $region35: #{_lambda_.9} parent=31 // pred_region
        _
      $region36: #{_lambda_.9} parent=31 // pred_fallthru
        _
    $region32: #{_lambda_.9} parent=5 // pred_fallthru
      _
    %p193 = scmp.le.s32.totalorder 2, %s9
    // Predicated region
    $region37: #{_lambda_.9} parent=5 // pred_check
      %p194 = pneg %p193
    $region38: #{_lambda_.9} parent=5 // pred_check_branch
      %196 = sbr.rel (%p194) target = $region40
    $region39: #{_lambda_.9} parent=5 // pred_region
      %s197 = ssub.s32 %s9, 2
      // Predicated region
      $region41: #{_lambda_.9} parent=39 // pred_check
        %p198 = pneg %p106
      $region42: #{_lambda_.9} parent=39 // pred_check_branch
        %200 = sbr.rel (%p198) target = $region44
      $region43: #{_lambda_.9} parent=39 // pred_region
        %p201 = scmp.lt.s32.totalorder %s15, 1
        %s202 = scalar_select %p201, %s15, 1
        %s203 = smul.addr %s202, 8
        %s204 = scalar_lea.vmem %s3, %s203
      $region44: #{_lambda_.9} parent=39 // pred_fallthru
        _
    $region40: #{_lambda_.9} parent=5 // pred_fallthru
      _
  $region6: #{_lambda_.9} parent=0 // loop_footer
    %s13 = sadd.s32 1, %s9
  $region7: #{_lambda_.9} parent=0 // loop_footer_branch
    %8 = sbr.rel target = $region3
  $region8: #{_lambda_.9} parent=0 // loop_exit
    _

// kernel: _lambda_.6
$region0: #{_lambda_.6}
  #allocation0 [shape = 'u32[]', space=smem, size = 0x4, offset = 0x4, fixed_abs, tag = 'smem constant byte address 0x4 - core index']
  #allocation1 [shape = 'u32[144,128]{1,0:T(1,128)}', space=vmem, size = 0x12000, scoped, tag = 'internal scratch']
  %s0 = inlined_call_operand.vmem [shape: bf16[2,10,10,4], index: 0, kind: input, shape index: {}, may-alias: {0,1,2}]
  %s1 = inlined_call_operand.vmem [shape: bf16[2,10,10,4], index: 1, kind: input, shape index: {}, may-alias: {0,1,2}]
  %s2 = inlined_call_operand.vmem [shape: bf16[2,10,10,4], index: 2, kind: input, shape index: {}, may-alias: {0,1,2}]
  %s3 = inlined_call_operand.vmem [shape: bf16[3,3,4,8], index: 3, kind: input, shape index: {}]
  %s4 = inlined_call_operand.vmem [shape: f32[1,8], index: 4, kind: input, shape index: {}]
  %s5 = inlined_call_operand.vmem [shape: f32[2,8,8,8], index: 5, kind: output, shape index: {0}]
  %s6 = inlined_call_operand.vmem [shape: f32[2,2,8], index: 6, kind: output, shape index: {1}]
  %7 = xla_tuple %s5, %s6
  %s8 = sld [smem:[#allocation0]]
  $region65: #{_lambda_.6} parent=0
    _
  %s10 = ssub.s32 1, %s8
  %s11 = scalar_select 0, %s10, %s8
  loop: start=0, step=1, limit=6
  $region2: #{_lambda_.6} parent=0 // loop_pre_header
    _
  $region3: #{_lambda_.6} parent=0 // loop_header
    %s13 = sphi 0, %s17
    %p14 = scmp.ge.s32.totalorder %s13, 6
    %s20 = sphi 0, %s32
    %s21 = sphi 0, %s28
    %s22 = sphi 0, %s20
    %s23 = sphi 0, %s21
    %s24 = sphi 0, %s22
    %s25 = sphi 0, %s23
    %s37 = sphi 0, %s39
    %s40 = sphi 0, %s37
    %s41 = sphi 0, %s40
    %s57 = sphi 0, %s41
    %s69 = sphi 0, %s71
    %s72 = sphi 0, %s69
    %s73 = sphi 0, %s72
    %s89 = sphi 0, %s73
    %s101 = sphi 0, %s103
    %s104 = sphi 0, %s101
    %s105 = sphi 0, %s104
    %s121 = sphi 0, %s105
    %s125 = sphi 0, %s125
    %s127 = sphi 0, %s125
    %s128 = sphi 0, %s127
    %s142 = sphi 0, %s128
    %s146 = sphi 0, %s146
    %s148 = sphi 0, %s146
    %s149 = sphi 0, %s148
    %s163 = sphi 0, %s149
    %s171 = sphi 0, %s173
    %s174 = sphi 0, %s171
    %s175 = sphi 0, %s174
    %s191 = sphi 0, %s175
    %s197 = sphi 0, %s199
    %s200 = sphi 0, %s197
    %s201 = sphi 0, %s200
    %s217 = sphi 0, %s201
  $region4: #{_lambda_.6} parent=0 // loop_header_branch
    %16 = sbr.rel (%p14) target = $region8
  $region5: #{_lambda_.6} parent=0 // loop_body
    %s18 = ssub.s32 %s13, 1
    %s19 = ssub.s32 %s13, 2
    %s26 = sadd.s32 1, %s21
    %p27 = scmp.ge.s32.totalorder %s26, 2
    %s28 = scalar_select %p27, 0, %s26
    %s29 = sadd.s32 1, %s20
    %s30 = scalar_select %p27, %s29, %s20
    %p31 = scmp.ge.s32.totalorder %s30, 2
    %s32 = scalar_select %p31, 0, %s30
    %s33 = ssub.s32 %s20, %s32
    %s34 = ssub.s32 %s21, %s28
    %s35 = sor.u32 %s33, %s34
    %p36 = scmp.eq.s32.totalorder %s35, 0
    %s38 = sadd.s32 %s37, 1
    %s39 = scalar_select %p36, %s37, %s38
    %p42 = pneg %p36
    %p43 = scmp.eq.s32.totalorder %s13, 3
    %p44 = por %p42, %p43
    %p45 = scmp.ne.s32.totalorder %s37, %s40
    %p46 = scmp.eq.s32.totalorder %s13, 0
    %p47 = por %p45, %p46
    %p48 = scmp.ne.s32.totalorder %s37, %s40
    %p49 = scmp.eq.s32.totalorder %s18, 3
    %p50 = por %p48, %p49
    %p51 = scmp.ne.s32.totalorder %s40, %s41
    %p52 = scmp.eq.s32.totalorder %s18, 0
    %p53 = por %p51, %p52
    %p54 = scmp.ne.s32.totalorder %s40, %s41
    %p55 = scmp.eq.s32.totalorder %s19, 3
    %p56 = por %p54, %p55
    %p58 = scmp.ne.s32.totalorder %s41, %s57
    %p59 = scmp.eq.s32.totalorder %s19, 0
    %p60 = por %p58, %p59
    %s61 = smul.u32 %s21, 4
    %s62 = sadd.s32 %s61, 4
    %s63 = smul.u32 %s28, 4
    %s64 = sadd.s32 %s63, 4
    %s65 = ssub.s32 %s20, %s32
    %s66 = ssub.s32 %s62, %s64
    %s67 = sor.u32 %s65, %s66
    %p68 = scmp.eq.s32.totalorder %s67, 0
    %s70 = sadd.s32 %s69, 1
    %s71 = scalar_select %p68, %s69, %s70
    %p74 = pneg %p68
    %p75 = scmp.eq.s32.totalorder %s13, 3
    %p76 = por %p74, %p75
    %p77 = scmp.ne.s32.totalorder %s69, %s72
    %p78 = scmp.eq.s32.totalorder %s13, 0
    %p79 = por %p77, %p78
    %p80 = scmp.ne.s32.totalorder %s69, %s72
    %p81 = scmp.eq.s32.totalorder %s18, 3
    %p82 = por %p80, %p81
    %p83 = scmp.ne.s32.totalorder %s72, %s73
    %p84 = scmp.eq.s32.totalorder %s18, 0
    %p85 = por %p83, %p84
    %p86 = scmp.ne.s32.totalorder %s72, %s73
    %p87 = scmp.eq.s32.totalorder %s19, 3
    %p88 = por %p86, %p87
    %p90 = scmp.ne.s32.totalorder %s73, %s89
    %p91 = scmp.eq.s32.totalorder %s19, 0
    %p92 = por %p90, %p91
    %s93 = smul.u32 %s21, 4
    %s94 = sadd.s32 %s93, 5
    %s95 = smul.u32 %s28, 4
    %s96 = sadd.s32 %s95, 5
    %s97 = ssub.s32 %s20, %s32
    %s98 = ssub.s32 %s94, %s96
    %s99 = sor.u32 %s97, %s98
    %p100 = scmp.eq.s32.totalorder %s99, 0
    %s102 = sadd.s32 %s101, 1
    %s103 = scalar_select %p100, %s101, %s102
    %p106 = pneg %p100
    %p107 = scmp.eq.s32.totalorder %s13, 3
    %p108 = por %p106, %p107
    %p109 = scmp.ne.s32.totalorder %s101, %s104
    %p110 = scmp.eq.s32.totalorder %s13, 0
    %p111 = por %p109, %p110
    %p112 = scmp.ne.s32.totalorder %s101, %s104
    %p113 = scmp.eq.s32.totalorder %s18, 3
    %p114 = por %p112, %p113
    %p115 = scmp.ne.s32.totalorder %s104, %s105
    %p116 = scmp.eq.s32.totalorder %s18, 0
    %p117 = por %p115, %p116
    %p118 = scmp.ne.s32.totalorder %s104, %s105
    %p119 = scmp.eq.s32.totalorder %s19, 3
    %p120 = por %p118, %p119
    %p122 = scmp.ne.s32.totalorder %s105, %s121
    %p123 = scmp.eq.s32.totalorder %s19, 0
    %p124 = por %p122, %p123
    %s126 = sadd.s32 %s125, 1
    %p129 = scmp.eq.s32.totalorder %s13, 3
    %p130 = scmp.ne.s32.totalorder %s125, %s127
    %p131 = scmp.eq.s32.totalorder %s13, 0
    %p132 = por %p130, %p131
    %p133 = scmp.ne.s32.totalorder %s125, %s127
    %p134 = scmp.eq.s32.totalorder %s18, 3
    %p135 = por %p133, %p134
    %p136 = scmp.ne.s32.totalorder %s127, %s128
    %p137 = scmp.eq.s32.totalorder %s18, 0
    %p138 = por %p136, %p137
    %p139 = scmp.ne.s32.totalorder %s127, %s128
    %p140 = scmp.eq.s32.totalorder %s19, 3
    %p141 = por %p139, %p140
    %p143 = scmp.ne.s32.totalorder %s128, %s142
    %p144 = scmp.eq.s32.totalorder %s19, 0
    %p145 = por %p143, %p144
    %s147 = sadd.s32 %s146, 1
    %p150 = scmp.eq.s32.totalorder %s13, 3
    %p151 = scmp.ne.s32.totalorder %s146, %s148
    %p152 = scmp.eq.s32.totalorder %s13, 0
    %p153 = por %p151, %p152
    %p154 = scmp.ne.s32.totalorder %s146, %s148
    %p155 = scmp.eq.s32.totalorder %s18, 3
    %p156 = por %p154, %p155
    %p157 = scmp.ne.s32.totalorder %s148, %s149
    %p158 = scmp.eq.s32.totalorder %s18, 0
    %p159 = por %p157, %p158
    %p160 = scmp.ne.s32.totalorder %s148, %s149
    %p161 = scmp.eq.s32.totalorder %s19, 3
    %p162 = por %p160, %p161
    %p164 = scmp.ne.s32.totalorder %s149, %s163
    %p165 = scmp.eq.s32.totalorder %s19, 0
    %p166 = por %p164, %p165
    %s167 = ssub.s32 %s20, %s32
    %s168 = ssub.s32 %s21, %s28
    %s169 = sor.u32 %s167, %s168
    %p170 = scmp.eq.s32.totalorder %s169, 0
    %s172 = sadd.s32 %s171, 1
    %s173 = scalar_select %p170, %s171, %s172
    %p176 = pneg %p170
    %p177 = scmp.eq.s32.totalorder %s13, 3
    %p178 = por %p176, %p177
    %p179 = scmp.ne.s32.totalorder %s171, %s174
    %p180 = scmp.eq.s32.totalorder %s13, 0
    %p181 = por %p179, %p180
    %p182 = scmp.ne.s32.totalorder %s171, %s174
    %p183 = scmp.eq.s32.totalorder %s18, 3
    %p184 = por %p182, %p183
    %p185 = scmp.ne.s32.totalorder %s174, %s175
    %p186 = scmp.eq.s32.totalorder %s18, 0
    %p187 = por %p185, %p186
    %p188 = scmp.ne.s32.totalorder %s174, %s175
    %p189 = scmp.eq.s32.totalorder %s19, 3
    %p190 = por %p188, %p189
    %p192 = scmp.ne.s32.totalorder %s175, %s191
    %p193 = scmp.eq.s32.totalorder %s19, 0
    %p194 = por %p192, %p193
    %s195 = ssub.s32 %s20, %s32
    %p196 = scmp.eq.s32.totalorder %s195, 0
    %s198 = sadd.s32 %s197, 1
    %s199 = scalar_select %p196, %s197, %s198
    %p202 = pneg %p196
    %p203 = scmp.eq.s32.totalorder %s13, 3
    %p204 = por %p202, %p203
    %p205 = scmp.ne.s32.totalorder %s197, %s200
    %p206 = scmp.eq.s32.totalorder %s13, 0
    %p207 = por %p205, %p206
    %p208 = scmp.ne.s32.totalorder %s197, %s200
    %p209 = scmp.eq.s32.totalorder %s18, 3
    %p210 = por %p208, %p209
    %p211 = scmp.ne.s32.totalorder %s200, %s201
    %p212 = scmp.eq.s32.totalorder %s18, 0
    %p213 = por %p211, %p212
    %p214 = scmp.ne.s32.totalorder %s200, %s201
    %p215 = scmp.eq.s32.totalorder %s19, 3
    %p216 = por %p214, %p215
    %p218 = scmp.ne.s32.totalorder %s201, %s217
    %p219 = scmp.eq.s32.totalorder %s19, 0
    %p220 = por %p218, %p219
    %p221 = scmp.le.s32.totalorder 1, %s13
    %p222 = scmp.lt.s32.totalorder %s13, 5
    %p223 = pnand %p221, %p222
    %p224 = pneg %p223
    // Predicated region
    $region9: #{_lambda_.6} parent=5 // pred_check
      _
    $region10: #{_lambda_.6} parent=5 // pred_check_branch
      %226 = sbr.rel (%p223) target = $region12
    $region11: #{_lambda_.6} parent=5 // pred_region
      %s227 = ssub.s32 %s13, 1
      // Predicated region
      $region13: #{_lambda_.6} parent=11 // pred_check
        %p228 = pneg %p138
      $region14: #{_lambda_.6} parent=11 // pred_check_branch
        %230 = sbr.rel (%p228) target = $region16
      $region15: #{_lambda_.6} parent=11 // pred_region
        _
      $region16: #{_lambda_.6} parent=11 // pred_fallthru
        _
      // Predicated region
      $region17: #{_lambda_.6} parent=11 // pred_check
        %p231 = pneg %p159
      $region18: #{_lambda_.6} parent=11 // pred_check_branch
        %233 = sbr.rel (%p231) target = $region20
      $region19: #{_lambda_.6} parent=11 // pred_region
        _
      $region20: #{_lambda_.6} parent=11 // pred_fallthru
        _
    $region12: #{_lambda_.6} parent=5 // pred_fallthru
      _
    %p234 = scmp.lt.s32.totalorder %s13, 4
    // Predicated region
    $region21: #{_lambda_.6} parent=5 // pred_check
      %p235 = pneg %p234
    $region22: #{_lambda_.6} parent=5 // pred_check_branch
      %237 = sbr.rel (%p235) target = $region24
    $region23: #{_lambda_.6} parent=5 // pred_region
      // Predicated region
      $region25: #{_lambda_.6} parent=23 // pred_check
        %p238 = pneg %p47
      $region26: #{_lambda_.6} parent=23 // pred_check_branch
        %240 = sbr.rel (%p238) target = $region28
      $region27: #{_lambda_.6} parent=23 // pred_region
        %s241 = smul.u32 4, %s21
        %s242 = ssub.s32 10, %s241
        %p243 = scmp.lt.s32.totalorder %s242, 4
        %s244 = scalar_select %p243, %s242, 4
        %s245 = smul.u32 64, %s244
        %s246 = smul.u32 %s245, 2
        %p247 = scmp.lt.s32.totalorder %s20, 1
        %s248 = scalar_select %p247, %s20, 1
        %p249 = scmp.lt.s32.totalorder %s241, 9
        %s250 = scalar_select %p249, %s241, 9
        %s251 = smul.addr %s250, 2
        %s252 = smul.addr %s248, 20
        %s253 = sadd.s32 %s251, %s252
        %s254 = smul.addr %s253, 4
        %s255 = scalar_lea.vmem %s0, %s254
        %s256 = smul.u32 4, %s21
        %s257 = ssub.s32 10, %s256
        %p258 = scmp.lt.s32.totalorder %s257, 4
        %s259 = scalar_select %p258, %s257, 4
        %s260 = smul.u32 64, %s259
        %s261 = smul.u32 %s260, 2
      $region28: #{_lambda_.6} parent=23 // pred_fallthru
        _
      // Predicated region
      $region29: #{_lambda_.6} parent=23 // pred_check
        %p262 = pneg %p79
      $region30: #{_lambda_.6} parent=23 // pred_check_branch
        %264 = sbr.rel (%p262) target = $region32
      $region31: #{_lambda_.6} parent=23 // pred_region
        %s265 = smul.u32 %s21, 4
        %s266 = sadd.s32 %s265, 4
        %p267 = scmp.lt.s32.totalorder %s20, 1
        %s268 = scalar_select %p267, %s20, 1
        %p269 = scmp.lt.s32.totalorder %s266, 9
        %s270 = scalar_select %p269, %s266, 9
        %s271 = smul.addr %s270, 2
        %s272 = smul.addr %s268, 20
        %s273 = sadd.s32 %s271, %s272
        %s274 = smul.addr %s273, 4
        %s275 = scalar_lea.vmem %s1, %s274
        %s276 = smul.u32 %s21, 4
        %s277 = sadd.s32 %s276, 4
      $region32: #{_lambda_.6} parent=23 // pred_fallthru
        _
      // Predicated region
      $region33: #{_lambda_.6} parent=23 // pred_check
        %p278 = pneg %p111
      $region34: #{_lambda_.6} parent=23 // pred_check_branch
        %280 = sbr.rel (%p278) target = $region36
      $region35: #{_lambda_.6} parent=23 // pred_region
        %s281 = smul.u32 %s21, 4
        %s282 = sadd.s32 %s281, 5
        %p283 = scmp.lt.s32.totalorder %s20, 1
        %s284 = scalar_select %p283, %s20, 1
        %p285 = scmp.lt.s32.totalorder %s282, 9
        %s286 = scalar_select %p285, %s282, 9
        %s287 = smul.addr %s286, 2
        %s288 = smul.addr %s284, 20
        %s289 = sadd.s32 %s287, %s288
        %s290 = smul.addr %s289, 4
        %s291 = scalar_lea.vmem %s2, %s290
        %s292 = smul.u32 %s21, 4
        %s293 = sadd.s32 %s292, 5
      $region36: #{_lambda_.6} parent=23 // pred_fallthru
        _
    $region24: #{_lambda_.6} parent=5 // pred_fallthru
      _
    %p294 = scmp.le.s32.totalorder 1, %s13
    %p295 = scmp.lt.s32.totalorder %s13, 5
    %p296 = pnand %p294, %p295
    %p297 = pneg %p296
    // Predicated region
    $region37: #{_lambda_.6} parent=5 // pred_check
      _
    $region38: #{_lambda_.6} parent=5 // pred_check_branch
      %299 = sbr.rel (%p296) target = $region40
    $region39: #{_lambda_.6} parent=5 // pred_region
      %s300 = ssub.s32 %s13, 1
      %s301 = smul.u32 4, %s23
      %s302 = ssub.s32 10, %s301
      %p303 = scmp.lt.s32.totalorder %s302, 4
      %s304 = scalar_select %p303, %s302, 4
      %s305 = smul.u32 64, %s304
      %s306 = smul.u32 %s305, 2
      %p307 = scmp.lt.s32.totalorder %s22, 1
      %s308 = scalar_select %p307, %s22, 1
      %p309 = scmp.lt.s32.totalorder %s301, 9
      %s310 = scalar_select %p309, %s301, 9
      %s311 = smul.addr %s310, 2
      %s312 = smul.addr %s308, 20
      %s313 = sadd.s32 %s311, %s312
      %s314 = smul.addr %s313, 4
      %s315 = scalar_lea.vmem %s0, %s314
      %p316 = pneg %p53
      %p317 = pneg %p50
      %s318 = smul.u32 %s23, 4
      %s319 = sadd.s32 %s318, 4
      %p320 = scmp.lt.s32.totalorder %s22, 1
      %s321 = scalar_select %p320, %s22, 1
      %p322 = scmp.lt.s32.totalorder %s319, 9
      %s323 = scalar_select %p322, %s319, 9
      %s324 = smul.addr %s323, 2
      %s325 = smul.addr %s321, 20
      %s326 = sadd.s32 %s324, %s325
      %s327 = smul.addr %s326, 4
      %s328 = scalar_lea.vmem %s1, %s327
      %p329 = pneg %p85
      %p330 = pneg %p82
      %s331 = smul.u32 %s23, 4
      %s332 = sadd.s32 %s331, 5
      %p333 = scmp.lt.s32.totalorder %s22, 1
      %s334 = scalar_select %p333, %s22, 1
      %p335 = scmp.lt.s32.totalorder %s332, 9
      %s336 = scalar_select %p335, %s332, 9
      %s337 = smul.addr %s336, 2
      %s338 = smul.addr %s334, 20
      %s339 = sadd.s32 %s337, %s338
      %s340 = smul.addr %s339, 4
      %s341 = scalar_lea.vmem %s2, %s340
      %p342 = pneg %p117
      %p343 = pneg %p114
      %p344 = pneg %p138
      %p345 = pneg %p135
      %p346 = pneg %p159
      %p347 = pneg %p156
      %p348 = pneg %p187
      %p349 = pneg %p184
      %s350 = smul.u32 4, %s23
      %p351 = scmp.lt.s32.totalorder %s22, 1
      %s352 = scalar_select %p351, %s22, 1
      %p353 = scmp.lt.s32.totalorder %s350, 7
      %s354 = scalar_select %p353, %s350, 7
      %s355 = smul.addr %s352, 8
      %s356 = sadd.s32 %s354, %s355
      %s357 = smul.addr %s356, 8
      %s358 = scalar_lea.vmem %s5, %s357
      %p359 = pneg %p213
      %p360 = pneg %p210
      %p361 = scmp.lt.s32.totalorder %s22, 1
      %s362 = scalar_select %p361, %s22, 1
      %s363 = smul.addr %s362, 2
      %s364 = scalar_lea.vmem %s6, %s363
      %s365 = smul.u32 4, %s23
      %s366 = ssub.s32 10, %s365
      %p367 = scmp.lt.s32.totalorder %s366, 4
      %s368 = scalar_select %p367, %s366, 4
      %s369 = smul.u32 64, %s368
      %s370 = smul.u32 %s369, 2
      %p371 = scmp.lt.s32.totalorder %s22, 1
      %s372 = scalar_select %p371, %s22, 1
      %p373 = scmp.lt.s32.totalorder %s365, 9
      %s374 = scalar_select %p373, %s365, 9
      %s375 = smul.addr %s374, 2
      %s376 = smul.addr %s372, 20
      %s377 = sadd.s32 %s375, %s376
      %s378 = smul.addr %s377, 4
      %s379 = scalar_lea.vmem %s0, %s378
      %s380 = smul.u32 4, %s23
      %s381 = ssub.s32 10, %s380
      %p382 = scmp.lt.s32.totalorder %s381, 4
      %s383 = scalar_select %p382, %s381, 4
      %s384 = smul.u32 64, %s383
      %s385 = smul.u32 %s384, 2
      %s386 = smul.u32 %s23, 4
      %s387 = sadd.s32 %s386, 4
      %p388 = scmp.lt.s32.totalorder %s22, 1
      %s389 = scalar_select %p388, %s22, 1
      %p390 = scmp.lt.s32.totalorder %s387, 9
      %s391 = scalar_select %p390, %s387, 9
      %s392 = smul.addr %s391, 2
      %s393 = smul.addr %s389, 20
      %s394 = sadd.s32 %s392, %s393
      %s395 = smul.addr %s394, 4
      %s396 = scalar_lea.vmem %s1, %s395
      %s397 = smul.u32 %s23, 4
      %s398 = sadd.s32 %s397, 4
      %s399 = smul.u32 %s23, 4
      %s400 = sadd.s32 %s399, 5
      %p401 = scmp.lt.s32.totalorder %s22, 1
      %s402 = scalar_select %p401, %s22, 1
      %p403 = scmp.lt.s32.totalorder %s400, 9
      %s404 = scalar_select %p403, %s400, 9
      %s405 = smul.addr %s404, 2
      %s406 = smul.addr %s402, 20
      %s407 = sadd.s32 %s405, %s406
      %s408 = smul.addr %s407, 4
      %s409 = scalar_lea.vmem %s2, %s408
      %s410 = smul.u32 %s23, 4
      %s411 = sadd.s32 %s410, 5
      %s412 = smul.u32 4, %s23
      %p413 = scmp.lt.s32.totalorder %s22, 1
      %s414 = scalar_select %p413, %s22, 1
      %p415 = scmp.lt.s32.totalorder %s412, 7
      %s416 = scalar_select %p415, %s412, 7
      %s417 = smul.addr %s414, 8
      %s418 = sadd.s32 %s416, %s417
      %s419 = smul.addr %s418, 8
      %s420 = scalar_lea.vmem %s5, %s419
      %s421 = smul.u32 4, %s23
      %p422 = scmp.lt.s32.totalorder %s22, 1
      %s423 = scalar_select %p422, %s22, 1
      %s424 = smul.addr %s423, 2
      %s425 = scalar_lea.vmem %s6, %s424
      %v427 = vld [vmem:[%s379] sm:$0xf]
      %v428 = vld [vmem:[%s379 + $0x4] sm:$0x1]
      %v429 = vld [vmem:[%s379 + $0x8] sm:$0xf]
      %v430 = vld [vmem:[%s379 + $0xc] sm:$0x1]
      %v431 = vld [vmem:[%s379 + $0x10] sm:$0xf]
      %v432 = vld [vmem:[%s379 + $0x14] sm:$0x1]
      %v433 = vld [vmem:[%s379 + $0x18] sm:$0xf]
      %v434 = vld [vmem:[%s379 + $0x1c] sm:$0x1]
      %v435 = vld [vmem:[%s396] sm:$0xf]
      %v436 = vld [vmem:[%s396 + $0x4] sm:$0x1]
      %v437 = vld [vmem:[%s409] sm:$0xf]
      %v438 = vld [vmem:[%s409 + $0x4] sm:$0x1]
      %v439 = vld [vmem:[%s3] sm:$0x3]
      %vm440 = vsmask.f32 3328
      %vm441 = vsmask.f32 7440
      %vm442 = vmor %vm440, %vm441
      %v444 = vshrl.u32 %v427, 16
      %v446 = vrot.slane %v444, 4
      %v447 = vshll.u32 %v427, 16
      %v449 = vrot.slane %v447, 5
      %v450 = vor.u32 %v446, %v449
      %v451 = vrot.slane %v450, 4
      %v453 = vshll.u32 %v428, 16
      %v455 = vrot.slane %v453, 5
      %v456 = vsel %vm442, %v451, %v455
      %v458 = vshrl.u32 %v429, 16
      %v460 = vrot.slane %v458, 4
      %v461 = vshll.u32 %v429, 16
      %v463 = vrot.slane %v461, 5
      %v464 = vor.u32 %v460, %v463
      %v465 = vrot.slane %v464, 4
      %v467 = vshll.u32 %v430, 16
      %v469 = vrot.slane %v467, 5
      %v470 = vsel %vm442, %v465, %v469
      %v472 = vshrl.u32 %v431, 16
      %v474 = vrot.slane %v472, 4
      %v475 = vshll.u32 %v431, 16
      %v477 = vrot.slane %v475, 5
      %v478 = vor.u32 %v474, %v477
      %v479 = vrot.slane %v478, 4
      %v481 = vshll.u32 %v432, 16
      %v483 = vrot.slane %v481, 5
      %v484 = vsel %vm442, %v479, %v483
      %v486 = vshrl.u32 %v433, 16
      %v488 = vrot.slane %v486, 4
      %v489 = vshll.u32 %v433, 16
      %v491 = vrot.slane %v489, 5
      %v492 = vor.u32 %v488, %v491
      %v493 = vrot.slane %v492, 4
      %v495 = vshll.u32 %v434, 16
      %v497 = vrot.slane %v495, 5
      %v498 = vsel %vm442, %v493, %v497
      %s499 = scalar_lea.vmem %s3, 2
      %v500 = vld [vmem:[%s499] sm:$0x3]
      %v501 = vunpack.c.l.b16 %v456
      %v502 = vunpack.c.l.b16 %v470
      %v503 = vunpack.c.l.b16 %v484
      %v504 = vunpack.c.l.b16 %v498
      %v505 = vpack.c.b16 %v502, %v501
      %v506 = vpack.c.b16 %v504, %v503
      %vm507 = vcmask 31744
      %v509 = vsel %vm507, %v505, 0
      %v512 = vsel %vm507, %v506, 0
      %vm514 = vcmask 1041408
      %v516 = vsel %vm514, %v500, 0
      %518 = vmatprep.subr.bf16.mxu0 0
      %519 = vmatpush1.bf16.msra.mxu0 0
      %520 = vmatprep.subr.bf16.mxu0 0
      %521 = vmatpush1.bf16.msra.mxu0 0
      %522 = vmatprep.subr.bf16.mxu0 0
      %523 = vmatpush1.bf16.msra.mxu0 0
      %524 = vmatprep.subr.bf16.mxu0 0
      %525 = vmatpush1.bf16.msra.mxu0 0
      %526 = vmatprep.subr.bf16.mxu0 0
      %527 = vmatpush1.bf16.msra.mxu0 0
      %528 = vmatprep.subr.bf16.mxu0 0
      %529 = vmatpush1.bf16.msra.mxu0 0
      %530 = vmatprep.subr.bf16.mxu0 0
      %531 = vmatpush1.bf16.msra.mxu0 0
      %532 = vmatprep.subr.bf16.mxu0 0
      %533 = vmatpush1.bf16.msra.mxu0 %v516
      %534 = vmatprep.subr.bf16.mxu0 0
      %535 = vmatpush2.bf16.msra.mxu0 0
      %536 = vmatprep.subr.bf16.mxu0 0
      %537 = vmatpush2.bf16.msra.mxu0 0
      %538 = vmatprep.subr.bf16.mxu0 0
      %539 = vmatpush2.bf16.msra.mxu0 0
      %540 = vmatprep.subr.bf16.mxu0 0
      %541 = vmatpush2.bf16.msra.mxu0 0
      %542 = vmatprep.subr.bf16.mxu0 0
      %543 = vmatpush2.bf16.msra.mxu0 0
      %544 = vmatprep.subr.bf16.mxu0 0
      %545 = vmatpush2.bf16.msra.mxu0 0
      %546 = vmatprep.subr.bf16.mxu0 0
      %547 = vmatpush2.bf16.msra.mxu0 0
      %548 = vmatprep.subr.bf16.mxu0 0
      %549 = vmatpush2.bf16.msra.mxu0 0
      %550 = vmatprep.mubr.bf16.mxu0 0
      %551 = vmatmul.mubr.bf16.gmra.mxu0 %v509
      %v552 = vpop.f32.mrf.mxu0
      %v553 = vadd.f32 0.0, %v552
      %v554 = vpop.f32.mrf.mxu0
      %v555 = vpop.f32.mrf.mxu0
      %v556 = vadd.f32 0.0, %v555
      %v557 = vpop.f32.mrf.mxu0
      %558 = vmatprep.mubr.bf16.mxu0 0
      %559 = vmatmul.mubr.bf16.gmra.mxu0 %v512
      %v560 = vpop.f32.mrf.mxu0
      %v561 = vadd.f32 0.0, %v560
      %v562 = vpop.f32.mrf.mxu0
      %v563 = vpop.f32.mrf.mxu0
      %v564 = vadd.f32 0.0, %v563
      %v565 = vpop.f32.mrf.mxu0
      %566 = vdwg.mxu0
      %v571 = vunpack.c.l.b16 %v427
      %v572 = vunpack.c.l.b16 %v429
      %v573 = vunpack.c.l.b16 %v431
      %v574 = vunpack.c.l.b16 %v433
      %v575 = vpack.c.b16 %v572, %v571
      %v576 = vpack.c.b16 %v574, %v573
      %v578 = vsel %vm507, %v575, 0
      %v581 = vsel %vm507, %v576, 0
      %v584 = vsel %vm514, %v439, 0
      %586 = vmatprep.subr.bf16.mxu0 0
      %587 = vmatpush1.bf16.msra.mxu0 0
      %588 = vmatprep.subr.bf16.mxu0 0
      %589 = vmatpush1.bf16.msra.mxu0 0
      %590 = vmatprep.subr.bf16.mxu0 0
      %591 = vmatpush1.bf16.msra.mxu0 0
      %592 = vmatprep.subr.bf16.mxu0 0
      %593 = vmatpush1.bf16.msra.mxu0 0
      %594 = vmatprep.subr.bf16.mxu0 0
      %595 = vmatpush1.bf16.msra.mxu0 0
      %596 = vmatprep.subr.bf16.mxu0 0
      %597 = vmatpush1.bf16.msra.mxu0 0
      %598 = vmatprep.subr.bf16.mxu0 0
      %599 = vmatpush1.bf16.msra.mxu0 0
      %600 = vmatprep.subr.bf16.mxu0 0
      %601 = vmatpush1.bf16.msra.mxu0 %v584
      %602 = vmatprep.subr.bf16.mxu0 0
      %603 = vmatpush2.bf16.msra.mxu0 0
      %604 = vmatprep.subr.bf16.mxu0 0
      %605 = vmatpush2.bf16.msra.mxu0 0
      %606 = vmatprep.subr.bf16.mxu0 0
      %607 = vmatpush2.bf16.msra.mxu0 0
      %608 = vmatprep.subr.bf16.mxu0 0
      %609 = vmatpush2.bf16.msra.mxu0 0
      %610 = vmatprep.subr.bf16.mxu0 0
      %611 = vmatpush2.bf16.msra.mxu0 0
      %612 = vmatprep.subr.bf16.mxu0 0
      %613 = vmatpush2.bf16.msra.mxu0 0
      %614 = vmatprep.subr.bf16.mxu0 0
      %615 = vmatpush2.bf16.msra.mxu0 0
      %616 = vmatprep.subr.bf16.mxu0 0
      %617 = vmatpush2.bf16.msra.mxu0 0
      %618 = vmatprep.mubr.bf16.mxu0 0
      %619 = vmatmul.mubr.bf16.gmra.mxu0 %v578
      %v620 = vpop.f32.mrf.mxu0
      %v621 = vadd.f32 %v553, %v620
      %v622 = vpop.f32.mrf.mxu0
      %v623 = vpop.f32.mrf.mxu0
      %v624 = vadd.f32 %v556, %v623
      %v625 = vpop.f32.mrf.mxu0
      %626 = vmatprep.mubr.bf16.mxu0 0
      %627 = vmatmul.mubr.bf16.gmra.mxu0 %v581
      %v628 = vpop.f32.mrf.mxu0
      %v629 = vadd.f32 %v561, %v628
      %v630 = vpop.f32.mrf.mxu0
      %v631 = vpop.f32.mrf.mxu0
      %v632 = vadd.f32 %v564, %v631
      %v633 = vpop.f32.mrf.mxu0
      %634 = vdwg.mxu0
      %vm639 = vcmask 1042432
      %vm640 = vcmask 1046532
      %vm641 = vmor %vm639, %vm640
      %v642 = vrot.slane %v427, 5
      %v643 = vrot.slane %v642, 4
      %v644 = vrot.slane %v428, 5
      %v645 = vsel %vm641, %v643, %v644
      %v646 = vrot.slane %v429, 5
      %v647 = vrot.slane %v646, 4
      %v648 = vrot.slane %v430, 5
      %v649 = vsel %vm641, %v647, %v648
      %v650 = vrot.slane %v431, 5
      %v651 = vrot.slane %v650, 4
      %v652 = vrot.slane %v432, 5
      %v653 = vsel %vm641, %v651, %v652
      %v654 = vrot.slane %v433, 5
      %v655 = vrot.slane %v654, 4
      %v656 = vrot.slane %v434, 5
      %v657 = vsel %vm641, %v655, %v656
      %s658 = scalar_lea.vmem %s3, 4
      %v659 = vld [vmem:[%s658] sm:$0x3]
      %v660 = vunpack.c.l.b16 %v645
      %v661 = vunpack.c.l.b16 %v649
      %v662 = vunpack.c.l.b16 %v653
      %v663 = vunpack.c.l.b16 %v657
      %v664 = vpack.c.b16 %v661, %v660
      %v665 = vpack.c.b16 %v663, %v662
      %v667 = vsel %vm507, %v664, 0
      %v670 = vsel %vm507, %v665, 0
      %v673 = vsel %vm514, %v659, 0
      %675 = vmatprep.subr.bf16.mxu0 0
      %676 = vmatpush1.bf16.msra.mxu0 0
      %677 = vmatprep.subr.bf16.mxu0 0
      %678 = vmatpush1.bf16.msra.mxu0 0
      %679 = vmatprep.subr.bf16.mxu0 0
      %680 = vmatpush1.bf16.msra.mxu0 0
      %681 = vmatprep.subr.bf16.mxu0 0
      %682 = vmatpush1.bf16.msra.mxu0 0
      %683 = vmatprep.subr.bf16.mxu0 0
      %684 = vmatpush1.bf16.msra.mxu0 0
      %685 = vmatprep.subr.bf16.mxu0 0
      %686 = vmatpush1.bf16.msra.mxu0 0
      %687 = vmatprep.subr.bf16.mxu0 0
      %688 = vmatpush1.bf16.msra.mxu0 0
      %689 = vmatprep.subr.bf16.mxu0 0
      %690 = vmatpush1.bf16.msra.mxu0 %v673
      %691 = vmatprep.subr.bf16.mxu0 0
      %692 = vmatpush2.bf16.msra.mxu0 0
      %693 = vmatprep.subr.bf16.mxu0 0
      %694 = vmatpush2.bf16.msra.mxu0 0
      %695 = vmatprep.subr.bf16.mxu0 0
      %696 = vmatpush2.bf16.msra.mxu0 0
      %697 = vmatprep.subr.bf16.mxu0 0
      %698 = vmatpush2.bf16.msra.mxu0 0
      %699 = vmatprep.subr.bf16.mxu0 0
      %700 = vmatpush2.bf16.msra.mxu0 0
      %701 = vmatprep.subr.bf16.mxu0 0
      %702 = vmatpush2.bf16.msra.mxu0 0
      %703 = vmatprep.subr.bf16.mxu0 0
      %704 = vmatpush2.bf16.msra.mxu0 0
      %705 = vmatprep.subr.bf16.mxu0 0
      %706 = vmatpush2.bf16.msra.mxu0 0
      %707 = vmatprep.mubr.bf16.mxu0 0
      %708 = vmatmul.mubr.bf16.gmra.mxu0 %v667
      %v709 = vpop.f32.mrf.mxu0
      %v710 = vadd.f32 0.0, %v709
      %v711 = vpop.f32.mrf.mxu0
      %v712 = vpop.f32.mrf.mxu0
      %v713 = vadd.f32 0.0, %v712
      %v714 = vpop.f32.mrf.mxu0
      %715 = vmatprep.mubr.bf16.mxu0 0
      %716 = vmatmul.mubr.bf16.gmra.mxu0 %v670
      %v717 = vpop.f32.mrf.mxu0
      %v718 = vadd.f32 0.0, %v717
      %v719 = vpop.f32.mrf.mxu0
      %v720 = vpop.f32.mrf.mxu0
      %v721 = vadd.f32 0.0, %v720
      %v722 = vpop.f32.mrf.mxu0
      %723 = vdwg.mxu0
      %v724 = vadd.f32 %v621, %v710
      %v725 = vadd.f32 %v624, %v713
      %v726 = vadd.f32 %v629, %v718
      %v727 = vadd.f32 %v632, %v721
      %s728 = scalar_lea.vmem %s3, 6
      %v729 = vld [vmem:[%s728] sm:$0x3]
      %v731 = vunpack.c.l.b16 %v435
      %v732 = vpack.c.b16 %v573, %v572
      %v733 = vpack.c.b16 %v731, %v574
      %v735 = vsel %vm507, %v732, 0
      %v738 = vsel %vm507, %v733, 0
      %v741 = vsel %vm514, %v729, 0
      %743 = vmatprep.subr.bf16.mxu0 0
      %744 = vmatpush1.bf16.msra.mxu0 0
      %745 = vmatprep.subr.bf16.mxu0 0
      %746 = vmatpush1.bf16.msra.mxu0 0
      %747 = vmatprep.subr.bf16.mxu0 0
      %748 = vmatpush1.bf16.msra.mxu0 0
      %749 = vmatprep.subr.bf16.mxu0 0
      %750 = vmatpush1.bf16.msra.mxu0 0
      %751 = vmatprep.subr.bf16.mxu0 0
      %752 = vmatpush1.bf16.msra.mxu0 0
      %753 = vmatprep.subr.bf16.mxu0 0
      %754 = vmatpush1.bf16.msra.mxu0 0
      %755 = vmatprep.subr.bf16.mxu0 0
      %756 = vmatpush1.bf16.msra.mxu0 0
      %757 = vmatprep.subr.bf16.mxu0 0
      %758 = vmatpush1.bf16.msra.mxu0 %v741
      %759 = vmatprep.subr.bf16.mxu0 0
      %760 = vmatpush2.bf16.msra.mxu0 0
      %761 = vmatprep.subr.bf16.mxu0 0
      %762 = vmatpush2.bf16.msra.mxu0 0
      %763 = vmatprep.subr.bf16.mxu0 0
      %764 = vmatpush2.bf16.msra.mxu0 0
      %765 = vmatprep.subr.bf16.mxu0 0
      %766 = vmatpush2.bf16.msra.mxu0 0
      %767 = vmatprep.subr.bf16.mxu0 0
      %768 = vmatpush2.bf16.msra.mxu0 0
      %769 = vmatprep.subr.bf16.mxu0 0
      %770 = vmatpush2.bf16.msra.mxu0 0
      %771 = vmatprep.subr.bf16.mxu0 0
      %772 = vmatpush2.bf16.msra.mxu0 0
      %773 = vmatprep.subr.bf16.mxu0 0
      %774 = vmatpush2.bf16.msra.mxu0 0
      %775 = vmatprep.mubr.bf16.mxu0 0
      %776 = vmatmul.mubr.bf16.gmra.mxu0 %v735
      %v777 = vpop.f32.mrf.mxu0
      %v778 = vadd.f32 0.0, %v777
      %v779 = vpop.f32.mrf.mxu0
      %v780 = vpop.f32.mrf.mxu0
      %v781 = vadd.f32 0.0, %v780
      %v782 = vpop.f32.mrf.mxu0
      %783 = vmatprep.mubr.bf16.mxu0 0
      %784 = vmatmul.mubr.bf16.gmra.mxu0 %v738
      %v785 = vpop.f32.mrf.mxu0
      %v786 = vadd.f32 0.0, %v785
      %v787 = vpop.f32.mrf.mxu0
      %v788 = vpop.f32.mrf.mxu0
      %v789 = vadd.f32 0.0, %v788
      %v790 = vpop.f32.mrf.mxu0
      %791 = vdwg.mxu0
      %v792 = vadd.f32 %v724, %v778
      %v793 = vadd.f32 %v725, %v781
      %v794 = vadd.f32 %v726, %v786
      %v795 = vadd.f32 %v727, %v789
      %v797 = vshrl.u32 %v435, 16
      %v799 = vrot.slane %v797, 4
      %v800 = vshll.u32 %v435, 16
      %v802 = vrot.slane %v800, 5
      %v803 = vor.u32 %v799, %v802
      %v804 = vrot.slane %v803, 4
      %v806 = vshll.u32 %v436, 16
      %v808 = vrot.slane %v806, 5
      %v809 = vsel %vm442, %v804, %v808
      %s810 = scalar_lea.vmem %s3, 8
      %v811 = vld [vmem:[%s810] sm:$0x3]
      %v812 = vunpack.c.l.b16 %v809
      %v813 = vpack.c.b16 %v503, %v502
      %v814 = vpack.c.b16 %v812, %v504
      %v816 = vsel %vm507, %v813, 0
      %v819 = vsel %vm507, %v814, 0
      %v822 = vsel %vm514, %v811, 0
      %824 = vmatprep.subr.bf16.mxu0 0
      %825 = vmatpush1.bf16.msra.mxu0 0
      %826 = vmatprep.subr.bf16.mxu0 0
      %827 = vmatpush1.bf16.msra.mxu0 0
      %828 = vmatprep.subr.bf16.mxu0 0
      %829 = vmatpush1.bf16.msra.mxu0 0
      %830 = vmatprep.subr.bf16.mxu0 0
      %831 = vmatpush1.bf16.msra.mxu0 0
      %832 = vmatprep.subr.bf16.mxu0 0
      %833 = vmatpush1.bf16.msra.mxu0 0
      %834 = vmatprep.subr.bf16.mxu0 0
      %835 = vmatpush1.bf16.msra.mxu0 0
      %836 = vmatprep.subr.bf16.mxu0 0
      %837 = vmatpush1.bf16.msra.mxu0 0
      %838 = vmatprep.subr.bf16.mxu0 0
      %839 = vmatpush1.bf16.msra.mxu0 %v822
      %840 = vmatprep.subr.bf16.mxu0 0
      %841 = vmatpush2.bf16.msra.mxu0 0
      %842 = vmatprep.subr.bf16.mxu0 0
      %843 = vmatpush2.bf16.msra.mxu0 0
      %844 = vmatprep.subr.bf16.mxu0 0
      %845 = vmatpush2.bf16.msra.mxu0 0
      %846 = vmatprep.subr.bf16.mxu0 0
      %847 = vmatpush2.bf16.msra.mxu0 0
      %848 = vmatprep.subr.bf16.mxu0 0
      %849 = vmatpush2.bf16.msra.mxu0 0
      %850 = vmatprep.subr.bf16.mxu0 0
      %851 = vmatpush2.bf16.msra.mxu0 0
      %852 = vmatprep.subr.bf16.mxu0 0
      %853 = vmatpush2.bf16.msra.mxu0 0
      %854 = vmatprep.subr.bf16.mxu0 0
      %855 = vmatpush2.bf16.msra.mxu0 0
      %856 = vmatprep.mubr.bf16.mxu0 0
      %857 = vmatmul.mubr.bf16.gmra.mxu0 %v816
      %v858 = vpop.f32.mrf.mxu0
      %v859 = vadd.f32 0.0, %v858
      %v860 = vpop.f32.mrf.mxu0
      %v861 = vpop.f32.mrf.mxu0
      %v862 = vadd.f32 0.0, %v861
      %v863 = vpop.f32.mrf.mxu0
      %864 = vmatprep.mubr.bf16.mxu0 0
      %865 = vmatmul.mubr.bf16.gmra.mxu0 %v819
      %v866 = vpop.f32.mrf.mxu0
      %v867 = vadd.f32 0.0, %v866
      %v868 = vpop.f32.mrf.mxu0
      %v869 = vpop.f32.mrf.mxu0
      %v870 = vadd.f32 0.0, %v869
      %v871 = vpop.f32.mrf.mxu0
      %872 = vdwg.mxu0
      %v873 = vadd.f32 %v792, %v859
      %v874 = vadd.f32 %v793, %v862
      %v875 = vadd.f32 %v794, %v867
      %v876 = vadd.f32 %v795, %v870
      %v878 = vrot.slane %v435, 5
      %v879 = vrot.slane %v878, 4
      %v880 = vrot.slane %v436, 5
      %v881 = vsel %vm641, %v879, %v880
      %s882 = scalar_lea.vmem %s3, 10
      %v883 = vld [vmem:[%s882] sm:$0x3]
      %v884 = vunpack.c.l.b16 %v881
      %v885 = vpack.c.b16 %v662, %v661
      %v886 = vpack.c.b16 %v884, %v663
      %v888 = vsel %vm507, %v885, 0
      %v891 = vsel %vm507, %v886, 0
      %v894 = vsel %vm514, %v883, 0
      %896 = vmatprep.subr.bf16.mxu0 0
      %897 = vmatpush1.bf16.msra.mxu0 0
      %898 = vmatprep.subr.bf16.mxu0 0
      %899 = vmatpush1.bf16.msra.mxu0 0
      %900 = vmatprep.subr.bf16.mxu0 0
      %901 = vmatpush1.bf16.msra.mxu0 0
      %902 = vmatprep.subr.bf16.mxu0 0
      %903 = vmatpush1.bf16.msra.mxu0 0
      %904 = vmatprep.subr.bf16.mxu0 0
      %905 = vmatpush1.bf16.msra.mxu0 0
      %906 = vmatprep.subr.bf16.mxu0 0
      %907 = vmatpush1.bf16.msra.mxu0 0
      %908 = vmatprep.subr.bf16.mxu0 0
      %909 = vmatpush1.bf16.msra.mxu0 0
      %910 = vmatprep.subr.bf16.mxu0 0
      %911 = vmatpush1.bf16.msra.mxu0 %v894
      %912 = vmatprep.subr.bf16.mxu0 0
      %913 = vmatpush2.bf16.msra.mxu0 0
      %914 = vmatprep.subr.bf16.mxu0 0
      %915 = vmatpush2.bf16.msra.mxu0 0
      %916 = vmatprep.subr.bf16.mxu0 0
      %917 = vmatpush2.bf16.msra.mxu0 0
      %918 = vmatprep.subr.bf16.mxu0 0
      %919 = vmatpush2.bf16.msra.mxu0 0
      %920 = vmatprep.subr.bf16.mxu0 0
      %921 = vmatpush2.bf16.msra.mxu0 0
      %922 = vmatprep.subr.bf16.mxu0 0
      %923 = vmatpush2.bf16.msra.mxu0 0
      %924 = vmatprep.subr.bf16.mxu0 0
      %925 = vmatpush2.bf16.msra.mxu0 0
      %926 = vmatprep.subr.bf16.mxu0 0
      %927 = vmatpush2.bf16.msra.mxu0 0
      %928 = vmatprep.mubr.bf16.mxu0 0
      %929 = vmatmul.mubr.bf16.gmra.mxu0 %v888
      %v930 = vpop.f32.mrf.mxu0
      %v931 = vadd.f32 0.0, %v930
      %v932 = vpop.f32.mrf.mxu0
      %v933 = vpop.f32.mrf.mxu0
      %v934 = vadd.f32 0.0, %v933
      %v935 = vpop.f32.mrf.mxu0
      %936 = vmatprep.mubr.bf16.mxu0 0
      %937 = vmatmul.mubr.bf16.gmra.mxu0 %v891
      %v938 = vpop.f32.mrf.mxu0
      %v939 = vadd.f32 0.0, %v938
      %v940 = vpop.f32.mrf.mxu0
      %v941 = vpop.f32.mrf.mxu0
      %v942 = vadd.f32 0.0, %v941
      %v943 = vpop.f32.mrf.mxu0
      %944 = vdwg.mxu0
      %v945 = vadd.f32 %v873, %v931
      %v946 = vadd.f32 %v874, %v934
      %v947 = vadd.f32 %v875, %v939
      %v948 = vadd.f32 %v876, %v942
      %s949 = scalar_lea.vmem %s3, 12
      %v950 = vld [vmem:[%s949] sm:$0x3]
      %v952 = vunpack.c.l.b16 %v437
      %v953 = vpack.c.b16 %v952, %v731
      %v955 = vsel %vm507, %v953, 0
      %v958 = vsel %vm514, %v950, 0
      %960 = vmatprep.subr.bf16.mxu0 0
      %961 = vmatpush1.bf16.msra.mxu0 0
      %962 = vmatprep.subr.bf16.mxu0 0
      %963 = vmatpush1.bf16.msra.mxu0 0
      %964 = vmatprep.subr.bf16.mxu0 0
      %965 = vmatpush1.bf16.msra.mxu0 0
      %966 = vmatprep.subr.bf16.mxu0 0
      %967 = vmatpush1.bf16.msra.mxu0 0
      %968 = vmatprep.subr.bf16.mxu0 0
      %969 = vmatpush1.bf16.msra.mxu0 0
      %970 = vmatprep.subr.bf16.mxu0 0
      %971 = vmatpush1.bf16.msra.mxu0 0
      %972 = vmatprep.subr.bf16.mxu0 0
      %973 = vmatpush1.bf16.msra.mxu0 0
      %974 = vmatprep.subr.bf16.mxu0 0
      %975 = vmatpush1.bf16.msra.mxu0 %v958
      %976 = vmatprep.subr.bf16.mxu0 0
      %977 = vmatpush2.bf16.msra.mxu0 0
      %978 = vmatprep.subr.bf16.mxu0 0
      %979 = vmatpush2.bf16.msra.mxu0 0
      %980 = vmatprep.subr.bf16.mxu0 0
      %981 = vmatpush2.bf16.msra.mxu0 0
      %982 = vmatprep.subr.bf16.mxu0 0
      %983 = vmatpush2.bf16.msra.mxu0 0
      %984 = vmatprep.subr.bf16.mxu0 0
      %985 = vmatpush2.bf16.msra.mxu0 0
      %986 = vmatprep.subr.bf16.mxu0 0
      %987 = vmatpush2.bf16.msra.mxu0 0
      %988 = vmatprep.subr.bf16.mxu0 0
      %989 = vmatpush2.bf16.msra.mxu0 0
      %990 = vmatprep.subr.bf16.mxu0 0
      %991 = vmatpush2.bf16.msra.mxu0 0
      %992 = vmatprep.mubr.bf16.mxu0 0
      %993 = vmatmul.mubr.bf16.gmra.mxu0 %v581
      %v994 = vpop.f32.mrf.mxu0
      %v995 = vadd.f32 0.0, %v994
      %v996 = vpop.f32.mrf.mxu0
      %v997 = vpop.f32.mrf.mxu0
      %v998 = vadd.f32 0.0, %v997
      %v999 = vpop.f32.mrf.mxu0
      %1000 = vmatprep.mubr.bf16.mxu0 0
      %1001 = vmatmul.mubr.bf16.gmra.mxu0 %v955
      %v1002 = vpop.f32.mrf.mxu0
      %v1003 = vadd.f32 0.0, %v1002
      %v1004 = vpop.f32.mrf.mxu0
      %v1005 = vpop.f32.mrf.mxu0
      %v1006 = vadd.f32 0.0, %v1005
      %v1007 = vpop.f32.mrf.mxu0
      %1008 = vdwg.mxu0
      %v1009 = vadd.f32 %v945, %v995
      %v1010 = vadd.f32 %v946, %v998
      %v1011 = vadd.f32 %v947, %v1003
      %v1012 = vadd.f32 %v948, %v1006
      %v1014 = vshrl.u32 %v437, 16
      %v1016 = vrot.slane %v1014, 4
      %v1017 = vshll.u32 %v437, 16
      %v1019 = vrot.slane %v1017, 5
      %v1020 = vor.u32 %v1016, %v1019
      %v1021 = vrot.slane %v1020, 4
      %v1023 = vshll.u32 %v438, 16
      %v1025 = vrot.slane %v1023, 5
      %v1026 = vsel %vm442, %v1021, %v1025
      %s1027 = scalar_lea.vmem %s3, 14
      %v1028 = vld [vmem:[%s1027] sm:$0x3]
      %v1029 = vunpack.c.l.b16 %v1026
      %v1030 = vpack.c.b16 %v1029, %v812
      %v1032 = vsel %vm507, %v1030, 0
      %v1035 = vsel %vm514, %v1028, 0
      %1037 = vmatprep.subr.bf16.mxu0 0
      %1038 = vmatpush1.bf16.msra.mxu0 0
      %1039 = vmatprep.subr.bf16.mxu0 0
      %1040 = vmatpush1.bf16.msra.mxu0 0
      %1041 = vmatprep.subr.bf16.mxu0 0
      %1042 = vmatpush1.bf16.msra.mxu0 0
      %1043 = vmatprep.subr.bf16.mxu0 0
      %1044 = vmatpush1.bf16.msra.mxu0 0
      %1045 = vmatprep.subr.bf16.mxu0 0
      %1046 = vmatpush1.bf16.msra.mxu0 0
      %1047 = vmatprep.subr.bf16.mxu0 0
      %1048 = vmatpush1.bf16.msra.mxu0 0
      %1049 = vmatprep.subr.bf16.mxu0 0
      %1050 = vmatpush1.bf16.msra.mxu0 0
      %1051 = vmatprep.subr.bf16.mxu0 0
      %1052 = vmatpush1.bf16.msra.mxu0 %v1035
      %1053 = vmatprep.subr.bf16.mxu0 0
      %1054 = vmatpush2.bf16.msra.mxu0 0
      %1055 = vmatprep.subr.bf16.mxu0 0
      %1056 = vmatpush2.bf16.msra.mxu0 0
      %1057 = vmatprep.subr.bf16.mxu0 0
      %1058 = vmatpush2.bf16.msra.mxu0 0
      %1059 = vmatprep.subr.bf16.mxu0 0
      %1060 = vmatpush2.bf16.msra.mxu0 0
      %1061 = vmatprep.subr.bf16.mxu0 0
      %1062 = vmatpush2.bf16.msra.mxu0 0
      %1063 = vmatprep.subr.bf16.mxu0 0
      %1064 = vmatpush2.bf16.msra.mxu0 0
      %1065 = vmatprep.subr.bf16.mxu0 0
      %1066 = vmatpush2.bf16.msra.mxu0 0
      %1067 = vmatprep.subr.bf16.mxu0 0
      %1068 = vmatpush2.bf16.msra.mxu0 0
      %1069 = vmatprep.mubr.bf16.mxu0 0
      %1070 = vmatmul.mubr.bf16.gmra.mxu0 %v512
      %v1071 = vpop.f32.mrf.mxu0
      %v1072 = vadd.f32 0.0, %v1071
      %v1073 = vpop.f32.mrf.mxu0
      %v1074 = vpop.f32.mrf.mxu0
      %v1075 = vadd.f32 0.0, %v1074
      %v1076 = vpop.f32.mrf.mxu0
      %1077 = vmatprep.mubr.bf16.mxu0 0
      %1078 = vmatmul.mubr.bf16.gmra.mxu0 %v1032
      %v1079 = vpop.f32.mrf.mxu0
      %v1080 = vadd.f32 0.0, %v1079
      %v1081 = vpop.f32.mrf.mxu0
      %v1082 = vpop.f32.mrf.mxu0
      %v1083 = vadd.f32 0.0, %v1082
      %v1084 = vpop.f32.mrf.mxu0
      %1085 = vdwg.mxu0
      %v1086 = vadd.f32 %v1009, %v1072
      %v1087 = vadd.f32 %v1010, %v1075
      %v1088 = vadd.f32 %v1011, %v1080
      %v1089 = vadd.f32 %v1012, %v1083
      %v1091 = vrot.slane %v437, 5
      %v1092 = vrot.slane %v1091, 4
      %v1093 = vrot.slane %v438, 5
      %v1094 = vsel %vm641, %v1092, %v1093
      %s1095 = scalar_lea.vmem %s3, 16
      %v1096 = vld [vmem:[%s1095] sm:$0x3]
      %v1097 = vunpack.c.l.b16 %v1094
      %v1098 = vpack.c.b16 %v1097, %v884
      %v1100 = vsel %vm507, %v1098, 0
      %v1103 = vsel %vm514, %v1096, 0
      %1105 = vmatprep.subr.bf16.mxu0 0
      %1106 = vmatpush1.bf16.msra.mxu0 0
      %1107 = vmatprep.subr.bf16.mxu0 0
      %1108 = vmatpush1.bf16.msra.mxu0 0
      %1109 = vmatprep.subr.bf16.mxu0 0
      %1110 = vmatpush1.bf16.msra.mxu0 0
      %1111 = vmatprep.subr.bf16.mxu0 0
      %1112 = vmatpush1.bf16.msra.mxu0 0
      %1113 = vmatprep.subr.bf16.mxu0 0
      %1114 = vmatpush1.bf16.msra.mxu0 0
      %1115 = vmatprep.subr.bf16.mxu0 0
      %1116 = vmatpush1.bf16.msra.mxu0 0
      %1117 = vmatprep.subr.bf16.mxu0 0
      %1118 = vmatpush1.bf16.msra.mxu0 0
      %1119 = vmatprep.subr.bf16.mxu0 0
      %1120 = vmatpush1.bf16.msra.mxu0 %v1103
      %1121 = vmatprep.subr.bf16.mxu0 0
      %1122 = vmatpush2.bf16.msra.mxu0 0
      %1123 = vmatprep.subr.bf16.mxu0 0
      %1124 = vmatpush2.bf16.msra.mxu0 0
      %1125 = vmatprep.subr.bf16.mxu0 0
      %1126 = vmatpush2.bf16.msra.mxu0 0
      %1127 = vmatprep.subr.bf16.mxu0 0
      %1128 = vmatpush2.bf16.msra.mxu0 0
      %1129 = vmatprep.subr.bf16.mxu0 0
      %1130 = vmatpush2.bf16.msra.mxu0 0
      %1131 = vmatprep.subr.bf16.mxu0 0
      %1132 = vmatpush2.bf16.msra.mxu0 0
      %1133 = vmatprep.subr.bf16.mxu0 0
      %1134 = vmatpush2.bf16.msra.mxu0 0
      %1135 = vmatprep.subr.bf16.mxu0 0
      %1136 = vmatpush2.bf16.msra.mxu0 0
      %1137 = vmatprep.mubr.bf16.mxu0 0
      %1138 = vmatmul.mubr.bf16.gmra.mxu0 %v670
      %v1139 = vpop.f32.mrf.mxu0
      %v1140 = vadd.f32 0.0, %v1139
      %v1141 = vpop.f32.mrf.mxu0
      %v1142 = vpop.f32.mrf.mxu0
      %v1143 = vadd.f32 0.0, %v1142
      %v1144 = vpop.f32.mrf.mxu0
      %1145 = vmatprep.mubr.bf16.mxu0 0
      %1146 = vmatmul.mubr.bf16.gmra.mxu0 %v1100
      %v1147 = vpop.f32.mrf.mxu0
      %v1148 = vadd.f32 0.0, %v1147
      %v1149 = vpop.f32.mrf.mxu0
      %v1150 = vpop.f32.mrf.mxu0
      %v1151 = vadd.f32 0.0, %v1150
      %v1152 = vpop.f32.mrf.mxu0
      %1153 = vdwg.mxu0
      %v1154 = vadd.f32 %v1086, %v1140
      %v1155 = vadd.f32 %v1087, %v1143
      %v1156 = vadd.f32 %v1088, %v1148
      %v1157 = vadd.f32 %v1089, %v1151
      %v1158 = vld [vmem:[%s4] sm:$0x1]
      %v1160 = vlaneseq
      %v1161 = vshrl.u32 %v1160, 7
      %v1162 = vsub.s32 0, %v1161
      %v1163 = vrot.slane %v1158, %v1162
      %v1165 = vadd.f32 %v1154, %v1163
      %v1166 = vadd.f32 %v1155, %v1163
      %v1167 = vadd.f32 %v1156, %v1163
      %v1168 = vadd.f32 %v1157, %v1163
      %vm1169 = vcmask 64512
      %1170 = vst.msk [vmem:[%s420] sm:$0xff] %vm1169, %v1165
      %1171 = vst.msk [vmem:[%s420 + $0x8] sm:$0xff] %vm1169, %v1166
      %1172 = vst.msk [vmem:[%s420 + $0x10] sm:$0xff] %vm1169, %v1167
      %1173 = vst.msk [vmem:[%s420 + $0x18] sm:$0xff] %vm1169, %v1168
      %v1174 = vsel %vm1169, %v1165, 0.0
      %v1175 = vsel %vm1169, %v1166, 0.0
      %v1176 = vadd.f32 %v1174, %v1175
      %v1177 = vsel %vm1169, %v1167, 0.0
      %v1178 = vadd.f32 %v1176, %v1177
      %v1179 = vsel %vm1169, %v1168, 0.0
      %v1180 = vadd.f32 %v1178, %v1179
      %v1181 = vrot.slane %v1180, 4
      %v1182 = vadd.f32 %v1180, %v1181
      %v1183 = vrot.slane %v1182, 2
      %v1184 = vadd.f32 %v1182, %v1183
      %v1185 = vrot.slane %v1184, 1
      %v1186 = vadd.f32 %v1184, %v1185
      %v1187 = vmul.f32 %v1165, %v1165
      %v1188 = vmul.f32 %v1166, %v1166
      %v1189 = vmul.f32 %v1167, %v1167
      %v1190 = vmul.f32 %v1168, %v1168
      %v1191 = vsel %vm1169, %v1187, 0.0
      %v1192 = vsel %vm1169, %v1188, 0.0
      %v1193 = vadd.f32 %v1191, %v1192
      %v1194 = vsel %vm1169, %v1189, 0.0
      %v1195 = vadd.f32 %v1193, %v1194
      %v1196 = vsel %vm1169, %v1190, 0.0
      %v1197 = vadd.f32 %v1195, %v1196
      %v1198 = vrot.slane %v1197, 4
      %v1199 = vadd.f32 %v1197, %v1198
      %v1200 = vrot.slane %v1199, 2
      %v1201 = vadd.f32 %v1199, %v1200
      %v1202 = vrot.slane %v1201, 1
      %v1203 = vadd.f32 %v1201, %v1202
      %vm1204 = vcmask 1040384
      %v1205 = vsel %vm1204, %v1186, %v1203
      %p1206 = scmp.eq.s32.totalorder %s23, 0
      // Predicated region
      $region41: #{_lambda_.6} parent=39 // pred_check
        %p1207 = pneg %p1206
      $region42: #{_lambda_.6} parent=39 // pred_check_branch
        %1209 = sbr.rel (%p1207) target = $region44
      $region43: #{_lambda_.6} parent=39 // pred_region
        %vm1210 = vcmask 58368
        %1211 = vst.msk [vmem:[%s425] sm:$0x3] %vm1210, 0.0
      $region44: #{_lambda_.6} parent=39 // pred_fallthru
        _
      %v1212 = vld [vmem:[%s425] sm:$0x3]
      %v1213 = vadd.f32 %v1212, %v1205
      %vm1214 = vcmask 58368
      %1215 = vst.msk [vmem:[%s425] sm:$0x3] %vm1214, %v1213
      %s1216 = smul.u32 4, %s23
      %p1217 = scmp.lt.s32.totalorder %s22, 1
      %s1218 = scalar_select %p1217, %s22, 1
      %p1219 = scmp.lt.s32.totalorder %s1216, 7
      %s1220 = scalar_select %p1219, %s1216, 7
      %s1221 = smul.addr %s1218, 8
      %s1222 = sadd.s32 %s1220, %s1221
      %s1223 = smul.addr %s1222, 8
      %s1224 = scalar_lea.vmem %s5, %s1223
      %p1225 = scmp.lt.s32.totalorder %s22, 1
      %s1226 = scalar_select %p1225, %s22, 1
      %s1227 = smul.addr %s1226, 2
      %s1228 = scalar_lea.vmem %s6, %s1227
      // Predicated region
      $region45: #{_lambda_.6} parent=39 // pred_check
        %p1229 = pneg %p184
      $region46: #{_lambda_.6} parent=39 // pred_check_branch
        %1231 = sbr.rel (%p1229) target = $region48
      $region47: #{_lambda_.6} parent=39 // pred_region
        %s1232 = smul.u32 4, %s23
      $region48: #{_lambda_.6} parent=39 // pred_fallthru
        _
      // Predicated region
      $region49: #{_lambda_.6} parent=39 // pred_check
        %p1233 = pneg %p210
      $region50: #{_lambda_.6} parent=39 // pred_check_branch
        %1235 = sbr.rel (%p1233) target = $region52
      $region51: #{_lambda_.6} parent=39 // pred_region
        _
      $region52: #{_lambda_.6} parent=39 // pred_fallthru
        _
    $region40: #{_lambda_.6} parent=5 // pred_fallthru
      _
    %p1236 = scmp.le.s32.totalorder 2, %s13
    // Predicated region
    $region53: #{_lambda_.6} parent=5 // pred_check
      %p1237 = pneg %p1236
    $region54: #{_lambda_.6} parent=5 // pred_check_branch
      %1239 = sbr.rel (%p1237) target = $region56
    $region55: #{_lambda_.6} parent=5 // pred_region
      %s1240 = ssub.s32 %s13, 2
      // Predicated region
      $region57: #{_lambda_.6} parent=55 // pred_check
        %p1241 = pneg %p190
      $region58: #{_lambda_.6} parent=55 // pred_check_branch
        %1243 = sbr.rel (%p1241) target = $region60
      $region59: #{_lambda_.6} parent=55 // pred_region
        %s1244 = smul.u32 4, %s25
        %p1245 = scmp.lt.s32.totalorder %s24, 1
        %s1246 = scalar_select %p1245, %s24, 1
        %p1247 = scmp.lt.s32.totalorder %s1244, 7
        %s1248 = scalar_select %p1247, %s1244, 7
        %s1249 = smul.addr %s1246, 8
        %s1250 = sadd.s32 %s1248, %s1249
        %s1251 = smul.addr %s1250, 8
        %s1252 = scalar_lea.vmem %s5, %s1251
      $region60: #{_lambda_.6} parent=55 // pred_fallthru
        _
      // Predicated region
      $region61: #{_lambda_.6} parent=55 // pred_check
        %p1253 = pneg %p216
      $region62: #{_lambda_.6} parent=55 // pred_check_branch
        %1255 = sbr.rel (%p1253) target = $region64
      $region63: #{_lambda_.6} parent=55 // pred_region
        %p1256 = scmp.lt.s32.totalorder %s24, 1
        %s1257 = scalar_select %p1256, %s24, 1
        %s1258 = smul.addr %s1257, 2
        %s1259 = scalar_lea.vmem %s6, %s1258
      $region64: #{_lambda_.6} parent=55 // pred_fallthru
        _
    $region56: #{_lambda_.6} parent=5 // pred_fallthru
      _
  $region6: #{_lambda_.6} parent=0 // loop_footer
    %s17 = sadd.s32 1, %s13
  $region7: #{_lambda_.6} parent=0 // loop_footer_branch
    %12 = sbr.rel target = $region3
  $region8: #{_lambda_.6} parent=0 // loop_exit
    _

// kernel: _lambda_.8
$region0: #{_lambda_.8}
  #allocation0 [shape = 'u32[]', space=smem, size = 0x4, offset = 0x4, fixed_abs, tag = 'smem constant byte address 0x4 - core index']
  #allocation1 [shape = 'u32[144,128]{1,0:T(1,128)}', space=vmem, size = 0x12000, scoped, tag = 'internal scratch']
  %s0 = inlined_call_operand.vmem [shape: bf16[2,10,10,8], index: 0, kind: input, shape index: {}, may-alias: {0,1,2}]
  %s1 = inlined_call_operand.vmem [shape: bf16[2,10,10,8], index: 1, kind: input, shape index: {}, may-alias: {0,1,2}]
  %s2 = inlined_call_operand.vmem [shape: bf16[2,10,10,8], index: 2, kind: input, shape index: {}, may-alias: {0,1,2}]
  %s3 = inlined_call_operand.vmem [shape: bf16[3,3,8,8], index: 3, kind: input, shape index: {}]
  %s4 = inlined_call_operand.vmem [shape: f32[1,8], index: 4, kind: input, shape index: {}]
  %s5 = inlined_call_operand.vmem [shape: f32[2,8,8,8], index: 5, kind: output, shape index: {0}]
  %s6 = inlined_call_operand.vmem [shape: f32[2,2,8], index: 6, kind: output, shape index: {1}]
  %7 = xla_tuple %s5, %s6
  %s8 = sld [smem:[#allocation0]]
  $region65: #{_lambda_.8} parent=0
    _
  %s10 = ssub.s32 1, %s8
  %s11 = scalar_select 0, %s10, %s8
  loop: start=0, step=1, limit=6
  $region2: #{_lambda_.8} parent=0 // loop_pre_header
    _
  $region3: #{_lambda_.8} parent=0 // loop_header
    %s13 = sphi 0, %s17
    %p14 = scmp.ge.s32.totalorder %s13, 6
    %s20 = sphi 0, %s32
    %s21 = sphi 0, %s28
    %s22 = sphi 0, %s20
    %s23 = sphi 0, %s21
    %s24 = sphi 0, %s22
    %s25 = sphi 0, %s23
    %s37 = sphi 0, %s39
    %s40 = sphi 0, %s37
    %s41 = sphi 0, %s40
    %s57 = sphi 0, %s41
    %s69 = sphi 0, %s71
    %s72 = sphi 0, %s69
    %s73 = sphi 0, %s72
    %s89 = sphi 0, %s73
    %s101 = sphi 0, %s103
    %s104 = sphi 0, %s101
    %s105 = sphi 0, %s104
    %s121 = sphi 0, %s105
    %s125 = sphi 0, %s125
    %s127 = sphi 0, %s125
    %s128 = sphi 0, %s127
    %s142 = sphi 0, %s128
    %s146 = sphi 0, %s146
    %s148 = sphi 0, %s146
    %s149 = sphi 0, %s148
    %s163 = sphi 0, %s149
    %s171 = sphi 0, %s173
    %s174 = sphi 0, %s171
    %s175 = sphi 0, %s174
    %s191 = sphi 0, %s175
    %s197 = sphi 0, %s199
    %s200 = sphi 0, %s197
    %s201 = sphi 0, %s200
    %s217 = sphi 0, %s201
  $region4: #{_lambda_.8} parent=0 // loop_header_branch
    %16 = sbr.rel (%p14) target = $region8
  $region5: #{_lambda_.8} parent=0 // loop_body
    %s18 = ssub.s32 %s13, 1
    %s19 = ssub.s32 %s13, 2
    %s26 = sadd.s32 1, %s21
    %p27 = scmp.ge.s32.totalorder %s26, 2
    %s28 = scalar_select %p27, 0, %s26
    %s29 = sadd.s32 1, %s20
    %s30 = scalar_select %p27, %s29, %s20
    %p31 = scmp.ge.s32.totalorder %s30, 2
    %s32 = scalar_select %p31, 0, %s30
    %s33 = ssub.s32 %s20, %s32
    %s34 = ssub.s32 %s21, %s28
    %s35 = sor.u32 %s33, %s34
    %p36 = scmp.eq.s32.totalorder %s35, 0
    %s38 = sadd.s32 %s37, 1
    %s39 = scalar_select %p36, %s37, %s38
    %p42 = pneg %p36
    %p43 = scmp.eq.s32.totalorder %s13, 3
    %p44 = por %p42, %p43
    %p45 = scmp.ne.s32.totalorder %s37, %s40
    %p46 = scmp.eq.s32.totalorder %s13, 0
    %p47 = por %p45, %p46
    %p48 = scmp.ne.s32.totalorder %s37, %s40
    %p49 = scmp.eq.s32.totalorder %s18, 3
    %p50 = por %p48, %p49
    %p51 = scmp.ne.s32.totalorder %s40, %s41
    %p52 = scmp.eq.s32.totalorder %s18, 0
    %p53 = por %p51, %p52
    %p54 = scmp.ne.s32.totalorder %s40, %s41
    %p55 = scmp.eq.s32.totalorder %s19, 3
    %p56 = por %p54, %p55
    %p58 = scmp.ne.s32.totalorder %s41, %s57
    %p59 = scmp.eq.s32.totalorder %s19, 0
    %p60 = por %p58, %p59
    %s61 = smul.u32 %s21, 4
    %s62 = sadd.s32 %s61, 4
    %s63 = smul.u32 %s28, 4
    %s64 = sadd.s32 %s63, 4
    %s65 = ssub.s32 %s20, %s32
    %s66 = ssub.s32 %s62, %s64
    %s67 = sor.u32 %s65, %s66
    %p68 = scmp.eq.s32.totalorder %s67, 0
    %s70 = sadd.s32 %s69, 1
    %s71 = scalar_select %p68, %s69, %s70
    %p74 = pneg %p68
    %p75 = scmp.eq.s32.totalorder %s13, 3
    %p76 = por %p74, %p75
    %p77 = scmp.ne.s32.totalorder %s69, %s72
    %p78 = scmp.eq.s32.totalorder %s13, 0
    %p79 = por %p77, %p78
    %p80 = scmp.ne.s32.totalorder %s69, %s72
    %p81 = scmp.eq.s32.totalorder %s18, 3
    %p82 = por %p80, %p81
    %p83 = scmp.ne.s32.totalorder %s72, %s73
    %p84 = scmp.eq.s32.totalorder %s18, 0
    %p85 = por %p83, %p84
    %p86 = scmp.ne.s32.totalorder %s72, %s73
    %p87 = scmp.eq.s32.totalorder %s19, 3
    %p88 = por %p86, %p87
    %p90 = scmp.ne.s32.totalorder %s73, %s89
    %p91 = scmp.eq.s32.totalorder %s19, 0
    %p92 = por %p90, %p91
    %s93 = smul.u32 %s21, 4
    %s94 = sadd.s32 %s93, 5
    %s95 = smul.u32 %s28, 4
    %s96 = sadd.s32 %s95, 5
    %s97 = ssub.s32 %s20, %s32
    %s98 = ssub.s32 %s94, %s96
    %s99 = sor.u32 %s97, %s98
    %p100 = scmp.eq.s32.totalorder %s99, 0
    %s102 = sadd.s32 %s101, 1
    %s103 = scalar_select %p100, %s101, %s102
    %p106 = pneg %p100
    %p107 = scmp.eq.s32.totalorder %s13, 3
    %p108 = por %p106, %p107
    %p109 = scmp.ne.s32.totalorder %s101, %s104
    %p110 = scmp.eq.s32.totalorder %s13, 0
    %p111 = por %p109, %p110
    %p112 = scmp.ne.s32.totalorder %s101, %s104
    %p113 = scmp.eq.s32.totalorder %s18, 3
    %p114 = por %p112, %p113
    %p115 = scmp.ne.s32.totalorder %s104, %s105
    %p116 = scmp.eq.s32.totalorder %s18, 0
    %p117 = por %p115, %p116
    %p118 = scmp.ne.s32.totalorder %s104, %s105
    %p119 = scmp.eq.s32.totalorder %s19, 3
    %p120 = por %p118, %p119
    %p122 = scmp.ne.s32.totalorder %s105, %s121
    %p123 = scmp.eq.s32.totalorder %s19, 0
    %p124 = por %p122, %p123
    %s126 = sadd.s32 %s125, 1
    %p129 = scmp.eq.s32.totalorder %s13, 3
    %p130 = scmp.ne.s32.totalorder %s125, %s127
    %p131 = scmp.eq.s32.totalorder %s13, 0
    %p132 = por %p130, %p131
    %p133 = scmp.ne.s32.totalorder %s125, %s127
    %p134 = scmp.eq.s32.totalorder %s18, 3
    %p135 = por %p133, %p134
    %p136 = scmp.ne.s32.totalorder %s127, %s128
    %p137 = scmp.eq.s32.totalorder %s18, 0
    %p138 = por %p136, %p137
    %p139 = scmp.ne.s32.totalorder %s127, %s128
    %p140 = scmp.eq.s32.totalorder %s19, 3
    %p141 = por %p139, %p140
    %p143 = scmp.ne.s32.totalorder %s128, %s142
    %p144 = scmp.eq.s32.totalorder %s19, 0
    %p145 = por %p143, %p144
    %s147 = sadd.s32 %s146, 1
    %p150 = scmp.eq.s32.totalorder %s13, 3
    %p151 = scmp.ne.s32.totalorder %s146, %s148
    %p152 = scmp.eq.s32.totalorder %s13, 0
    %p153 = por %p151, %p152
    %p154 = scmp.ne.s32.totalorder %s146, %s148
    %p155 = scmp.eq.s32.totalorder %s18, 3
    %p156 = por %p154, %p155
    %p157 = scmp.ne.s32.totalorder %s148, %s149
    %p158 = scmp.eq.s32.totalorder %s18, 0
    %p159 = por %p157, %p158
    %p160 = scmp.ne.s32.totalorder %s148, %s149
    %p161 = scmp.eq.s32.totalorder %s19, 3
    %p162 = por %p160, %p161
    %p164 = scmp.ne.s32.totalorder %s149, %s163
    %p165 = scmp.eq.s32.totalorder %s19, 0
    %p166 = por %p164, %p165
    %s167 = ssub.s32 %s20, %s32
    %s168 = ssub.s32 %s21, %s28
    %s169 = sor.u32 %s167, %s168
    %p170 = scmp.eq.s32.totalorder %s169, 0
    %s172 = sadd.s32 %s171, 1
    %s173 = scalar_select %p170, %s171, %s172
    %p176 = pneg %p170
    %p177 = scmp.eq.s32.totalorder %s13, 3
    %p178 = por %p176, %p177
    %p179 = scmp.ne.s32.totalorder %s171, %s174
    %p180 = scmp.eq.s32.totalorder %s13, 0
    %p181 = por %p179, %p180
    %p182 = scmp.ne.s32.totalorder %s171, %s174
    %p183 = scmp.eq.s32.totalorder %s18, 3
    %p184 = por %p182, %p183
    %p185 = scmp.ne.s32.totalorder %s174, %s175
    %p186 = scmp.eq.s32.totalorder %s18, 0
    %p187 = por %p185, %p186
    %p188 = scmp.ne.s32.totalorder %s174, %s175
    %p189 = scmp.eq.s32.totalorder %s19, 3
    %p190 = por %p188, %p189
    %p192 = scmp.ne.s32.totalorder %s175, %s191
    %p193 = scmp.eq.s32.totalorder %s19, 0
    %p194 = por %p192, %p193
    %s195 = ssub.s32 %s20, %s32
    %p196 = scmp.eq.s32.totalorder %s195, 0
    %s198 = sadd.s32 %s197, 1
    %s199 = scalar_select %p196, %s197, %s198
    %p202 = pneg %p196
    %p203 = scmp.eq.s32.totalorder %s13, 3
    %p204 = por %p202, %p203
    %p205 = scmp.ne.s32.totalorder %s197, %s200
    %p206 = scmp.eq.s32.totalorder %s13, 0
    %p207 = por %p205, %p206
    %p208 = scmp.ne.s32.totalorder %s197, %s200
    %p209 = scmp.eq.s32.totalorder %s18, 3
    %p210 = por %p208, %p209
    %p211 = scmp.ne.s32.totalorder %s200, %s201
    %p212 = scmp.eq.s32.totalorder %s18, 0
    %p213 = por %p211, %p212
    %p214 = scmp.ne.s32.totalorder %s200, %s201
    %p215 = scmp.eq.s32.totalorder %s19, 3
    %p216 = por %p214, %p215
    %p218 = scmp.ne.s32.totalorder %s201, %s217
    %p219 = scmp.eq.s32.totalorder %s19, 0
    %p220 = por %p218, %p219
    %p221 = scmp.le.s32.totalorder 1, %s13
    %p222 = scmp.lt.s32.totalorder %s13, 5
    %p223 = pnand %p221, %p222
    %p224 = pneg %p223
    // Predicated region
    $region9: #{_lambda_.8} parent=5 // pred_check
      _
    $region10: #{_lambda_.8} parent=5 // pred_check_branch
      %226 = sbr.rel (%p223) target = $region12
    $region11: #{_lambda_.8} parent=5 // pred_region
      %s227 = ssub.s32 %s13, 1
      // Predicated region
      $region13: #{_lambda_.8} parent=11 // pred_check
        %p228 = pneg %p138
      $region14: #{_lambda_.8} parent=11 // pred_check_branch
        %230 = sbr.rel (%p228) target = $region16
      $region15: #{_lambda_.8} parent=11 // pred_region
        _
      $region16: #{_lambda_.8} parent=11 // pred_fallthru
        _
      // Predicated region
      $region17: #{_lambda_.8} parent=11 // pred_check
        %p231 = pneg %p159
      $region18: #{_lambda_.8} parent=11 // pred_check_branch
        %233 = sbr.rel (%p231) target = $region20
      $region19: #{_lambda_.8} parent=11 // pred_region
        _
      $region20: #{_lambda_.8} parent=11 // pred_fallthru
        _
    $region12: #{_lambda_.8} parent=5 // pred_fallthru
      _
    %p234 = scmp.lt.s32.totalorder %s13, 4
    // Predicated region
    $region21: #{_lambda_.8} parent=5 // pred_check
      %p235 = pneg %p234
    $region22: #{_lambda_.8} parent=5 // pred_check_branch
      %237 = sbr.rel (%p235) target = $region24
    $region23: #{_lambda_.8} parent=5 // pred_region
      // Predicated region
      $region25: #{_lambda_.8} parent=23 // pred_check
        %p238 = pneg %p47
      $region26: #{_lambda_.8} parent=23 // pred_check_branch
        %240 = sbr.rel (%p238) target = $region28
      $region27: #{_lambda_.8} parent=23 // pred_region
        %s241 = smul.u32 4, %s21
        %s242 = ssub.s32 10, %s241
        %p243 = scmp.lt.s32.totalorder %s242, 4
        %s244 = scalar_select %p243, %s242, 4
        %s245 = smul.u32 64, %s244
        %s246 = smul.u32 %s245, 2
        %p247 = scmp.lt.s32.totalorder %s20, 1
        %s248 = scalar_select %p247, %s20, 1
        %p249 = scmp.lt.s32.totalorder %s241, 9
        %s250 = scalar_select %p249, %s241, 9
        %s251 = smul.addr %s250, 2
        %s252 = smul.addr %s248, 20
        %s253 = sadd.s32 %s251, %s252
        %s254 = smul.addr %s253, 4
        %s255 = scalar_lea.vmem %s0, %s254
        %s256 = smul.u32 4, %s21
        %s257 = ssub.s32 10, %s256
        %p258 = scmp.lt.s32.totalorder %s257, 4
        %s259 = scalar_select %p258, %s257, 4
        %s260 = smul.u32 64, %s259
        %s261 = smul.u32 %s260, 2
      $region28: #{_lambda_.8} parent=23 // pred_fallthru
        _
      // Predicated region
      $region29: #{_lambda_.8} parent=23 // pred_check
        %p262 = pneg %p79
      $region30: #{_lambda_.8} parent=23 // pred_check_branch
        %264 = sbr.rel (%p262) target = $region32
      $region31: #{_lambda_.8} parent=23 // pred_region
        %s265 = smul.u32 %s21, 4
        %s266 = sadd.s32 %s265, 4
        %p267 = scmp.lt.s32.totalorder %s20, 1
        %s268 = scalar_select %p267, %s20, 1
        %p269 = scmp.lt.s32.totalorder %s266, 9
        %s270 = scalar_select %p269, %s266, 9
        %s271 = smul.addr %s270, 2
        %s272 = smul.addr %s268, 20
        %s273 = sadd.s32 %s271, %s272
        %s274 = smul.addr %s273, 4
        %s275 = scalar_lea.vmem %s1, %s274
        %s276 = smul.u32 %s21, 4
        %s277 = sadd.s32 %s276, 4
      $region32: #{_lambda_.8} parent=23 // pred_fallthru
        _
      // Predicated region
      $region33: #{_lambda_.8} parent=23 // pred_check
        %p278 = pneg %p111
      $region34: #{_lambda_.8} parent=23 // pred_check_branch
        %280 = sbr.rel (%p278) target = $region36
      $region35: #{_lambda_.8} parent=23 // pred_region
        %s281 = smul.u32 %s21, 4
        %s282 = sadd.s32 %s281, 5
        %p283 = scmp.lt.s32.totalorder %s20, 1
        %s284 = scalar_select %p283, %s20, 1
        %p285 = scmp.lt.s32.totalorder %s282, 9
        %s286 = scalar_select %p285, %s282, 9
        %s287 = smul.addr %s286, 2
        %s288 = smul.addr %s284, 20
        %s289 = sadd.s32 %s287, %s288
        %s290 = smul.addr %s289, 4
        %s291 = scalar_lea.vmem %s2, %s290
        %s292 = smul.u32 %s21, 4
        %s293 = sadd.s32 %s292, 5
      $region36: #{_lambda_.8} parent=23 // pred_fallthru
        _
    $region24: #{_lambda_.8} parent=5 // pred_fallthru
      _
    %p294 = scmp.le.s32.totalorder 1, %s13
    %p295 = scmp.lt.s32.totalorder %s13, 5
    %p296 = pnand %p294, %p295
    %p297 = pneg %p296
    // Predicated region
    $region37: #{_lambda_.8} parent=5 // pred_check
      _
    $region38: #{_lambda_.8} parent=5 // pred_check_branch
      %299 = sbr.rel (%p296) target = $region40
    $region39: #{_lambda_.8} parent=5 // pred_region
      %s300 = ssub.s32 %s13, 1
      %s301 = smul.u32 4, %s23
      %s302 = ssub.s32 10, %s301
      %p303 = scmp.lt.s32.totalorder %s302, 4
      %s304 = scalar_select %p303, %s302, 4
      %s305 = smul.u32 64, %s304
      %s306 = smul.u32 %s305, 2
      %p307 = scmp.lt.s32.totalorder %s22, 1
      %s308 = scalar_select %p307, %s22, 1
      %p309 = scmp.lt.s32.totalorder %s301, 9
      %s310 = scalar_select %p309, %s301, 9
      %s311 = smul.addr %s310, 2
      %s312 = smul.addr %s308, 20
      %s313 = sadd.s32 %s311, %s312
      %s314 = smul.addr %s313, 4
      %s315 = scalar_lea.vmem %s0, %s314
      %p316 = pneg %p53
      %p317 = pneg %p50
      %s318 = smul.u32 %s23, 4
      %s319 = sadd.s32 %s318, 4
      %p320 = scmp.lt.s32.totalorder %s22, 1
      %s321 = scalar_select %p320, %s22, 1
      %p322 = scmp.lt.s32.totalorder %s319, 9
      %s323 = scalar_select %p322, %s319, 9
      %s324 = smul.addr %s323, 2
      %s325 = smul.addr %s321, 20
      %s326 = sadd.s32 %s324, %s325
      %s327 = smul.addr %s326, 4
      %s328 = scalar_lea.vmem %s1, %s327
      %p329 = pneg %p85
      %p330 = pneg %p82
      %s331 = smul.u32 %s23, 4
      %s332 = sadd.s32 %s331, 5
      %p333 = scmp.lt.s32.totalorder %s22, 1
      %s334 = scalar_select %p333, %s22, 1
      %p335 = scmp.lt.s32.totalorder %s332, 9
      %s336 = scalar_select %p335, %s332, 9
      %s337 = smul.addr %s336, 2
      %s338 = smul.addr %s334, 20
      %s339 = sadd.s32 %s337, %s338
      %s340 = smul.addr %s339, 4
      %s341 = scalar_lea.vmem %s2, %s340
      %p342 = pneg %p117
      %p343 = pneg %p114
      %p344 = pneg %p138
      %p345 = pneg %p135
      %p346 = pneg %p159
      %p347 = pneg %p156
      %p348 = pneg %p187
      %p349 = pneg %p184
      %s350 = smul.u32 4, %s23
      %p351 = scmp.lt.s32.totalorder %s22, 1
      %s352 = scalar_select %p351, %s22, 1
      %p353 = scmp.lt.s32.totalorder %s350, 7
      %s354 = scalar_select %p353, %s350, 7
      %s355 = smul.addr %s352, 8
      %s356 = sadd.s32 %s354, %s355
      %s357 = smul.addr %s356, 8
      %s358 = scalar_lea.vmem %s5, %s357
      %p359 = pneg %p213
      %p360 = pneg %p210
      %p361 = scmp.lt.s32.totalorder %s22, 1
      %s362 = scalar_select %p361, %s22, 1
      %s363 = smul.addr %s362, 2
      %s364 = scalar_lea.vmem %s6, %s363
      %s365 = smul.u32 4, %s23
      %s366 = ssub.s32 10, %s365
      %p367 = scmp.lt.s32.totalorder %s366, 4
      %s368 = scalar_select %p367, %s366, 4
      %s369 = smul.u32 64, %s368
      %s370 = smul.u32 %s369, 2
      %p371 = scmp.lt.s32.totalorder %s22, 1
      %s372 = scalar_select %p371, %s22, 1
      %p373 = scmp.lt.s32.totalorder %s365, 9
      %s374 = scalar_select %p373, %s365, 9
      %s375 = smul.addr %s374, 2
      %s376 = smul.addr %s372, 20
      %s377 = sadd.s32 %s375, %s376
      %s378 = smul.addr %s377, 4
      %s379 = scalar_lea.vmem %s0, %s378
      %s380 = smul.u32 4, %s23
      %s381 = ssub.s32 10, %s380
      %p382 = scmp.lt.s32.totalorder %s381, 4
      %s383 = scalar_select %p382, %s381, 4
      %s384 = smul.u32 64, %s383
      %s385 = smul.u32 %s384, 2
      %s386 = smul.u32 %s23, 4
      %s387 = sadd.s32 %s386, 4
      %p388 = scmp.lt.s32.totalorder %s22, 1
      %s389 = scalar_select %p388, %s22, 1
      %p390 = scmp.lt.s32.totalorder %s387, 9
      %s391 = scalar_select %p390, %s387, 9
      %s392 = smul.addr %s391, 2
      %s393 = smul.addr %s389, 20
      %s394 = sadd.s32 %s392, %s393
      %s395 = smul.addr %s394, 4
      %s396 = scalar_lea.vmem %s1, %s395
      %s397 = smul.u32 %s23, 4
      %s398 = sadd.s32 %s397, 4
      %s399 = smul.u32 %s23, 4
      %s400 = sadd.s32 %s399, 5
      %p401 = scmp.lt.s32.totalorder %s22, 1
      %s402 = scalar_select %p401, %s22, 1
      %p403 = scmp.lt.s32.totalorder %s400, 9
      %s404 = scalar_select %p403, %s400, 9
      %s405 = smul.addr %s404, 2
      %s406 = smul.addr %s402, 20
      %s407 = sadd.s32 %s405, %s406
      %s408 = smul.addr %s407, 4
      %s409 = scalar_lea.vmem %s2, %s408
      %s410 = smul.u32 %s23, 4
      %s411 = sadd.s32 %s410, 5
      %s412 = smul.u32 4, %s23
      %p413 = scmp.lt.s32.totalorder %s22, 1
      %s414 = scalar_select %p413, %s22, 1
      %p415 = scmp.lt.s32.totalorder %s412, 7
      %s416 = scalar_select %p415, %s412, 7
      %s417 = smul.addr %s414, 8
      %s418 = sadd.s32 %s416, %s417
      %s419 = smul.addr %s418, 8
      %s420 = scalar_lea.vmem %s5, %s419
      %s421 = smul.u32 4, %s23
      %p422 = scmp.lt.s32.totalorder %s22, 1
      %s423 = scalar_select %p422, %s22, 1
      %s424 = smul.addr %s423, 2
      %s425 = scalar_lea.vmem %s6, %s424
      %v427 = vld [vmem:[%s379] sm:$0xf]
      %v428 = vld [vmem:[%s379 + $0x4] sm:$0x1]
      %v429 = vld [vmem:[%s379 + $0x8] sm:$0xf]
      %v430 = vld [vmem:[%s379 + $0xc] sm:$0x1]
      %v431 = vld [vmem:[%s379 + $0x10] sm:$0xf]
      %v432 = vld [vmem:[%s379 + $0x14] sm:$0x1]
      %v433 = vld [vmem:[%s379 + $0x18] sm:$0xf]
      %v434 = vld [vmem:[%s379 + $0x1c] sm:$0x1]
      %v435 = vld [vmem:[%s396] sm:$0xf]
      %v436 = vld [vmem:[%s396 + $0x4] sm:$0x1]
      %v437 = vld [vmem:[%s409] sm:$0xf]
      %v438 = vld [vmem:[%s409 + $0x4] sm:$0x1]
      %v439 = vld [vmem:[%s3] sm:$0xf]
      %vm440 = vsmask.f32 3328
      %vm441 = vsmask.f32 7440
      %vm442 = vmor %vm440, %vm441
      %v444 = vshrl.u32 %v427, 16
      %v446 = vrot.slane %v444, 4
      %v447 = vshll.u32 %v427, 16
      %v449 = vrot.slane %v447, 5
      %v450 = vor.u32 %v446, %v449
      %v451 = vrot.slane %v450, 4
      %v453 = vshll.u32 %v428, 16
      %v455 = vrot.slane %v453, 5
      %v456 = vsel %vm442, %v451, %v455
      %v458 = vshrl.u32 %v429, 16
      %v460 = vrot.slane %v458, 4
      %v461 = vshll.u32 %v429, 16
      %v463 = vrot.slane %v461, 5
      %v464 = vor.u32 %v460, %v463
      %v465 = vrot.slane %v464, 4
      %v467 = vshll.u32 %v430, 16
      %v469 = vrot.slane %v467, 5
      %v470 = vsel %vm442, %v465, %v469
      %v472 = vshrl.u32 %v431, 16
      %v474 = vrot.slane %v472, 4
      %v475 = vshll.u32 %v431, 16
      %v477 = vrot.slane %v475, 5
      %v478 = vor.u32 %v474, %v477
      %v479 = vrot.slane %v478, 4
      %v481 = vshll.u32 %v432, 16
      %v483 = vrot.slane %v481, 5
      %v484 = vsel %vm442, %v479, %v483
      %v486 = vshrl.u32 %v433, 16
      %v488 = vrot.slane %v486, 4
      %v489 = vshll.u32 %v433, 16
      %v491 = vrot.slane %v489, 5
      %v492 = vor.u32 %v488, %v491
      %v493 = vrot.slane %v492, 4
      %v495 = vshll.u32 %v434, 16
      %v497 = vrot.slane %v495, 5
      %v498 = vsel %vm442, %v493, %v497
      %s499 = scalar_lea.vmem %s3, 4
      %v500 = vld [vmem:[%s499] sm:$0xf]
      %v501 = vunpack.c.l.b16 %v456
      %v502 = vunpack.c.l.b16 %v470
      %v503 = vunpack.c.l.b16 %v484
      %v504 = vunpack.c.l.b16 %v498
      %v505 = vpack.c.b16 %v502, %v501
      %v506 = vpack.c.b16 %v504, %v503
      %vm507 = vcmask 64512
      %v509 = vsel %vm507, %v505, 0
      %v512 = vsel %vm507, %v506, 0
      %vm514 = vcmask 1043456
      %v516 = vsel %vm514, %v500, 0
      %518 = vmatprep.subr.bf16.mxu0 0
      %519 = vmatpush1.bf16.msra.mxu0 0
      %520 = vmatprep.subr.bf16.mxu0 0
      %521 = vmatpush1.bf16.msra.mxu0 0
      %522 = vmatprep.subr.bf16.mxu0 0
      %523 = vmatpush1.bf16.msra.mxu0 0
      %524 = vmatprep.subr.bf16.mxu0 0
      %525 = vmatpush1.bf16.msra.mxu0 0
      %526 = vmatprep.subr.bf16.mxu0 0
      %527 = vmatpush1.bf16.msra.mxu0 0
      %528 = vmatprep.subr.bf16.mxu0 0
      %529 = vmatpush1.bf16.msra.mxu0 0
      %530 = vmatprep.subr.bf16.mxu0 0
      %531 = vmatpush1.bf16.msra.mxu0 0
      %532 = vmatprep.subr.bf16.mxu0 0
      %533 = vmatpush1.bf16.msra.mxu0 %v516
      %534 = vmatprep.subr.bf16.mxu0 0
      %535 = vmatpush2.bf16.msra.mxu0 0
      %536 = vmatprep.subr.bf16.mxu0 0
      %537 = vmatpush2.bf16.msra.mxu0 0
      %538 = vmatprep.subr.bf16.mxu0 0
      %539 = vmatpush2.bf16.msra.mxu0 0
      %540 = vmatprep.subr.bf16.mxu0 0
      %541 = vmatpush2.bf16.msra.mxu0 0
      %542 = vmatprep.subr.bf16.mxu0 0
      %543 = vmatpush2.bf16.msra.mxu0 0
      %544 = vmatprep.subr.bf16.mxu0 0
      %545 = vmatpush2.bf16.msra.mxu0 0
      %546 = vmatprep.subr.bf16.mxu0 0
      %547 = vmatpush2.bf16.msra.mxu0 0
      %548 = vmatprep.subr.bf16.mxu0 0
      %549 = vmatpush2.bf16.msra.mxu0 0
      %550 = vmatprep.mubr.bf16.mxu0 0
      %551 = vmatmul.mubr.bf16.gmra.mxu0 %v509
      %v552 = vpop.f32.mrf.mxu0
      %v553 = vadd.f32 0.0, %v552
      %v554 = vpop.f32.mrf.mxu0
      %v555 = vpop.f32.mrf.mxu0
      %v556 = vadd.f32 0.0, %v555
      %v557 = vpop.f32.mrf.mxu0
      %558 = vmatprep.mubr.bf16.mxu0 0
      %559 = vmatmul.mubr.bf16.gmra.mxu0 %v512
      %v560 = vpop.f32.mrf.mxu0
      %v561 = vadd.f32 0.0, %v560
      %v562 = vpop.f32.mrf.mxu0
      %v563 = vpop.f32.mrf.mxu0
      %v564 = vadd.f32 0.0, %v563
      %v565 = vpop.f32.mrf.mxu0
      %566 = vdwg.mxu0
      %v571 = vunpack.c.l.b16 %v427
      %v572 = vunpack.c.l.b16 %v429
      %v573 = vunpack.c.l.b16 %v431
      %v574 = vunpack.c.l.b16 %v433
      %v575 = vpack.c.b16 %v572, %v571
      %v576 = vpack.c.b16 %v574, %v573
      %v578 = vsel %vm507, %v575, 0
      %v581 = vsel %vm507, %v576, 0
      %v584 = vsel %vm514, %v439, 0
      %586 = vmatprep.subr.bf16.mxu0 0
      %587 = vmatpush1.bf16.msra.mxu0 0
      %588 = vmatprep.subr.bf16.mxu0 0
      %589 = vmatpush1.bf16.msra.mxu0 0
      %590 = vmatprep.subr.bf16.mxu0 0
      %591 = vmatpush1.bf16.msra.mxu0 0
      %592 = vmatprep.subr.bf16.mxu0 0
      %593 = vmatpush1.bf16.msra.mxu0 0
      %594 = vmatprep.subr.bf16.mxu0 0
      %595 = vmatpush1.bf16.msra.mxu0 0
      %596 = vmatprep.subr.bf16.mxu0 0
      %597 = vmatpush1.bf16.msra.mxu0 0
      %598 = vmatprep.subr.bf16.mxu0 0
      %599 = vmatpush1.bf16.msra.mxu0 0
      %600 = vmatprep.subr.bf16.mxu0 0
      %601 = vmatpush1.bf16.msra.mxu0 %v584
      %602 = vmatprep.subr.bf16.mxu0 0
      %603 = vmatpush2.bf16.msra.mxu0 0
      %604 = vmatprep.subr.bf16.mxu0 0
      %605 = vmatpush2.bf16.msra.mxu0 0
      %606 = vmatprep.subr.bf16.mxu0 0
      %607 = vmatpush2.bf16.msra.mxu0 0
      %608 = vmatprep.subr.bf16.mxu0 0
      %609 = vmatpush2.bf16.msra.mxu0 0
      %610 = vmatprep.subr.bf16.mxu0 0
      %611 = vmatpush2.bf16.msra.mxu0 0
      %612 = vmatprep.subr.bf16.mxu0 0
      %613 = vmatpush2.bf16.msra.mxu0 0
      %614 = vmatprep.subr.bf16.mxu0 0
      %615 = vmatpush2.bf16.msra.mxu0 0
      %616 = vmatprep.subr.bf16.mxu0 0
      %617 = vmatpush2.bf16.msra.mxu0 0
      %618 = vmatprep.mubr.bf16.mxu0 0
      %619 = vmatmul.mubr.bf16.gmra.mxu0 %v578
      %v620 = vpop.f32.mrf.mxu0
      %v621 = vadd.f32 %v553, %v620
      %v622 = vpop.f32.mrf.mxu0
      %v623 = vpop.f32.mrf.mxu0
      %v624 = vadd.f32 %v556, %v623
      %v625 = vpop.f32.mrf.mxu0
      %626 = vmatprep.mubr.bf16.mxu0 0
      %627 = vmatmul.mubr.bf16.gmra.mxu0 %v581
      %v628 = vpop.f32.mrf.mxu0
      %v629 = vadd.f32 %v561, %v628
      %v630 = vpop.f32.mrf.mxu0
      %v631 = vpop.f32.mrf.mxu0
      %v632 = vadd.f32 %v564, %v631
      %v633 = vpop.f32.mrf.mxu0
      %634 = vdwg.mxu0
      %vm639 = vcmask 1042432
      %vm640 = vcmask 1046532
      %vm641 = vmor %vm639, %vm640
      %v642 = vrot.slane %v427, 5
      %v643 = vrot.slane %v642, 4
      %v644 = vrot.slane %v428, 5
      %v645 = vsel %vm641, %v643, %v644
      %v646 = vrot.slane %v429, 5
      %v647 = vrot.slane %v646, 4
      %v648 = vrot.slane %v430, 5
      %v649 = vsel %vm641, %v647, %v648
      %v650 = vrot.slane %v431, 5
      %v651 = vrot.slane %v650, 4
      %v652 = vrot.slane %v432, 5
      %v653 = vsel %vm641, %v651, %v652
      %v654 = vrot.slane %v433, 5
      %v655 = vrot.slane %v654, 4
      %v656 = vrot.slane %v434, 5
      %v657 = vsel %vm641, %v655, %v656
      %s658 = scalar_lea.vmem %s3, 8
      %v659 = vld [vmem:[%s658] sm:$0xf]
      %v660 = vunpack.c.l.b16 %v645
      %v661 = vunpack.c.l.b16 %v649
      %v662 = vunpack.c.l.b16 %v653
      %v663 = vunpack.c.l.b16 %v657
      %v664 = vpack.c.b16 %v661, %v660
      %v665 = vpack.c.b16 %v663, %v662
      %v667 = vsel %vm507, %v664, 0
      %v670 = vsel %vm507, %v665, 0
      %v673 = vsel %vm514, %v659, 0
      %675 = vmatprep.subr.bf16.mxu0 0
      %676 = vmatpush1.bf16.msra.mxu0 0
      %677 = vmatprep.subr.bf16.mxu0 0
      %678 = vmatpush1.bf16.msra.mxu0 0
      %679 = vmatprep.subr.bf16.mxu0 0
      %680 = vmatpush1.bf16.msra.mxu0 0
      %681 = vmatprep.subr.bf16.mxu0 0
      %682 = vmatpush1.bf16.msra.mxu0 0
      %683 = vmatprep.subr.bf16.mxu0 0
      %684 = vmatpush1.bf16.msra.mxu0 0
      %685 = vmatprep.subr.bf16.mxu0 0
      %686 = vmatpush1.bf16.msra.mxu0 0
      %687 = vmatprep.subr.bf16.mxu0 0
      %688 = vmatpush1.bf16.msra.mxu0 0
      %689 = vmatprep.subr.bf16.mxu0 0
      %690 = vmatpush1.bf16.msra.mxu0 %v673
      %691 = vmatprep.subr.bf16.mxu0 0
      %692 = vmatpush2.bf16.msra.mxu0 0
      %693 = vmatprep.subr.bf16.mxu0 0
      %694 = vmatpush2.bf16.msra.mxu0 0
      %695 = vmatprep.subr.bf16.mxu0 0
      %696 = vmatpush2.bf16.msra.mxu0 0
      %697 = vmatprep.subr.bf16.mxu0 0
      %698 = vmatpush2.bf16.msra.mxu0 0
      %699 = vmatprep.subr.bf16.mxu0 0
      %700 = vmatpush2.bf16.msra.mxu0 0
      %701 = vmatprep.subr.bf16.mxu0 0
      %702 = vmatpush2.bf16.msra.mxu0 0
      %703 = vmatprep.subr.bf16.mxu0 0
      %704 = vmatpush2.bf16.msra.mxu0 0
      %705 = vmatprep.subr.bf16.mxu0 0
      %706 = vmatpush2.bf16.msra.mxu0 0
      %707 = vmatprep.mubr.bf16.mxu0 0
      %708 = vmatmul.mubr.bf16.gmra.mxu0 %v667
      %v709 = vpop.f32.mrf.mxu0
      %v710 = vadd.f32 0.0, %v709
      %v711 = vpop.f32.mrf.mxu0
      %v712 = vpop.f32.mrf.mxu0
      %v713 = vadd.f32 0.0, %v712
      %v714 = vpop.f32.mrf.mxu0
      %715 = vmatprep.mubr.bf16.mxu0 0
      %716 = vmatmul.mubr.bf16.gmra.mxu0 %v670
      %v717 = vpop.f32.mrf.mxu0
      %v718 = vadd.f32 0.0, %v717
      %v719 = vpop.f32.mrf.mxu0
      %v720 = vpop.f32.mrf.mxu0
      %v721 = vadd.f32 0.0, %v720
      %v722 = vpop.f32.mrf.mxu0
      %723 = vdwg.mxu0
      %v724 = vadd.f32 %v621, %v710
      %v725 = vadd.f32 %v624, %v713
      %v726 = vadd.f32 %v629, %v718
      %v727 = vadd.f32 %v632, %v721
      %s728 = scalar_lea.vmem %s3, 12
      %v729 = vld [vmem:[%s728] sm:$0xf]
      %v731 = vunpack.c.l.b16 %v435
      %v732 = vpack.c.b16 %v573, %v572
      %v733 = vpack.c.b16 %v731, %v574
      %v735 = vsel %vm507, %v732, 0
      %v738 = vsel %vm507, %v733, 0
      %v741 = vsel %vm514, %v729, 0
      %743 = vmatprep.subr.bf16.mxu0 0
      %744 = vmatpush1.bf16.msra.mxu0 0
      %745 = vmatprep.subr.bf16.mxu0 0
      %746 = vmatpush1.bf16.msra.mxu0 0
      %747 = vmatprep.subr.bf16.mxu0 0
      %748 = vmatpush1.bf16.msra.mxu0 0
      %749 = vmatprep.subr.bf16.mxu0 0
      %750 = vmatpush1.bf16.msra.mxu0 0
      %751 = vmatprep.subr.bf16.mxu0 0
      %752 = vmatpush1.bf16.msra.mxu0 0
      %753 = vmatprep.subr.bf16.mxu0 0
      %754 = vmatpush1.bf16.msra.mxu0 0
      %755 = vmatprep.subr.bf16.mxu0 0
      %756 = vmatpush1.bf16.msra.mxu0 0
      %757 = vmatprep.subr.bf16.mxu0 0
      %758 = vmatpush1.bf16.msra.mxu0 %v741
      %759 = vmatprep.subr.bf16.mxu0 0
      %760 = vmatpush2.bf16.msra.mxu0 0
      %761 = vmatprep.subr.bf16.mxu0 0
      %762 = vmatpush2.bf16.msra.mxu0 0
      %763 = vmatprep.subr.bf16.mxu0 0
      %764 = vmatpush2.bf16.msra.mxu0 0
      %765 = vmatprep.subr.bf16.mxu0 0
      %766 = vmatpush2.bf16.msra.mxu0 0
      %767 = vmatprep.subr.bf16.mxu0 0
      %768 = vmatpush2.bf16.msra.mxu0 0
      %769 = vmatprep.subr.bf16.mxu0 0
      %770 = vmatpush2.bf16.msra.mxu0 0
      %771 = vmatprep.subr.bf16.mxu0 0
      %772 = vmatpush2.bf16.msra.mxu0 0
      %773 = vmatprep.subr.bf16.mxu0 0
      %774 = vmatpush2.bf16.msra.mxu0 0
      %775 = vmatprep.mubr.bf16.mxu0 0
      %776 = vmatmul.mubr.bf16.gmra.mxu0 %v735
      %v777 = vpop.f32.mrf.mxu0
      %v778 = vadd.f32 0.0, %v777
      %v779 = vpop.f32.mrf.mxu0
      %v780 = vpop.f32.mrf.mxu0
      %v781 = vadd.f32 0.0, %v780
      %v782 = vpop.f32.mrf.mxu0
      %783 = vmatprep.mubr.bf16.mxu0 0
      %784 = vmatmul.mubr.bf16.gmra.mxu0 %v738
      %v785 = vpop.f32.mrf.mxu0
      %v786 = vadd.f32 0.0, %v785
      %v787 = vpop.f32.mrf.mxu0
      %v788 = vpop.f32.mrf.mxu0
      %v789 = vadd.f32 0.0, %v788
      %v790 = vpop.f32.mrf.mxu0
      %791 = vdwg.mxu0
      %v792 = vadd.f32 %v724, %v778
      %v793 = vadd.f32 %v725, %v781
      %v794 = vadd.f32 %v726, %v786
      %v795 = vadd.f32 %v727, %v789
      %v797 = vshrl.u32 %v435, 16
      %v799 = vrot.slane %v797, 4
      %v800 = vshll.u32 %v435, 16
      %v802 = vrot.slane %v800, 5
      %v803 = vor.u32 %v799, %v802
      %v804 = vrot.slane %v803, 4
      %v806 = vshll.u32 %v436, 16
      %v808 = vrot.slane %v806, 5
      %v809 = vsel %vm442, %v804, %v808
      %s810 = scalar_lea.vmem %s3, 16
      %v811 = vld [vmem:[%s810] sm:$0xf]
      %v812 = vunpack.c.l.b16 %v809
      %v813 = vpack.c.b16 %v503, %v502
      %v814 = vpack.c.b16 %v812, %v504
      %v816 = vsel %vm507, %v813, 0
      %v819 = vsel %vm507, %v814, 0
      %v822 = vsel %vm514, %v811, 0
      %824 = vmatprep.subr.bf16.mxu0 0
      %825 = vmatpush1.bf16.msra.mxu0 0
      %826 = vmatprep.subr.bf16.mxu0 0
      %827 = vmatpush1.bf16.msra.mxu0 0
      %828 = vmatprep.subr.bf16.mxu0 0
      %829 = vmatpush1.bf16.msra.mxu0 0
      %830 = vmatprep.subr.bf16.mxu0 0
      %831 = vmatpush1.bf16.msra.mxu0 0
      %832 = vmatprep.subr.bf16.mxu0 0
      %833 = vmatpush1.bf16.msra.mxu0 0
      %834 = vmatprep.subr.bf16.mxu0 0
      %835 = vmatpush1.bf16.msra.mxu0 0
      %836 = vmatprep.subr.bf16.mxu0 0
      %837 = vmatpush1.bf16.msra.mxu0 0
      %838 = vmatprep.subr.bf16.mxu0 0
      %839 = vmatpush1.bf16.msra.mxu0 %v822
      %840 = vmatprep.subr.bf16.mxu0 0
      %841 = vmatpush2.bf16.msra.mxu0 0
      %842 = vmatprep.subr.bf16.mxu0 0
      %843 = vmatpush2.bf16.msra.mxu0 0
      %844 = vmatprep.subr.bf16.mxu0 0
      %845 = vmatpush2.bf16.msra.mxu0 0
      %846 = vmatprep.subr.bf16.mxu0 0
      %847 = vmatpush2.bf16.msra.mxu0 0
      %848 = vmatprep.subr.bf16.mxu0 0
      %849 = vmatpush2.bf16.msra.mxu0 0
      %850 = vmatprep.subr.bf16.mxu0 0
      %851 = vmatpush2.bf16.msra.mxu0 0
      %852 = vmatprep.subr.bf16.mxu0 0
      %853 = vmatpush2.bf16.msra.mxu0 0
      %854 = vmatprep.subr.bf16.mxu0 0
      %855 = vmatpush2.bf16.msra.mxu0 0
      %856 = vmatprep.mubr.bf16.mxu0 0
      %857 = vmatmul.mubr.bf16.gmra.mxu0 %v816
      %v858 = vpop.f32.mrf.mxu0
      %v859 = vadd.f32 0.0, %v858
      %v860 = vpop.f32.mrf.mxu0
      %v861 = vpop.f32.mrf.mxu0
      %v862 = vadd.f32 0.0, %v861
      %v863 = vpop.f32.mrf.mxu0
      %864 = vmatprep.mubr.bf16.mxu0 0
      %865 = vmatmul.mubr.bf16.gmra.mxu0 %v819
      %v866 = vpop.f32.mrf.mxu0
      %v867 = vadd.f32 0.0, %v866
      %v868 = vpop.f32.mrf.mxu0
      %v869 = vpop.f32.mrf.mxu0
      %v870 = vadd.f32 0.0, %v869
      %v871 = vpop.f32.mrf.mxu0
      %872 = vdwg.mxu0
      %v873 = vadd.f32 %v792, %v859
      %v874 = vadd.f32 %v793, %v862
      %v875 = vadd.f32 %v794, %v867
      %v876 = vadd.f32 %v795, %v870
      %v878 = vrot.slane %v435, 5
      %v879 = vrot.slane %v878, 4
      %v880 = vrot.slane %v436, 5
      %v881 = vsel %vm641, %v879, %v880
      %s882 = scalar_lea.vmem %s3, 20
      %v883 = vld [vmem:[%s882] sm:$0xf]
      %v884 = vunpack.c.l.b16 %v881
      %v885 = vpack.c.b16 %v662, %v661
      %v886 = vpack.c.b16 %v884, %v663
      %v888 = vsel %vm507, %v885, 0
      %v891 = vsel %vm507, %v886, 0
      %v894 = vsel %vm514, %v883, 0
      %896 = vmatprep.subr.bf16.mxu0 0
      %897 = vmatpush1.bf16.msra.mxu0 0
      %898 = vmatprep.subr.bf16.mxu0 0
      %899 = vmatpush1.bf16.msra.mxu0 0
      %900 = vmatprep.subr.bf16.mxu0 0
      %901 = vmatpush1.bf16.msra.mxu0 0
      %902 = vmatprep.subr.bf16.mxu0 0
      %903 = vmatpush1.bf16.msra.mxu0 0
      %904 = vmatprep.subr.bf16.mxu0 0
      %905 = vmatpush1.bf16.msra.mxu0 0
      %906 = vmatprep.subr.bf16.mxu0 0
      %907 = vmatpush1.bf16.msra.mxu0 0
      %908 = vmatprep.subr.bf16.mxu0 0
      %909 = vmatpush1.bf16.msra.mxu0 0
      %910 = vmatprep.subr.bf16.mxu0 0
      %911 = vmatpush1.bf16.msra.mxu0 %v894
      %912 = vmatprep.subr.bf16.mxu0 0
      %913 = vmatpush2.bf16.msra.mxu0 0
      %914 = vmatprep.subr.bf16.mxu0 0
      %915 = vmatpush2.bf16.msra.mxu0 0
      %916 = vmatprep.subr.bf16.mxu0 0
      %917 = vmatpush2.bf16.msra.mxu0 0
      %918 = vmatprep.subr.bf16.mxu0 0
      %919 = vmatpush2.bf16.msra.mxu0 0
      %920 = vmatprep.subr.bf16.mxu0 0
      %921 = vmatpush2.bf16.msra.mxu0 0
      %922 = vmatprep.subr.bf16.mxu0 0
      %923 = vmatpush2.bf16.msra.mxu0 0
      %924 = vmatprep.subr.bf16.mxu0 0
      %925 = vmatpush2.bf16.msra.mxu0 0
      %926 = vmatprep.subr.bf16.mxu0 0
      %927 = vmatpush2.bf16.msra.mxu0 0
      %928 = vmatprep.mubr.bf16.mxu0 0
      %929 = vmatmul.mubr.bf16.gmra.mxu0 %v888
      %v930 = vpop.f32.mrf.mxu0
      %v931 = vadd.f32 0.0, %v930
      %v932 = vpop.f32.mrf.mxu0
      %v933 = vpop.f32.mrf.mxu0
      %v934 = vadd.f32 0.0, %v933
      %v935 = vpop.f32.mrf.mxu0
      %936 = vmatprep.mubr.bf16.mxu0 0
      %937 = vmatmul.mubr.bf16.gmra.mxu0 %v891
      %v938 = vpop.f32.mrf.mxu0
      %v939 = vadd.f32 0.0, %v938
      %v940 = vpop.f32.mrf.mxu0
      %v941 = vpop.f32.mrf.mxu0
      %v942 = vadd.f32 0.0, %v941
      %v943 = vpop.f32.mrf.mxu0
      %944 = vdwg.mxu0
      %v945 = vadd.f32 %v873, %v931
      %v946 = vadd.f32 %v874, %v934
      %v947 = vadd.f32 %v875, %v939
      %v948 = vadd.f32 %v876, %v942
      %s949 = scalar_lea.vmem %s3, 24
      %v950 = vld [vmem:[%s949] sm:$0xf]
      %v952 = vunpack.c.l.b16 %v437
      %v953 = vpack.c.b16 %v952, %v731
      %v955 = vsel %vm507, %v953, 0
      %v958 = vsel %vm514, %v950, 0
      %960 = vmatprep.subr.bf16.mxu0 0
      %961 = vmatpush1.bf16.msra.mxu0 0
      %962 = vmatprep.subr.bf16.mxu0 0
      %963 = vmatpush1.bf16.msra.mxu0 0
      %964 = vmatprep.subr.bf16.mxu0 0
      %965 = vmatpush1.bf16.msra.mxu0 0
      %966 = vmatprep.subr.bf16.mxu0 0
      %967 = vmatpush1.bf16.msra.mxu0 0
      %968 = vmatprep.subr.bf16.mxu0 0
      %969 = vmatpush1.bf16.msra.mxu0 0
      %970 = vmatprep.subr.bf16.mxu0 0
      %971 = vmatpush1.bf16.msra.mxu0 0
      %972 = vmatprep.subr.bf16.mxu0 0
      %973 = vmatpush1.bf16.msra.mxu0 0
      %974 = vmatprep.subr.bf16.mxu0 0
      %975 = vmatpush1.bf16.msra.mxu0 %v958
      %976 = vmatprep.subr.bf16.mxu0 0
      %977 = vmatpush2.bf16.msra.mxu0 0
      %978 = vmatprep.subr.bf16.mxu0 0
      %979 = vmatpush2.bf16.msra.mxu0 0
      %980 = vmatprep.subr.bf16.mxu0 0
      %981 = vmatpush2.bf16.msra.mxu0 0
      %982 = vmatprep.subr.bf16.mxu0 0
      %983 = vmatpush2.bf16.msra.mxu0 0
      %984 = vmatprep.subr.bf16.mxu0 0
      %985 = vmatpush2.bf16.msra.mxu0 0
      %986 = vmatprep.subr.bf16.mxu0 0
      %987 = vmatpush2.bf16.msra.mxu0 0
      %988 = vmatprep.subr.bf16.mxu0 0
      %989 = vmatpush2.bf16.msra.mxu0 0
      %990 = vmatprep.subr.bf16.mxu0 0
      %991 = vmatpush2.bf16.msra.mxu0 0
      %992 = vmatprep.mubr.bf16.mxu0 0
      %993 = vmatmul.mubr.bf16.gmra.mxu0 %v581
      %v994 = vpop.f32.mrf.mxu0
      %v995 = vadd.f32 0.0, %v994
      %v996 = vpop.f32.mrf.mxu0
      %v997 = vpop.f32.mrf.mxu0
      %v998 = vadd.f32 0.0, %v997
      %v999 = vpop.f32.mrf.mxu0
      %1000 = vmatprep.mubr.bf16.mxu0 0
      %1001 = vmatmul.mubr.bf16.gmra.mxu0 %v955
      %v1002 = vpop.f32.mrf.mxu0
      %v1003 = vadd.f32 0.0, %v1002
      %v1004 = vpop.f32.mrf.mxu0
      %v1005 = vpop.f32.mrf.mxu0
      %v1006 = vadd.f32 0.0, %v1005
      %v1007 = vpop.f32.mrf.mxu0
      %1008 = vdwg.mxu0
      %v1009 = vadd.f32 %v945, %v995
      %v1010 = vadd.f32 %v946, %v998
      %v1011 = vadd.f32 %v947, %v1003
      %v1012 = vadd.f32 %v948, %v1006
      %v1014 = vshrl.u32 %v437, 16
      %v1016 = vrot.slane %v1014, 4
      %v1017 = vshll.u32 %v437, 16
      %v1019 = vrot.slane %v1017, 5
      %v1020 = vor.u32 %v1016, %v1019
      %v1021 = vrot.slane %v1020, 4
      %v1023 = vshll.u32 %v438, 16
      %v1025 = vrot.slane %v1023, 5
      %v1026 = vsel %vm442, %v1021, %v1025
      %s1027 = scalar_lea.vmem %s3, 28
      %v1028 = vld [vmem:[%s1027] sm:$0xf]
      %v1029 = vunpack.c.l.b16 %v1026
      %v1030 = vpack.c.b16 %v1029, %v812
      %v1032 = vsel %vm507, %v1030, 0
      %v1035 = vsel %vm514, %v1028, 0
      %1037 = vmatprep.subr.bf16.mxu0 0
      %1038 = vmatpush1.bf16.msra.mxu0 0
      %1039 = vmatprep.subr.bf16.mxu0 0
      %1040 = vmatpush1.bf16.msra.mxu0 0
      %1041 = vmatprep.subr.bf16.mxu0 0
      %1042 = vmatpush1.bf16.msra.mxu0 0
      %1043 = vmatprep.subr.bf16.mxu0 0
      %1044 = vmatpush1.bf16.msra.mxu0 0
      %1045 = vmatprep.subr.bf16.mxu0 0
      %1046 = vmatpush1.bf16.msra.mxu0 0
      %1047 = vmatprep.subr.bf16.mxu0 0
      %1048 = vmatpush1.bf16.msra.mxu0 0
      %1049 = vmatprep.subr.bf16.mxu0 0
      %1050 = vmatpush1.bf16.msra.mxu0 0
      %1051 = vmatprep.subr.bf16.mxu0 0
      %1052 = vmatpush1.bf16.msra.mxu0 %v1035
      %1053 = vmatprep.subr.bf16.mxu0 0
      %1054 = vmatpush2.bf16.msra.mxu0 0
      %1055 = vmatprep.subr.bf16.mxu0 0
      %1056 = vmatpush2.bf16.msra.mxu0 0
      %1057 = vmatprep.subr.bf16.mxu0 0
      %1058 = vmatpush2.bf16.msra.mxu0 0
      %1059 = vmatprep.subr.bf16.mxu0 0
      %1060 = vmatpush2.bf16.msra.mxu0 0
      %1061 = vmatprep.subr.bf16.mxu0 0
      %1062 = vmatpush2.bf16.msra.mxu0 0
      %1063 = vmatprep.subr.bf16.mxu0 0
      %1064 = vmatpush2.bf16.msra.mxu0 0
      %1065 = vmatprep.subr.bf16.mxu0 0
      %1066 = vmatpush2.bf16.msra.mxu0 0
      %1067 = vmatprep.subr.bf16.mxu0 0
      %1068 = vmatpush2.bf16.msra.mxu0 0
      %1069 = vmatprep.mubr.bf16.mxu0 0
      %1070 = vmatmul.mubr.bf16.gmra.mxu0 %v512
      %v1071 = vpop.f32.mrf.mxu0
      %v1072 = vadd.f32 0.0, %v1071
      %v1073 = vpop.f32.mrf.mxu0
      %v1074 = vpop.f32.mrf.mxu0
      %v1075 = vadd.f32 0.0, %v1074
      %v1076 = vpop.f32.mrf.mxu0
      %1077 = vmatprep.mubr.bf16.mxu0 0
      %1078 = vmatmul.mubr.bf16.gmra.mxu0 %v1032
      %v1079 = vpop.f32.mrf.mxu0
      %v1080 = vadd.f32 0.0, %v1079
      %v1081 = vpop.f32.mrf.mxu0
      %v1082 = vpop.f32.mrf.mxu0
      %v1083 = vadd.f32 0.0, %v1082
      %v1084 = vpop.f32.mrf.mxu0
      %1085 = vdwg.mxu0
      %v1086 = vadd.f32 %v1009, %v1072
      %v1087 = vadd.f32 %v1010, %v1075
      %v1088 = vadd.f32 %v1011, %v1080
      %v1089 = vadd.f32 %v1012, %v1083
      %v1091 = vrot.slane %v437, 5
      %v1092 = vrot.slane %v1091, 4
      %v1093 = vrot.slane %v438, 5
      %v1094 = vsel %vm641, %v1092, %v1093
      %s1095 = scalar_lea.vmem %s3, 32
      %v1096 = vld [vmem:[%s1095] sm:$0xf]
      %v1097 = vunpack.c.l.b16 %v1094
      %v1098 = vpack.c.b16 %v1097, %v884
      %v1100 = vsel %vm507, %v1098, 0
      %v1103 = vsel %vm514, %v1096, 0
      %1105 = vmatprep.subr.bf16.mxu0 0
      %1106 = vmatpush1.bf16.msra.mxu0 0
      %1107 = vmatprep.subr.bf16.mxu0 0
      %1108 = vmatpush1.bf16.msra.mxu0 0
      %1109 = vmatprep.subr.bf16.mxu0 0
      %1110 = vmatpush1.bf16.msra.mxu0 0
      %1111 = vmatprep.subr.bf16.mxu0 0
      %1112 = vmatpush1.bf16.msra.mxu0 0
      %1113 = vmatprep.subr.bf16.mxu0 0
      %1114 = vmatpush1.bf16.msra.mxu0 0
      %1115 = vmatprep.subr.bf16.mxu0 0
      %1116 = vmatpush1.bf16.msra.mxu0 0
      %1117 = vmatprep.subr.bf16.mxu0 0
      %1118 = vmatpush1.bf16.msra.mxu0 0
      %1119 = vmatprep.subr.bf16.mxu0 0
      %1120 = vmatpush1.bf16.msra.mxu0 %v1103
      %1121 = vmatprep.subr.bf16.mxu0 0
      %1122 = vmatpush2.bf16.msra.mxu0 0
      %1123 = vmatprep.subr.bf16.mxu0 0
      %1124 = vmatpush2.bf16.msra.mxu0 0
      %1125 = vmatprep.subr.bf16.mxu0 0
      %1126 = vmatpush2.bf16.msra.mxu0 0
      %1127 = vmatprep.subr.bf16.mxu0 0
      %1128 = vmatpush2.bf16.msra.mxu0 0
      %1129 = vmatprep.subr.bf16.mxu0 0
      %1130 = vmatpush2.bf16.msra.mxu0 0
      %1131 = vmatprep.subr.bf16.mxu0 0
      %1132 = vmatpush2.bf16.msra.mxu0 0
      %1133 = vmatprep.subr.bf16.mxu0 0
      %1134 = vmatpush2.bf16.msra.mxu0 0
      %1135 = vmatprep.subr.bf16.mxu0 0
      %1136 = vmatpush2.bf16.msra.mxu0 0
      %1137 = vmatprep.mubr.bf16.mxu0 0
      %1138 = vmatmul.mubr.bf16.gmra.mxu0 %v670
      %v1139 = vpop.f32.mrf.mxu0
      %v1140 = vadd.f32 0.0, %v1139
      %v1141 = vpop.f32.mrf.mxu0
      %v1142 = vpop.f32.mrf.mxu0
      %v1143 = vadd.f32 0.0, %v1142
      %v1144 = vpop.f32.mrf.mxu0
      %1145 = vmatprep.mubr.bf16.mxu0 0
      %1146 = vmatmul.mubr.bf16.gmra.mxu0 %v1100
      %v1147 = vpop.f32.mrf.mxu0
      %v1148 = vadd.f32 0.0, %v1147
      %v1149 = vpop.f32.mrf.mxu0
      %v1150 = vpop.f32.mrf.mxu0
      %v1151 = vadd.f32 0.0, %v1150
      %v1152 = vpop.f32.mrf.mxu0
      %1153 = vdwg.mxu0
      %v1154 = vadd.f32 %v1086, %v1140
      %v1155 = vadd.f32 %v1087, %v1143
      %v1156 = vadd.f32 %v1088, %v1148
      %v1157 = vadd.f32 %v1089, %v1151
      %v1158 = vld [vmem:[%s4] sm:$0x1]
      %v1160 = vlaneseq
      %v1161 = vshrl.u32 %v1160, 7
      %v1162 = vsub.s32 0, %v1161
      %v1163 = vrot.slane %v1158, %v1162
      %v1165 = vadd.f32 %v1154, %v1163
      %v1166 = vadd.f32 %v1155, %v1163
      %v1167 = vadd.f32 %v1156, %v1163
      %v1168 = vadd.f32 %v1157, %v1163
      %1169 = vst.msk [vmem:[%s420] sm:$0xff] %vm507, %v1165
      %1170 = vst.msk [vmem:[%s420 + $0x8] sm:$0xff] %vm507, %v1166
      %1171 = vst.msk [vmem:[%s420 + $0x10] sm:$0xff] %vm507, %v1167
      %1172 = vst.msk [vmem:[%s420 + $0x18] sm:$0xff] %vm507, %v1168
      %v1173 = vsel %vm507, %v1165, 0.0
      %v1174 = vsel %vm507, %v1166, 0.0
      %v1175 = vadd.f32 %v1173, %v1174
      %v1176 = vsel %vm507, %v1167, 0.0
      %v1177 = vadd.f32 %v1175, %v1176
      %v1178 = vsel %vm507, %v1168, 0.0
      %v1179 = vadd.f32 %v1177, %v1178
      %v1180 = vrot.slane %v1179, 4
      %v1181 = vadd.f32 %v1179, %v1180
      %v1182 = vrot.slane %v1181, 2
      %v1183 = vadd.f32 %v1181, %v1182
      %v1184 = vrot.slane %v1183, 1
      %v1185 = vadd.f32 %v1183, %v1184
      %v1186 = vmul.f32 %v1165, %v1165
      %v1187 = vmul.f32 %v1166, %v1166
      %v1188 = vmul.f32 %v1167, %v1167
      %v1189 = vmul.f32 %v1168, %v1168
      %v1190 = vsel %vm507, %v1186, 0.0
      %v1191 = vsel %vm507, %v1187, 0.0
      %v1192 = vadd.f32 %v1190, %v1191
      %v1193 = vsel %vm507, %v1188, 0.0
      %v1194 = vadd.f32 %v1192, %v1193
      %v1195 = vsel %vm507, %v1189, 0.0
      %v1196 = vadd.f32 %v1194, %v1195
      %v1197 = vrot.slane %v1196, 4
      %v1198 = vadd.f32 %v1196, %v1197
      %v1199 = vrot.slane %v1198, 2
      %v1200 = vadd.f32 %v1198, %v1199
      %v1201 = vrot.slane %v1200, 1
      %v1202 = vadd.f32 %v1200, %v1201
      %vm1203 = vcmask 1040384
      %v1204 = vsel %vm1203, %v1185, %v1202
      %p1205 = scmp.eq.s32.totalorder %s23, 0
      // Predicated region
      $region41: #{_lambda_.8} parent=39 // pred_check
        %p1206 = pneg %p1205
      $region42: #{_lambda_.8} parent=39 // pred_check_branch
        %1208 = sbr.rel (%p1206) target = $region44
      $region43: #{_lambda_.8} parent=39 // pred_region
        %vm1209 = vcmask 58368
        %1210 = vst.msk [vmem:[%s425] sm:$0x3] %vm1209, 0.0
      $region44: #{_lambda_.8} parent=39 // pred_fallthru
        _
      %v1211 = vld [vmem:[%s425] sm:$0x3]
      %v1212 = vadd.f32 %v1211, %v1204
      %vm1213 = vcmask 58368
      %1214 = vst.msk [vmem:[%s425] sm:$0x3] %vm1213, %v1212
      %s1215 = smul.u32 4, %s23
      %p1216 = scmp.lt.s32.totalorder %s22, 1
      %s1217 = scalar_select %p1216, %s22, 1
      %p1218 = scmp.lt.s32.totalorder %s1215, 7
      %s1219 = scalar_select %p1218, %s1215, 7
      %s1220 = smul.addr %s1217, 8
      %s1221 = sadd.s32 %s1219, %s1220
      %s1222 = smul.addr %s1221, 8
      %s1223 = scalar_lea.vmem %s5, %s1222
      %p1224 = scmp.lt.s32.totalorder %s22, 1
      %s1225 = scalar_select %p1224, %s22, 1
      %s1226 = smul.addr %s1225, 2
      %s1227 = scalar_lea.vmem %s6, %s1226
      // Predicated region
      $region45: #{_lambda_.8} parent=39 // pred_check
        %p1228 = pneg %p184
      $region46: #{_lambda_.8} parent=39 // pred_check_branch
        %1230 = sbr.rel (%p1228) target = $region48
      $region47: #{_lambda_.8} parent=39 // pred_region
        %s1231 = smul.u32 4, %s23
      $region48: #{_lambda_.8} parent=39 // pred_fallthru
        _
      // Predicated region
      $region49: #{_lambda_.8} parent=39 // pred_check
        %p1232 = pneg %p210
      $region50: #{_lambda_.8} parent=39 // pred_check_branch
        %1234 = sbr.rel (%p1232) target = $region52
      $region51: #{_lambda_.8} parent=39 // pred_region
        _
      $region52: #{_lambda_.8} parent=39 // pred_fallthru
        _
    $region40: #{_lambda_.8} parent=5 // pred_fallthru
      _
    %p1235 = scmp.le.s32.totalorder 2, %s13
    // Predicated region
    $region53: #{_lambda_.8} parent=5 // pred_check
      %p1236 = pneg %p1235
    $region54: #{_lambda_.8} parent=5 // pred_check_branch
      %1238 = sbr.rel (%p1236) target = $region56
    $region55: #{_lambda_.8} parent=5 // pred_region
      %s1239 = ssub.s32 %s13, 2
      // Predicated region
      $region57: #{_lambda_.8} parent=55 // pred_check
        %p1240 = pneg %p190
      $region58: #{_lambda_.8} parent=55 // pred_check_branch
        %1242 = sbr.rel (%p1240) target = $region60
      $region59: #{_lambda_.8} parent=55 // pred_region
        %s1243 = smul.u32 4, %s25
        %p1244 = scmp.lt.s32.totalorder %s24, 1
        %s1245 = scalar_select %p1244, %s24, 1
        %p1246 = scmp.lt.s32.totalorder %s1243, 7
        %s1247 = scalar_select %p1246, %s1243, 7
        %s1248 = smul.addr %s1245, 8
        %s1249 = sadd.s32 %s1247, %s1248
        %s1250 = smul.addr %s1249, 8
        %s1251 = scalar_lea.vmem %s5, %s1250
      $region60: #{_lambda_.8} parent=55 // pred_fallthru
        _
      // Predicated region
      $region61: #{_lambda_.8} parent=55 // pred_check
        %p1252 = pneg %p216
      $region62: #{_lambda_.8} parent=55 // pred_check_branch
        %1254 = sbr.rel (%p1252) target = $region64
      $region63: #{_lambda_.8} parent=55 // pred_region
        %p1255 = scmp.lt.s32.totalorder %s24, 1
        %s1256 = scalar_select %p1255, %s24, 1
        %s1257 = smul.addr %s1256, 2
        %s1258 = scalar_lea.vmem %s6, %s1257
      $region64: #{_lambda_.8} parent=55 // pred_fallthru
        _
    $region56: #{_lambda_.8} parent=5 // pred_fallthru
      _
  $region6: #{_lambda_.8} parent=0 // loop_footer
    %s17 = sadd.s32 1, %s13
  $region7: #{_lambda_.8} parent=0 // loop_footer_branch
    %12 = sbr.rel target = $region3
  $region8: #{_lambda_.8} parent=0 // loop_exit
    _

</llo_original>
